<compile_context>
chip_gen: v5e
topology: v5e:2x2
jax: 0.10.0
libtpu: 0.0.40
codegen_flags: <defaults>
</compile_context>

<pallas_src>
import functools
import math

import jax
import jax.numpy as jnp
from jax.experimental import pallas as pl
from jax.experimental.pallas import tpu as pltpu


# ----------------------------------------------------------------------------
# In-kernel helpers (operate on jnp values)
# ----------------------------------------------------------------------------
def _gelu(x):
    # TODO(synk): torch.nn.GELU() default is the exact erf form; tanh approximation
    # is used here (guaranteed Mosaic lowering via tanh), max divergence ~1e-3.
    return 0.5 * x * (1.0 + jnp.tanh(0.7978845608028654 * (x + 0.044715 * x * x * x)))


def _layernorm(x, g, b, eps):
    mu = jnp.mean(x, axis=-1, keepdims=True)
    var = jnp.mean((x - mu) * (x - mu), axis=-1, keepdims=True)
    return (x - mu) * jax.lax.rsqrt(var + eps) * g + b


# ----------------------------------------------------------------------------
# Fused ViT forward kernel (one grid step, everything resident in VMEM)
# ----------------------------------------------------------------------------
def _fused_vit_kernel(*refs, depth, decoder_depth, B, N, nh, dh, D, eps):
    n_in = 4 + 12 * depth + 2 + 2 * decoder_depth + 2
    in_refs = refs[:n_in]
    o_ref = refs[n_in]
    attn_sc = refs[n_in + 1]            # (B*N, D) f32 VMEM scratch

    it = iter(in_refs)
    patches = next(it)[...]             # (B*N, C*p*p)
    pos = next(it)[...]                 # (B*N, D)   fixed ViT pos-embed, pre-tiled
    patch_w = next(it)[...]             # (C*p*p, D)
    patch_b = next(it)[...]             # (1, D)
    blocks = [[next(it) for _ in range(12)] for _ in range(depth)]
    norm_g = next(it)[...]
    norm_b = next(it)[...]
    head = [(next(it)[...], next(it)[...]) for _ in range(decoder_depth)]
    head_out_w = next(it)[...]
    head_out_b = next(it)[...]

    scale = 1.0 / math.sqrt(dh)

    # ---- patch embed (Conv2d k=p, s=p == matmul) + positional embedding ----
    x = jnp.dot(patches, patch_w, preferred_element_type=jnp.float32) + patch_b + pos

    # ---- transformer blocks (fully unrolled; depth is static) ----
    for blk in blocks:
        (ln1_g, ln1_b, qkv_w, qkv_b, proj_w, proj_b,
         ln2_g, ln2_b, fc1_w, fc1_b, fc2_w, fc2_b) = blk

        y = _layernorm(x, ln1_g[...], ln1_b[...], eps)
        qkv = jnp.dot(y, qkv_w[...], preferred_element_type=jnp.float32) + qkv_b[...]
        q = qkv[:, 0 * D:1 * D]
        k = qkv[:, 1 * D:2 * D]
        v = qkv[:, 2 * D:3 * D]

        # per-(batch, head) attention; heads sliced on the lane axis, merged
        # output assembled directly in VMEM scratch (no JAX-level transposes).
        for b in range(B):
            rs = slice(b * N, (b + 1) * N)
            for h in range(nh):
                cs = slice(h * dh, (h + 1) * dh)
                qh = q[rs, cs]                       # (N, dh)
                kh = k[rs, cs]
                vh = v[rs, cs]
                s = jnp.dot(qh, kh.T, preferred_element_type=jnp.float32) * scale
                m = jnp.max(s, axis=-1, keepdims=True)
                p = jnp.exp(s - m)
                p = p / jnp.sum(p, axis=-1, keepdims=True)
                attn_sc[rs, cs] = jnp.dot(p, vh, preferred_element_type=jnp.float32)

        o = jnp.dot(attn_sc[...], proj_w[...],
                    preferred_element_type=jnp.float32) + proj_b[...]
        x = x + o

        y = _layernorm(x, ln2_g[...], ln2_b[...], eps)
        h1 = _gelu(jnp.dot(y, fc1_w[...], preferred_element_type=jnp.float32) + fc1_b[...])
        h2 = jnp.dot(h1, fc2_w[...], preferred_element_type=jnp.float32) + fc2_b[...]
        x = x + h2

    # ---- final norm + decoder head ----
    x = _layernorm(x, norm_g, norm_b, eps)
    for (w, b) in head:
        x = _gelu(jnp.dot(x, w, preferred_element_type=jnp.float32) + b)
    out = jnp.dot(x, head_out_w, preferred_element_type=jnp.float32) + head_out_b

    # only HBM write: (B*N, out_ch*p*p) with last dim 128 -> lane-dense stores.
    o_ref[...] = out.astype(o_ref.dtype)


# ----------------------------------------------------------------------------
# Deterministic parameter initialization (biases / LN params stored 2-D)
# ----------------------------------------------------------------------------
def _dense(key, fan_in, fan_out, scale=0.02):
    w = scale * jax.random.normal(key, (fan_in, fan_out), jnp.float32)
    b = jnp.full((1, fan_out), 0.01, jnp.float32)
    return w, b


def init_params(key, cfg):
    D = cfg["embed_dim"]
    p = cfg["patch_size"]
    C = cfg["in_channels"] * cfg["history"]
    hp = cfg["img_size"] // p
    num_patches = hp * hp
    hidden = int(D * cfg["mlp_ratio"])

    keys = iter(jax.random.split(key, 8 + cfg["depth"] * 6 + cfg["decoder_depth"] + 2))
    params = {}
    # Baseline.pos_emb : Linear(1, emb_size) -- computed in plain JAX
    params["pos_w"], params["pos_b"] = _dense(next(keys), 1, cfg["emb_size"])
    # PatchEmbed (Conv2d k=p, s=p == matmul over flattened patches)
    params["patch_w"], params["patch_b"] = _dense(next(keys), C * p * p, D)
    # fixed (non-learned) ViT positional embedding
    params["vit_pos_embed"] = 0.02 * jax.random.normal(
        next(keys), (num_patches, D), jnp.float32)

    blocks = []
    for _ in range(cfg["depth"]):
        blk = {}
        blk["ln1_g"] = jnp.ones((1, D), jnp.float32)
        blk["ln1_b"] = jnp.zeros((1, D), jnp.float32)
        blk["qkv_w"], blk["qkv_b"] = _dense(next(keys), D, 3 * D)
        blk["proj_w"], blk["proj_b"] = _dense(next(keys), D, D)
        blk["ln2_g"] = jnp.ones((1, D), jnp.float32)
        blk["ln2_b"] = jnp.zeros((1, D), jnp.float32)
        blk["fc1_w"], blk["fc1_b"] = _dense(next(keys), D, hidden)
        blk["fc2_w"], blk["fc2_b"] = _dense(next(keys), hidden, D)
        blocks.append(blk)
    params["blocks"] = blocks

    params["norm_g"] = jnp.ones((1, D), jnp.float32)
    params["norm_b"] = jnp.zeros((1, D), jnp.float32)

    head = []
    for _ in range(cfg["decoder_depth"]):
        w, b = _dense(next(keys), D, D)
        head.append({"w": w, "b": b})
    params["head"] = head
    params["head_out_w"], params["head_out_b"] = _dense(
        next(keys), D, cfg["out_channels"] * p * p)
    return params


# ----------------------------------------------------------------------------
# Forward pass (plain-JAX glue + one fused pallas_call), jitted by the caller
# ----------------------------------------------------------------------------
def baseline_forward(params, X, gap, cfg):
    B, C, H, W = X.shape
    p = cfg["patch_size"]
    D = cfg["embed_dim"]
    nh = cfg["num_heads"]
    dh = D // nh
    hp, wp = H // p, W // p
    N = hp * wp
    out_ch = cfg["out_channels"]
    out_dim = out_ch * p * p
    eps = 1e-6  # NOTE: timm ViTs use 1e-6; torch.nn.LayerNorm default is 1e-5.

    # --- Baseline: pos_emb = Linear(1, emb_size)(gap); X_emb = X + reshape ---
    # (2x1x256 FLOPs -> plain JAX, not worth a kernel launch)
    pe = gap @ params["pos_w"] + params["pos_b"]                  # (B, emb_size)
    X_emb = X + pe.reshape(X.shape)

    # --- patchify (plain-JAX glue, fused under jit) ---
    patches = X_emb.reshape(B, C, hp, p, wp, p)
    patches = jnp.transpose(patches, (0, 2, 4, 1, 3, 5)).reshape(B * N, C * p * p)
    pos_bn = jnp.tile(params["vit_pos_embed"], (B, 1))            # (B*N, D)

    # --- flatten all kernel operands (everything is 2-D, full-array blocks) ---
    flat_inputs = [patches, pos_bn, params["patch_w"], params["patch_b"]]
    for blk in params["blocks"]:
        flat_inputs += [blk["ln1_g"], blk["ln1_b"], blk["qkv_w"], blk["qkv_b"],
                        blk["proj_w"], blk["proj_b"], blk["ln2_g"], blk["ln2_b"],
                        blk["fc1_w"], blk["fc1_b"], blk["fc2_w"], blk["fc2_b"]]
    flat_inputs += [params["norm_g"], params["norm_b"]]
    for lyr in params["head"]:
        flat_inputs += [lyr["w"], lyr["b"]]
    flat_inputs += [params["head_out_w"], params["head_out_b"]]

    total_bytes = sum(int(a.size) * 4 for a in flat_inputs)
    # TODO(synk): add tiled-linear / flash-attention path when operands exceed VMEM.
    assert total_bytes < 8 * 1024 * 1024, "fused kernel assumes weights+acts fit VMEM"

    kernel = functools.partial(
        _fused_vit_kernel,
        depth=cfg["depth"], decoder_depth=cfg["decoder_depth"],
        B=B, N=N, nh=nh, dh=dh, D=D, eps=eps)

    in_specs = [pl.BlockSpec(a.shape, lambda i: (0, 0)) for a in flat_inputs]

    y = pl.pallas_call(
        kernel,
        out_shape=jax.ShapeDtypeStruct((B * N, out_dim), jnp.float32),
        grid=(1,),
        in_specs=in_specs,
        out_specs=pl.BlockSpec((B * N, out_dim), lambda i: (0, 0)),
        scratch_shapes=[pltpu.VMEM((B * N, D), jnp.float32)],
        compiler_params=pltpu.CompilerParams(dimension_semantics=("arbitrary",)),
    )(*flat_inputs)                                               # (B*N, out_dim)

    # --- unpatchify (plain-JAX glue) ---
    y = y.reshape(B, hp, wp, p, p, out_ch)
    out = jnp.einsum("bhwpqc->bchpwq", y).reshape(B, out_ch, hp * p, wp * p)
    return out


# ----------------------------------------------------------------------------
# Main
# ----------------------------------------------------------------------------
if __name__ == "__main__":
    cfg = dict(
        img_size=16,
        patch_size=8,
        in_channels=1,
        out_channels=2,
        history=1,
        embed_dim=32,
        depth=2,
        decoder_depth=1,
        num_heads=4,
        mlp_ratio=4.0,
        emb_size=1 * 16 * 16,   # must equal C*H*W so pos_emb reshapes to X.shape
    )

    key = jax.random.PRNGKey(0)
    kp, kx, kg = jax.random.split(key, 3)
    params = init_params(kp, cfg)

    B = 2
    X = jax.random.normal(kx, (B, cfg["in_channels"] * cfg["history"],
                               cfg["img_size"], cfg["img_size"]), jnp.float32)
    gap = jax.random.uniform(kg, (B, 1), jnp.float32)

    fwd = jax.jit(functools.partial(baseline_forward, cfg=cfg))
    out = fwd(params, X, gap)
    out = jax.block_until_ready(out)
    assert out.shape == (B, cfg["out_channels"], cfg["img_size"], cfg["img_size"]), out.shape
    assert jnp.all(jnp.isfinite(out))
    print("KERNEL_OK")
</pallas_src>

<mosaic_0001>
module attributes {stable_mosaic.version = 11 : i64} {
  func.func @_fused_vit_kernel(%arg0: i32, %arg1: memref<8x64xf32, #tpu.memory_space<vmem>>, %arg2: memref<8x32xf32, #tpu.memory_space<vmem>>, %arg3: memref<64x32xf32, #tpu.memory_space<vmem>>, %arg4: memref<1x32xf32, #tpu.memory_space<vmem>>, %arg5: memref<1x32xf32, #tpu.memory_space<vmem>>, %arg6: memref<1x32xf32, #tpu.memory_space<vmem>>, %arg7: memref<32x96xf32, #tpu.memory_space<vmem>>, %arg8: memref<1x96xf32, #tpu.memory_space<vmem>>, %arg9: memref<32x32xf32, #tpu.memory_space<vmem>>, %arg10: memref<1x32xf32, #tpu.memory_space<vmem>>, %arg11: memref<1x32xf32, #tpu.memory_space<vmem>>, %arg12: memref<1x32xf32, #tpu.memory_space<vmem>>, %arg13: memref<32x128xf32, #tpu.memory_space<vmem>>, %arg14: memref<1x128xf32, #tpu.memory_space<vmem>>, %arg15: memref<128x32xf32, #tpu.memory_space<vmem>>, %arg16: memref<1x32xf32, #tpu.memory_space<vmem>>, %arg17: memref<1x32xf32, #tpu.memory_space<vmem>>, %arg18: memref<1x32xf32, #tpu.memory_space<vmem>>, %arg19: memref<32x96xf32, #tpu.memory_space<vmem>>, %arg20: memref<1x96xf32, #tpu.memory_space<vmem>>, %arg21: memref<32x32xf32, #tpu.memory_space<vmem>>, %arg22: memref<1x32xf32, #tpu.memory_space<vmem>>, %arg23: memref<1x32xf32, #tpu.memory_space<vmem>>, %arg24: memref<1x32xf32, #tpu.memory_space<vmem>>, %arg25: memref<32x128xf32, #tpu.memory_space<vmem>>, %arg26: memref<1x128xf32, #tpu.memory_space<vmem>>, %arg27: memref<128x32xf32, #tpu.memory_space<vmem>>, %arg28: memref<1x32xf32, #tpu.memory_space<vmem>>, %arg29: memref<1x32xf32, #tpu.memory_space<vmem>>, %arg30: memref<1x32xf32, #tpu.memory_space<vmem>>, %arg31: memref<32x32xf32, #tpu.memory_space<vmem>>, %arg32: memref<1x32xf32, #tpu.memory_space<vmem>>, %arg33: memref<32x128xf32, #tpu.memory_space<vmem>>, %arg34: memref<1x128xf32, #tpu.memory_space<vmem>>, %arg35: memref<8x128xf32, #tpu.memory_space<vmem>>, %arg36: memref<8x32xf32, #tpu.memory_space<vmem>>) attributes {dimension_semantics = [#tpu.dimension_semantics<arbitrary>], iteration_bounds = array<i64: 1>, scalar_prefetch = 0 : i64, scratch_operands = 1 : i64, tpu.core_type = #tpu.core_type<tc>, window_params = [{pipeline_mode = #tpu.pipeline_mode<synchronous>, transform_indices = @transform_0, window_bounds = array<i64: 8, 64>}, {pipeline_mode = #tpu.pipeline_mode<synchronous>, transform_indices = @transform_1, window_bounds = array<i64: 8, 32>}, {pipeline_mode = #tpu.pipeline_mode<synchronous>, transform_indices = @transform_2, window_bounds = array<i64: 64, 32>}, {pipeline_mode = #tpu.pipeline_mode<synchronous>, transform_indices = @transform_3, window_bounds = array<i64: 1, 32>}, {pipeline_mode = #tpu.pipeline_mode<synchronous>, transform_indices = @transform_4, window_bounds = array<i64: 1, 32>}, {pipeline_mode = #tpu.pipeline_mode<synchronous>, transform_indices = @transform_5, window_bounds = array<i64: 1, 32>}, {pipeline_mode = #tpu.pipeline_mode<synchronous>, transform_indices = @transform_6, window_bounds = array<i64: 32, 96>}, {pipeline_mode = #tpu.pipeline_mode<synchronous>, transform_indices = @transform_7, window_bounds = array<i64: 1, 96>}, {pipeline_mode = #tpu.pipeline_mode<synchronous>, transform_indices = @transform_8, window_bounds = array<i64: 32, 32>}, {pipeline_mode = #tpu.pipeline_mode<synchronous>, transform_indices = @transform_9, window_bounds = array<i64: 1, 32>}, {pipeline_mode = #tpu.pipeline_mode<synchronous>, transform_indices = @transform_10, window_bounds = array<i64: 1, 32>}, {pipeline_mode = #tpu.pipeline_mode<synchronous>, transform_indices = @transform_11, window_bounds = array<i64: 1, 32>}, {pipeline_mode = #tpu.pipeline_mode<synchronous>, transform_indices = @transform_12, window_bounds = array<i64: 32, 128>}, {pipeline_mode = #tpu.pipeline_mode<synchronous>, transform_indices = @transform_13, window_bounds = array<i64: 1, 128>}, {pipeline_mode = #tpu.pipeline_mode<synchronous>, transform_indices = @transform_14, window_bounds = array<i64: 128, 32>}, {pipeline_mode = #tpu.pipeline_mode<synchronous>, transform_indices = @transform_15, window_bounds = array<i64: 1, 32>}, {pipeline_mode = #tpu.pipeline_mode<synchronous>, transform_indices = @transform_16, window_bounds = array<i64: 1, 32>}, {pipeline_mode = #tpu.pipeline_mode<synchronous>, transform_indices = @transform_17, window_bounds = array<i64: 1, 32>}, {pipeline_mode = #tpu.pipeline_mode<synchronous>, transform_indices = @transform_18, window_bounds = array<i64: 32, 96>}, {pipeline_mode = #tpu.pipeline_mode<synchronous>, transform_indices = @transform_19, window_bounds = array<i64: 1, 96>}, {pipeline_mode = #tpu.pipeline_mode<synchronous>, transform_indices = @transform_20, window_bounds = array<i64: 32, 32>}, {pipeline_mode = #tpu.pipeline_mode<synchronous>, transform_indices = @transform_21, window_bounds = array<i64: 1, 32>}, {pipeline_mode = #tpu.pipeline_mode<synchronous>, transform_indices = @transform_22, window_bounds = array<i64: 1, 32>}, {pipeline_mode = #tpu.pipeline_mode<synchronous>, transform_indices = @transform_23, window_bounds = array<i64: 1, 32>}, {pipeline_mode = #tpu.pipeline_mode<synchronous>, transform_indices = @transform_24, window_bounds = array<i64: 32, 128>}, {pipeline_mode = #tpu.pipeline_mode<synchronous>, transform_indices = @transform_25, window_bounds = array<i64: 1, 128>}, {pipeline_mode = #tpu.pipeline_mode<synchronous>, transform_indices = @transform_26, window_bounds = array<i64: 128, 32>}, {pipeline_mode = #tpu.pipeline_mode<synchronous>, transform_indices = @transform_27, window_bounds = array<i64: 1, 32>}, {pipeline_mode = #tpu.pipeline_mode<synchronous>, transform_indices = @transform_28, window_bounds = array<i64: 1, 32>}, {pipeline_mode = #tpu.pipeline_mode<synchronous>, transform_indices = @transform_29, window_bounds = array<i64: 1, 32>}, {pipeline_mode = #tpu.pipeline_mode<synchronous>, transform_indices = @transform_30, window_bounds = array<i64: 32, 32>}, {pipeline_mode = #tpu.pipeline_mode<synchronous>, transform_indices = @transform_31, window_bounds = array<i64: 1, 32>}, {pipeline_mode = #tpu.pipeline_mode<synchronous>, transform_indices = @transform_32, window_bounds = array<i64: 32, 128>}, {pipeline_mode = #tpu.pipeline_mode<synchronous>, transform_indices = @transform_33, window_bounds = array<i64: 1, 128>}, {pipeline_mode = #tpu.pipeline_mode<synchronous>, transform_indices = @transform_34, window_bounds = array<i64: 8, 128>}]} {
    %c0 = arith.constant 0 : index
    %c0_0 = arith.constant 0 : index
    %0 = vector.load %arg1[%c0, %c0_0] : memref<8x64xf32, #tpu.memory_space<vmem>>, vector<8x64xf32>
    %c0_1 = arith.constant 0 : index
    %c0_2 = arith.constant 0 : index
    %1 = vector.load %arg2[%c0_1, %c0_2] : memref<8x32xf32, #tpu.memory_space<vmem>>, vector<8x32xf32>
    %c0_3 = arith.constant 0 : index
    %c0_4 = arith.constant 0 : index
    %2 = vector.load %arg3[%c0_3, %c0_4] : memref<64x32xf32, #tpu.memory_space<vmem>>, vector<64x32xf32>
    %c0_5 = arith.constant 0 : index
    %c0_6 = arith.constant 0 : index
    %3 = vector.load %arg4[%c0_5, %c0_6] : memref<1x32xf32, #tpu.memory_space<vmem>>, vector<1x32xf32>
    %c0_7 = arith.constant 0 : index
    %c0_8 = arith.constant 0 : index
    %4 = vector.load %arg29[%c0_7, %c0_8] : memref<1x32xf32, #tpu.memory_space<vmem>>, vector<1x32xf32>
    %c0_9 = arith.constant 0 : index
    %c0_10 = arith.constant 0 : index
    %5 = vector.load %arg30[%c0_9, %c0_10] : memref<1x32xf32, #tpu.memory_space<vmem>>, vector<1x32xf32>
    %c0_11 = arith.constant 0 : index
    %c0_12 = arith.constant 0 : index
    %6 = vector.load %arg31[%c0_11, %c0_12] : memref<32x32xf32, #tpu.memory_space<vmem>>, vector<32x32xf32>
    %c0_13 = arith.constant 0 : index
    %c0_14 = arith.constant 0 : index
    %7 = vector.load %arg32[%c0_13, %c0_14] : memref<1x32xf32, #tpu.memory_space<vmem>>, vector<1x32xf32>
    %c0_15 = arith.constant 0 : index
    %c0_16 = arith.constant 0 : index
    %8 = vector.load %arg33[%c0_15, %c0_16] : memref<32x128xf32, #tpu.memory_space<vmem>>, vector<32x128xf32>
    %c0_17 = arith.constant 0 : index
    %c0_18 = arith.constant 0 : index
    %9 = vector.load %arg34[%c0_17, %c0_18] : memref<1x128xf32, #tpu.memory_space<vmem>>, vector<1x128xf32>
    %cst = arith.constant dense<0.000000e+00> : vector<8x32xf32>
    %10 = tpu.matmul %0, %2, %cst {dimension_numbers = #tpu.dot_dimension_numbers<[1], [0], [0], [1], [0, 0, 1, 1], [], []>} : vector<8x64xf32>, vector<64x32xf32>, vector<8x32xf32> -> vector<8x32xf32>
    %11 = vector.broadcast %3 : vector<1x32xf32> to vector<8x32xf32>
    %12 = arith.addf %10, %11 : vector<8x32xf32>
    %13 = arith.addf %12, %1 : vector<8x32xf32>
    %c0_19 = arith.constant 0 : index
    %c0_20 = arith.constant 0 : index
    %14 = vector.load %arg5[%c0_19, %c0_20] : memref<1x32xf32, #tpu.memory_space<vmem>>, vector<1x32xf32>
    %c0_21 = arith.constant 0 : index
    %c0_22 = arith.constant 0 : index
    %15 = vector.load %arg6[%c0_21, %c0_22] : memref<1x32xf32, #tpu.memory_space<vmem>>, vector<1x32xf32>
    %cst_23 = arith.constant dense<0.000000e+00> : vector<8xf32>
    %16 = vector.multi_reduction <add>, %13, %cst_23 [1] : vector<8x32xf32> to vector<8xf32>
    %17 = vector.shape_cast %16 : vector<8xf32> to vector<8x1xf32>
    %cst_24 = arith.constant 3.200000e+01 : f32
    %18 = vector.broadcast %cst_24 : f32 to vector<8x1xf32>
    %19 = arith.divf %17, %18 : vector<8x1xf32>
    %20 = vector.broadcast %19 : vector<8x1xf32> to vector<8x32xf32>
    %21 = arith.subf %13, %20 : vector<8x32xf32>
    %22 = vector.broadcast %19 : vector<8x1xf32> to vector<8x32xf32>
    %23 = arith.subf %13, %22 : vector<8x32xf32>
    %24 = arith.mulf %21, %23 : vector<8x32xf32>
    %cst_25 = arith.constant dense<0.000000e+00> : vector<8xf32>
    %25 = vector.multi_reduction <add>, %24, %cst_25 [1] : vector<8x32xf32> to vector<8xf32>
    %26 = vector.shape_cast %25 : vector<8xf32> to vector<8x1xf32>
    %cst_26 = arith.constant 3.200000e+01 : f32
    %27 = vector.broadcast %cst_26 : f32 to vector<8x1xf32>
    %28 = arith.divf %26, %27 : vector<8x1xf32>
    %29 = vector.broadcast %19 : vector<8x1xf32> to vector<8x32xf32>
    %30 = arith.subf %13, %29 : vector<8x32xf32>
    %cst_27 = arith.constant 9.99999997E-7 : f32
    %31 = vector.broadcast %cst_27 : f32 to vector<8x1xf32>
    %32 = arith.addf %28, %31 : vector<8x1xf32>
    %33 = math.rsqrt %32 : vector<8x1xf32>
    %34 = vector.broadcast %33 : vector<8x1xf32> to vector<8x32xf32>
    %35 = arith.mulf %30, %34 : vector<8x32xf32>
    %36 = vector.broadcast %14 : vector<1x32xf32> to vector<8x32xf32>
    %37 = arith.mulf %35, %36 : vector<8x32xf32>
    %38 = vector.broadcast %15 : vector<1x32xf32> to vector<8x32xf32>
    %39 = arith.addf %37, %38 : vector<8x32xf32>
    %c0_28 = arith.constant 0 : index
    %c0_29 = arith.constant 0 : index
    %40 = vector.load %arg7[%c0_28, %c0_29] : memref<32x96xf32, #tpu.memory_space<vmem>>, vector<32x96xf32>
    %cst_30 = arith.constant dense<0.000000e+00> : vector<8x96xf32>
    %41 = tpu.matmul %39, %40, %cst_30 {dimension_numbers = #tpu.dot_dimension_numbers<[1], [0], [0], [1], [0, 0, 1, 1], [], []>} : vector<8x32xf32>, vector<32x96xf32>, vector<8x96xf32> -> vector<8x96xf32>
    %c0_31 = arith.constant 0 : index
    %c0_32 = arith.constant 0 : index
    %42 = vector.load %arg8[%c0_31, %c0_32] : memref<1x96xf32, #tpu.memory_space<vmem>>, vector<1x96xf32>
    %43 = vector.broadcast %42 : vector<1x96xf32> to vector<8x96xf32>
    %44 = arith.addf %41, %43 : vector<8x96xf32>
    %45 = vector.extract_strided_slice %44 {offsets = [0, 0], sizes = [8, 32], strides = [1, 1]} : vector<8x96xf32> to vector<8x32xf32>
    %46 = vector.extract_strided_slice %44 {offsets = [0, 32], sizes = [8, 32], strides = [1, 1]} : vector<8x96xf32> to vector<8x32xf32>
    %47 = vector.extract_strided_slice %44 {offsets = [0, 64], sizes = [8, 32], strides = [1, 1]} : vector<8x96xf32> to vector<8x32xf32>
    %48 = vector.extract_strided_slice %45 {offsets = [0, 0], sizes = [4, 8], strides = [1, 1]} : vector<8x32xf32> to vector<4x8xf32>
    %49 = vector.extract_strided_slice %46 {offsets = [0, 0], sizes = [4, 8], strides = [1, 1]} : vector<8x32xf32> to vector<4x8xf32>
    %50 = vector.extract_strided_slice %47 {offsets = [0, 0], sizes = [4, 8], strides = [1, 1]} : vector<8x32xf32> to vector<4x8xf32>
    %51 = tpu.transpose %49, [1, 0] : vector<4x8xf32> -> vector<8x4xf32>
    %cst_33 = arith.constant dense<0.000000e+00> : vector<4x4xf32>
    %52 = tpu.matmul %48, %51, %cst_33 {dimension_numbers = #tpu.dot_dimension_numbers<[1], [0], [0], [1], [0, 0, 1, 1], [], []>} : vector<4x8xf32>, vector<8x4xf32>, vector<4x4xf32> -> vector<4x4xf32>
    %cst_34 = arith.constant 0.353553385 : f32
    %53 = vector.broadcast %cst_34 : f32 to vector<4x4xf32>
    %54 = arith.mulf %52, %53 : vector<4x4xf32>
    %cst_35 = arith.constant dense<0xFF800000> : vector<4xf32>
    %55 = vector.multi_reduction <maximumf>, %54, %cst_35 [1] : vector<4x4xf32> to vector<4xf32>
    %56 = vector.shape_cast %55 : vector<4xf32> to vector<4x1xf32>
    %57 = vector.broadcast %56 : vector<4x1xf32> to vector<4x4xf32>
    %58 = arith.subf %54, %57 : vector<4x4xf32>
    %59 = math.exp %58 : vector<4x4xf32>
    %cst_36 = arith.constant dense<0.000000e+00> : vector<4xf32>
    %60 = vector.multi_reduction <add>, %59, %cst_36 [1] : vector<4x4xf32> to vector<4xf32>
    %61 = vector.shape_cast %60 : vector<4xf32> to vector<4x1xf32>
    %62 = vector.broadcast %61 : vector<4x1xf32> to vector<4x4xf32>
    %63 = arith.divf %59, %62 : vector<4x4xf32>
    %cst_37 = arith.constant dense<0.000000e+00> : vector<4x8xf32>
    %64 = tpu.matmul %63, %50, %cst_37 {dimension_numbers = #tpu.dot_dimension_numbers<[1], [0], [0], [1], [0, 0, 1, 1], [], []>} : vector<4x4xf32>, vector<4x8xf32>, vector<4x8xf32> -> vector<4x8xf32>
    %c0_38 = arith.constant 0 : index
    %c0_39 = arith.constant 0 : index
    %65 = vector.load %arg36[%c0_38, %c0_39] : memref<8x32xf32, #tpu.memory_space<vmem>>, vector<4x8xf32>
    tpu.vector_store %arg36[%c0_38, %c0_39], %64 {strides = array<i32>} : memref<8x32xf32, #tpu.memory_space<vmem>>, vector<4x8xf32>,
    %66 = vector.extract_strided_slice %45 {offsets = [0, 8], sizes = [4, 8], strides = [1, 1]} : vector<8x32xf32> to vector<4x8xf32>
    %67 = vector.extract_strided_slice %46 {offsets = [0, 8], sizes = [4, 8], strides = [1, 1]} : vector<8x32xf32> to vector<4x8xf32>
    %68 = vector.extract_strided_slice %47 {offsets = [0, 8], sizes = [4, 8], strides = [1, 1]} : vector<8x32xf32> to vector<4x8xf32>
    %69 = tpu.transpose %67, [1, 0] : vector<4x8xf32> -> vector<8x4xf32>
    %cst_40 = arith.constant dense<0.000000e+00> : vector<4x4xf32>
    %70 = tpu.matmul %66, %69, %cst_40 {dimension_numbers = #tpu.dot_dimension_numbers<[1], [0], [0], [1], [0, 0, 1, 1], [], []>} : vector<4x8xf32>, vector<8x4xf32>, vector<4x4xf32> -> vector<4x4xf32>
    %cst_41 = arith.constant 0.353553385 : f32
    %71 = vector.broadcast %cst_41 : f32 to vector<4x4xf32>
    %72 = arith.mulf %70, %71 : vector<4x4xf32>
    %cst_42 = arith.constant dense<0xFF800000> : vector<4xf32>
    %73 = vector.multi_reduction <maximumf>, %72, %cst_42 [1] : vector<4x4xf32> to vector<4xf32>
    %74 = vector.shape_cast %73 : vector<4xf32> to vector<4x1xf32>
    %75 = vector.broadcast %74 : vector<4x1xf32> to vector<4x4xf32>
    %76 = arith.subf %72, %75 : vector<4x4xf32>
    %77 = math.exp %76 : vector<4x4xf32>
    %cst_43 = arith.constant dense<0.000000e+00> : vector<4xf32>
    %78 = vector.multi_reduction <add>, %77, %cst_43 [1] : vector<4x4xf32> to vector<4xf32>
    %79 = vector.shape_cast %78 : vector<4xf32> to vector<4x1xf32>
    %80 = vector.broadcast %79 : vector<4x1xf32> to vector<4x4xf32>
    %81 = arith.divf %77, %80 : vector<4x4xf32>
    %cst_44 = arith.constant dense<0.000000e+00> : vector<4x8xf32>
    %82 = tpu.matmul %81, %68, %cst_44 {dimension_numbers = #tpu.dot_dimension_numbers<[1], [0], [0], [1], [0, 0, 1, 1], [], []>} : vector<4x4xf32>, vector<4x8xf32>, vector<4x8xf32> -> vector<4x8xf32>
    %c0_45 = arith.constant 0 : index
    %c8 = arith.constant 8 : index
    %83 = vector.load %arg36[%c0_45, %c8] : memref<8x32xf32, #tpu.memory_space<vmem>>, vector<4x8xf32>
    tpu.vector_store %arg36[%c0_45, %c8], %82 {strides = array<i32>} : memref<8x32xf32, #tpu.memory_space<vmem>>, vector<4x8xf32>,
    %84 = vector.extract_strided_slice %45 {offsets = [0, 16], sizes = [4, 8], strides = [1, 1]} : vector<8x32xf32> to vector<4x8xf32>
    %85 = vector.extract_strided_slice %46 {offsets = [0, 16], sizes = [4, 8], strides = [1, 1]} : vector<8x32xf32> to vector<4x8xf32>
    %86 = vector.extract_strided_slice %47 {offsets = [0, 16], sizes = [4, 8], strides = [1, 1]} : vector<8x32xf32> to vector<4x8xf32>
    %87 = tpu.transpose %85, [1, 0] : vector<4x8xf32> -> vector<8x4xf32>
    %cst_46 = arith.constant dense<0.000000e+00> : vector<4x4xf32>
    %88 = tpu.matmul %84, %87, %cst_46 {dimension_numbers = #tpu.dot_dimension_numbers<[1], [0], [0], [1], [0, 0, 1, 1], [], []>} : vector<4x8xf32>, vector<8x4xf32>, vector<4x4xf32> -> vector<4x4xf32>
    %cst_47 = arith.constant 0.353553385 : f32
    %89 = vector.broadcast %cst_47 : f32 to vector<4x4xf32>
    %90 = arith.mulf %88, %89 : vector<4x4xf32>
    %cst_48 = arith.constant dense<0xFF800000> : vector<4xf32>
    %91 = vector.multi_reduction <maximumf>, %90, %cst_48 [1] : vector<4x4xf32> to vector<4xf32>
    %92 = vector.shape_cast %91 : vector<4xf32> to vector<4x1xf32>
    %93 = vector.broadcast %92 : vector<4x1xf32> to vector<4x4xf32>
    %94 = arith.subf %90, %93 : vector<4x4xf32>
    %95 = math.exp %94 : vector<4x4xf32>
    %cst_49 = arith.constant dense<0.000000e+00> : vector<4xf32>
    %96 = vector.multi_reduction <add>, %95, %cst_49 [1] : vector<4x4xf32> to vector<4xf32>
    %97 = vector.shape_cast %96 : vector<4xf32> to vector<4x1xf32>
    %98 = vector.broadcast %97 : vector<4x1xf32> to vector<4x4xf32>
    %99 = arith.divf %95, %98 : vector<4x4xf32>
    %cst_50 = arith.constant dense<0.000000e+00> : vector<4x8xf32>
    %100 = tpu.matmul %99, %86, %cst_50 {dimension_numbers = #tpu.dot_dimension_numbers<[1], [0], [0], [1], [0, 0, 1, 1], [], []>} : vector<4x4xf32>, vector<4x8xf32>, vector<4x8xf32> -> vector<4x8xf32>
    %c0_51 = arith.constant 0 : index
    %c16 = arith.constant 16 : index
    %101 = vector.load %arg36[%c0_51, %c16] : memref<8x32xf32, #tpu.memory_space<vmem>>, vector<4x8xf32>
    tpu.vector_store %arg36[%c0_51, %c16], %100 {strides = array<i32>} : memref<8x32xf32, #tpu.memory_space<vmem>>, vector<4x8xf32>,
    %102 = vector.extract_strided_slice %45 {offsets = [0, 24], sizes = [4, 8], strides = [1, 1]} : vector<8x32xf32> to vector<4x8xf32>
    %103 = vector.extract_strided_slice %46 {offsets = [0, 24], sizes = [4, 8], strides = [1, 1]} : vector<8x32xf32> to vector<4x8xf32>
    %104 = vector.extract_strided_slice %47 {offsets = [0, 24], sizes = [4, 8], strides = [1, 1]} : vector<8x32xf32> to vector<4x8xf32>
    %105 = tpu.transpose %103, [1, 0] : vector<4x8xf32> -> vector<8x4xf32>
    %cst_52 = arith.constant dense<0.000000e+00> : vector<4x4xf32>
    %106 = tpu.matmul %102, %105, %cst_52 {dimension_numbers = #tpu.dot_dimension_numbers<[1], [0], [0], [1], [0, 0, 1, 1], [], []>} : vector<4x8xf32>, vector<8x4xf32>, vector<4x4xf32> -> vector<4x4xf32>
    %cst_53 = arith.constant 0.353553385 : f32
    %107 = vector.broadcast %cst_53 : f32 to vector<4x4xf32>
    %108 = arith.mulf %106, %107 : vector<4x4xf32>
    %cst_54 = arith.constant dense<0xFF800000> : vector<4xf32>
    %109 = vector.multi_reduction <maximumf>, %108, %cst_54 [1] : vector<4x4xf32> to vector<4xf32>
    %110 = vector.shape_cast %109 : vector<4xf32> to vector<4x1xf32>
    %111 = vector.broadcast %110 : vector<4x1xf32> to vector<4x4xf32>
    %112 = arith.subf %108, %111 : vector<4x4xf32>
    %113 = math.exp %112 : vector<4x4xf32>
    %cst_55 = arith.constant dense<0.000000e+00> : vector<4xf32>
    %114 = vector.multi_reduction <add>, %113, %cst_55 [1] : vector<4x4xf32> to vector<4xf32>
    %115 = vector.shape_cast %114 : vector<4xf32> to vector<4x1xf32>
    %116 = vector.broadcast %115 : vector<4x1xf32> to vector<4x4xf32>
    %117 = arith.divf %113, %116 : vector<4x4xf32>
    %cst_56 = arith.constant dense<0.000000e+00> : vector<4x8xf32>
    %118 = tpu.matmul %117, %104, %cst_56 {dimension_numbers = #tpu.dot_dimension_numbers<[1], [0], [0], [1], [0, 0, 1, 1], [], []>} : vector<4x4xf32>, vector<4x8xf32>, vector<4x8xf32> -> vector<4x8xf32>
    %c0_57 = arith.constant 0 : index
    %c24 = arith.constant 24 : index
    %119 = vector.load %arg36[%c0_57, %c24] : memref<8x32xf32, #tpu.memory_space<vmem>>, vector<4x8xf32>
    tpu.vector_store %arg36[%c0_57, %c24], %118 {strides = array<i32>} : memref<8x32xf32, #tpu.memory_space<vmem>>, vector<4x8xf32>,
    %120 = vector.extract_strided_slice %45 {offsets = [4, 0], sizes = [4, 8], strides = [1, 1]} : vector<8x32xf32> to vector<4x8xf32>
    %121 = vector.extract_strided_slice %46 {offsets = [4, 0], sizes = [4, 8], strides = [1, 1]} : vector<8x32xf32> to vector<4x8xf32>
    %122 = vector.extract_strided_slice %47 {offsets = [4, 0], sizes = [4, 8], strides = [1, 1]} : vector<8x32xf32> to vector<4x8xf32>
    %123 = tpu.transpose %121, [1, 0] : vector<4x8xf32> -> vector<8x4xf32>
    %cst_58 = arith.constant dense<0.000000e+00> : vector<4x4xf32>
    %124 = tpu.matmul %120, %123, %cst_58 {dimension_numbers = #tpu.dot_dimension_numbers<[1], [0], [0], [1], [0, 0, 1, 1], [], []>} : vector<4x8xf32>, vector<8x4xf32>, vector<4x4xf32> -> vector<4x4xf32>
    %cst_59 = arith.constant 0.353553385 : f32
    %125 = vector.broadcast %cst_59 : f32 to vector<4x4xf32>
    %126 = arith.mulf %124, %125 : vector<4x4xf32>
    %cst_60 = arith.constant dense<0xFF800000> : vector<4xf32>
    %127 = vector.multi_reduction <maximumf>, %126, %cst_60 [1] : vector<4x4xf32> to vector<4xf32>
    %128 = vector.shape_cast %127 : vector<4xf32> to vector<4x1xf32>
    %129 = vector.broadcast %128 : vector<4x1xf32> to vector<4x4xf32>
    %130 = arith.subf %126, %129 : vector<4x4xf32>
    %131 = math.exp %130 : vector<4x4xf32>
    %cst_61 = arith.constant dense<0.000000e+00> : vector<4xf32>
    %132 = vector.multi_reduction <add>, %131, %cst_61 [1] : vector<4x4xf32> to vector<4xf32>
    %133 = vector.shape_cast %132 : vector<4xf32> to vector<4x1xf32>
    %134 = vector.broadcast %133 : vector<4x1xf32> to vector<4x4xf32>
    %135 = arith.divf %131, %134 : vector<4x4xf32>
    %cst_62 = arith.constant dense<0.000000e+00> : vector<4x8xf32>
    %136 = tpu.matmul %135, %122, %cst_62 {dimension_numbers = #tpu.dot_dimension_numbers<[1], [0], [0], [1], [0, 0, 1, 1], [], []>} : vector<4x4xf32>, vector<4x8xf32>, vector<4x8xf32> -> vector<4x8xf32>
    %c4 = arith.constant 4 : index
    %c0_63 = arith.constant 0 : index
    %137 = vector.load %arg36[%c4, %c0_63] : memref<8x32xf32, #tpu.memory_space<vmem>>, vector<4x8xf32>
    tpu.vector_store %arg36[%c4, %c0_63], %136 {strides = array<i32>} : memref<8x32xf32, #tpu.memory_space<vmem>>, vector<4x8xf32>,
    %138 = vector.extract_strided_slice %45 {offsets = [4, 8], sizes = [4, 8], strides = [1, 1]} : vector<8x32xf32> to vector<4x8xf32>
    %139 = vector.extract_strided_slice %46 {offsets = [4, 8], sizes = [4, 8], strides = [1, 1]} : vector<8x32xf32> to vector<4x8xf32>
    %140 = vector.extract_strided_slice %47 {offsets = [4, 8], sizes = [4, 8], strides = [1, 1]} : vector<8x32xf32> to vector<4x8xf32>
    %141 = tpu.transpose %139, [1, 0] : vector<4x8xf32> -> vector<8x4xf32>
    %cst_64 = arith.constant dense<0.000000e+00> : vector<4x4xf32>
    %142 = tpu.matmul %138, %141, %cst_64 {dimension_numbers = #tpu.dot_dimension_numbers<[1], [0], [0], [1], [0, 0, 1, 1], [], []>} : vector<4x8xf32>, vector<8x4xf32>, vector<4x4xf32> -> vector<4x4xf32>
    %cst_65 = arith.constant 0.353553385 : f32
    %143 = vector.broadcast %cst_65 : f32 to vector<4x4xf32>
    %144 = arith.mulf %142, %143 : vector<4x4xf32>
    %cst_66 = arith.constant dense<0xFF800000> : vector<4xf32>
    %145 = vector.multi_reduction <maximumf>, %144, %cst_66 [1] : vector<4x4xf32> to vector<4xf32>
    %146 = vector.shape_cast %145 : vector<4xf32> to vector<4x1xf32>
    %147 = vector.broadcast %146 : vector<4x1xf32> to vector<4x4xf32>
    %148 = arith.subf %144, %147 : vector<4x4xf32>
    %149 = math.exp %148 : vector<4x4xf32>
    %cst_67 = arith.constant dense<0.000000e+00> : vector<4xf32>
    %150 = vector.multi_reduction <add>, %149, %cst_67 [1] : vector<4x4xf32> to vector<4xf32>
    %151 = vector.shape_cast %150 : vector<4xf32> to vector<4x1xf32>
    %152 = vector.broadcast %151 : vector<4x1xf32> to vector<4x4xf32>
    %153 = arith.divf %149, %152 : vector<4x4xf32>
    %cst_68 = arith.constant dense<0.000000e+00> : vector<4x8xf32>
    %154 = tpu.matmul %153, %140, %cst_68 {dimension_numbers = #tpu.dot_dimension_numbers<[1], [0], [0], [1], [0, 0, 1, 1], [], []>} : vector<4x4xf32>, vector<4x8xf32>, vector<4x8xf32> -> vector<4x8xf32>
    %c4_69 = arith.constant 4 : index
    %c8_70 = arith.constant 8 : index
    %155 = vector.load %arg36[%c4_69, %c8_70] : memref<8x32xf32, #tpu.memory_space<vmem>>, vector<4x8xf32>
    tpu.vector_store %arg36[%c4_69, %c8_70], %154 {strides = array<i32>} : memref<8x32xf32, #tpu.memory_space<vmem>>, vector<4x8xf32>,
    %156 = vector.extract_strided_slice %45 {offsets = [4, 16], sizes = [4, 8], strides = [1, 1]} : vector<8x32xf32> to vector<4x8xf32>
    %157 = vector.extract_strided_slice %46 {offsets = [4, 16], sizes = [4, 8], strides = [1, 1]} : vector<8x32xf32> to vector<4x8xf32>
    %158 = vector.extract_strided_slice %47 {offsets = [4, 16], sizes = [4, 8], strides = [1, 1]} : vector<8x32xf32> to vector<4x8xf32>
    %159 = tpu.transpose %157, [1, 0] : vector<4x8xf32> -> vector<8x4xf32>
    %cst_71 = arith.constant dense<0.000000e+00> : vector<4x4xf32>
    %160 = tpu.matmul %156, %159, %cst_71 {dimension_numbers = #tpu.dot_dimension_numbers<[1], [0], [0], [1], [0, 0, 1, 1], [], []>} : vector<4x8xf32>, vector<8x4xf32>, vector<4x4xf32> -> vector<4x4xf32>
    %cst_72 = arith.constant 0.353553385 : f32
    %161 = vector.broadcast %cst_72 : f32 to vector<4x4xf32>
    %162 = arith.mulf %160, %161 : vector<4x4xf32>
    %cst_73 = arith.constant dense<0xFF800000> : vector<4xf32>
    %163 = vector.multi_reduction <maximumf>, %162, %cst_73 [1] : vector<4x4xf32> to vector<4xf32>
    %164 = vector.shape_cast %163 : vector<4xf32> to vector<4x1xf32>
    %165 = vector.broadcast %164 : vector<4x1xf32> to vector<4x4xf32>
    %166 = arith.subf %162, %165 : vector<4x4xf32>
    %167 = math.exp %166 : vector<4x4xf32>
    %cst_74 = arith.constant dense<0.000000e+00> : vector<4xf32>
    %168 = vector.multi_reduction <add>, %167, %cst_74 [1] : vector<4x4xf32> to vector<4xf32>
    %169 = vector.shape_cast %168 : vector<4xf32> to vector<4x1xf32>
    %170 = vector.broadcast %169 : vector<4x1xf32> to vector<4x4xf32>
    %171 = arith.divf %167, %170 : vector<4x4xf32>
    %cst_75 = arith.constant dense<0.000000e+00> : vector<4x8xf32>
    %172 = tpu.matmul %171, %158, %cst_75 {dimension_numbers = #tpu.dot_dimension_numbers<[1], [0], [0], [1], [0, 0, 1, 1], [], []>} : vector<4x4xf32>, vector<4x8xf32>, vector<4x8xf32> -> vector<4x8xf32>
    %c4_76 = arith.constant 4 : index
    %c16_77 = arith.constant 16 : index
    %173 = vector.load %arg36[%c4_76, %c16_77] : memref<8x32xf32, #tpu.memory_space<vmem>>, vector<4x8xf32>
    tpu.vector_store %arg36[%c4_76, %c16_77], %172 {strides = array<i32>} : memref<8x32xf32, #tpu.memory_space<vmem>>, vector<4x8xf32>,
    %174 = vector.extract_strided_slice %45 {offsets = [4, 24], sizes = [4, 8], strides = [1, 1]} : vector<8x32xf32> to vector<4x8xf32>
    %175 = vector.extract_strided_slice %46 {offsets = [4, 24], sizes = [4, 8], strides = [1, 1]} : vector<8x32xf32> to vector<4x8xf32>
    %176 = vector.extract_strided_slice %47 {offsets = [4, 24], sizes = [4, 8], strides = [1, 1]} : vector<8x32xf32> to vector<4x8xf32>
    %177 = tpu.transpose %175, [1, 0] : vector<4x8xf32> -> vector<8x4xf32>
    %cst_78 = arith.constant dense<0.000000e+00> : vector<4x4xf32>
    %178 = tpu.matmul %174, %177, %cst_78 {dimension_numbers = #tpu.dot_dimension_numbers<[1], [0], [0], [1], [0, 0, 1, 1], [], []>} : vector<4x8xf32>, vector<8x4xf32>, vector<4x4xf32> -> vector<4x4xf32>
    %cst_79 = arith.constant 0.353553385 : f32
    %179 = vector.broadcast %cst_79 : f32 to vector<4x4xf32>
    %180 = arith.mulf %178, %179 : vector<4x4xf32>
    %cst_80 = arith.constant dense<0xFF800000> : vector<4xf32>
    %181 = vector.multi_reduction <maximumf>, %180, %cst_80 [1] : vector<4x4xf32> to vector<4xf32>
    %182 = vector.shape_cast %181 : vector<4xf32> to vector<4x1xf32>
    %183 = vector.broadcast %182 : vector<4x1xf32> to vector<4x4xf32>
    %184 = arith.subf %180, %183 : vector<4x4xf32>
    %185 = math.exp %184 : vector<4x4xf32>
    %cst_81 = arith.constant dense<0.000000e+00> : vector<4xf32>
    %186 = vector.multi_reduction <add>, %185, %cst_81 [1] : vector<4x4xf32> to vector<4xf32>
    %187 = vector.shape_cast %186 : vector<4xf32> to vector<4x1xf32>
    %188 = vector.broadcast %187 : vector<4x1xf32> to vector<4x4xf32>
    %189 = arith.divf %185, %188 : vector<4x4xf32>
    %cst_82 = arith.constant dense<0.000000e+00> : vector<4x8xf32>
    %190 = tpu.matmul %189, %176, %cst_82 {dimension_numbers = #tpu.dot_dimension_numbers<[1], [0], [0], [1], [0, 0, 1, 1], [], []>} : vector<4x4xf32>, vector<4x8xf32>, vector<4x8xf32> -> vector<4x8xf32>
    %c4_83 = arith.constant 4 : index
    %c24_84 = arith.constant 24 : index
    %191 = vector.load %arg36[%c4_83, %c24_84] : memref<8x32xf32, #tpu.memory_space<vmem>>, vector<4x8xf32>
    tpu.vector_store %arg36[%c4_83, %c24_84], %190 {strides = array<i32>} : memref<8x32xf32, #tpu.memory_space<vmem>>, vector<4x8xf32>,
    %c0_85 = arith.constant 0 : index
    %c0_86 = arith.constant 0 : index
    %192 = vector.load %arg36[%c0_85, %c0_86] : memref<8x32xf32, #tpu.memory_space<vmem>>, vector<8x32xf32>
    %c0_87 = arith.constant 0 : index
    %c0_88 = arith.constant 0 : index
    %193 = vector.load %arg9[%c0_87, %c0_88] : memref<32x32xf32, #tpu.memory_space<vmem>>, vector<32x32xf32>
    %cst_89 = arith.constant dense<0.000000e+00> : vector<8x32xf32>
    %194 = tpu.matmul %192, %193, %cst_89 {dimension_numbers = #tpu.dot_dimension_numbers<[1], [0], [0], [1], [0, 0, 1, 1], [], []>} : vector<8x32xf32>, vector<32x32xf32>, vector<8x32xf32> -> vector<8x32xf32>
    %c0_90 = arith.constant 0 : index
    %c0_91 = arith.constant 0 : index
    %195 = vector.load %arg10[%c0_90, %c0_91] : memref<1x32xf32, #tpu.memory_space<vmem>>, vector<1x32xf32>
    %196 = vector.broadcast %195 : vector<1x32xf32> to vector<8x32xf32>
    %197 = arith.addf %194, %196 : vector<8x32xf32>
    %198 = arith.addf %13, %197 : vector<8x32xf32>
    %c0_92 = arith.constant 0 : index
    %c0_93 = arith.constant 0 : index
    %199 = vector.load %arg11[%c0_92, %c0_93] : memref<1x32xf32, #tpu.memory_space<vmem>>, vector<1x32xf32>
    %c0_94 = arith.constant 0 : index
    %c0_95 = arith.constant 0 : index
    %200 = vector.load %arg12[%c0_94, %c0_95] : memref<1x32xf32, #tpu.memory_space<vmem>>, vector<1x32xf32>
    %cst_96 = arith.constant dense<0.000000e+00> : vector<8xf32>
    %201 = vector.multi_reduction <add>, %198, %cst_96 [1] : vector<8x32xf32> to vector<8xf32>
    %202 = vector.shape_cast %201 : vector<8xf32> to vector<8x1xf32>
    %cst_97 = arith.constant 3.200000e+01 : f32
    %203 = vector.broadcast %cst_97 : f32 to vector<8x1xf32>
    %204 = arith.divf %202, %203 : vector<8x1xf32>
    %205 = vector.broadcast %204 : vector<8x1xf32> to vector<8x32xf32>
    %206 = arith.subf %198, %205 : vector<8x32xf32>
    %207 = vector.broadcast %204 : vector<8x1xf32> to vector<8x32xf32>
    %208 = arith.subf %198, %207 : vector<8x32xf32>
    %209 = arith.mulf %206, %208 : vector<8x32xf32>
    %cst_98 = arith.constant dense<0.000000e+00> : vector<8xf32>
    %210 = vector.multi_reduction <add>, %209, %cst_98 [1] : vector<8x32xf32> to vector<8xf32>
    %211 = vector.shape_cast %210 : vector<8xf32> to vector<8x1xf32>
    %cst_99 = arith.constant 3.200000e+01 : f32
    %212 = vector.broadcast %cst_99 : f32 to vector<8x1xf32>
    %213 = arith.divf %211, %212 : vector<8x1xf32>
    %214 = vector.broadcast %204 : vector<8x1xf32> to vector<8x32xf32>
    %215 = arith.subf %198, %214 : vector<8x32xf32>
    %cst_100 = arith.constant 9.99999997E-7 : f32
    %216 = vector.broadcast %cst_100 : f32 to vector<8x1xf32>
    %217 = arith.addf %213, %216 : vector<8x1xf32>
    %218 = math.rsqrt %217 : vector<8x1xf32>
    %219 = vector.broadcast %218 : vector<8x1xf32> to vector<8x32xf32>
    %220 = arith.mulf %215, %219 : vector<8x32xf32>
    %221 = vector.broadcast %199 : vector<1x32xf32> to vector<8x32xf32>
    %222 = arith.mulf %220, %221 : vector<8x32xf32>
    %223 = vector.broadcast %200 : vector<1x32xf32> to vector<8x32xf32>
    %224 = arith.addf %222, %223 : vector<8x32xf32>
    %c0_101 = arith.constant 0 : index
    %c0_102 = arith.constant 0 : index
    %225 = vector.load %arg13[%c0_101, %c0_102] : memref<32x128xf32, #tpu.memory_space<vmem>>, vector<32x128xf32>
    %cst_103 = arith.constant dense<0.000000e+00> : vector<8x128xf32>
    %226 = tpu.matmul %224, %225, %cst_103 {dimension_numbers = #tpu.dot_dimension_numbers<[1], [0], [0], [1], [0, 0, 1, 1], [], []>} : vector<8x32xf32>, vector<32x128xf32>, vector<8x128xf32> -> vector<8x128xf32>
    %c0_104 = arith.constant 0 : index
    %c0_105 = arith.constant 0 : index
    %227 = vector.load %arg14[%c0_104, %c0_105] : memref<1x128xf32, #tpu.memory_space<vmem>>, vector<1x128xf32>
    %228 = vector.broadcast %227 : vector<1x128xf32> to vector<8x128xf32>
    %229 = arith.addf %226, %228 : vector<8x128xf32>
    %cst_106 = arith.constant 5.000000e-01 : f32
    %230 = vector.broadcast %cst_106 : f32 to vector<8x128xf32>
    %231 = arith.mulf %230, %229 : vector<8x128xf32>
    %cst_107 = arith.constant 4.471500e-02 : f32
    %232 = vector.broadcast %cst_107 : f32 to vector<8x128xf32>
    %233 = arith.mulf %232, %229 : vector<8x128xf32>
    %234 = arith.mulf %233, %229 : vector<8x128xf32>
    %235 = arith.mulf %234, %229 : vector<8x128xf32>
    %236 = arith.addf %229, %235 : vector<8x128xf32>
    %cst_108 = arith.constant 0.797884583 : f32
    %237 = vector.broadcast %cst_108 : f32 to vector<8x128xf32>
    %238 = arith.mulf %237, %236 : vector<8x128xf32>
    %239 = math.tanh %238 : vector<8x128xf32>
    %cst_109 = arith.constant 1.000000e+00 : f32
    %240 = vector.broadcast %cst_109 : f32 to vector<8x128xf32>
    %241 = arith.addf %240, %239 : vector<8x128xf32>
    %242 = arith.mulf %231, %241 : vector<8x128xf32>
    %c0_110 = arith.constant 0 : index
    %c0_111 = arith.constant 0 : index
    %243 = vector.load %arg15[%c0_110, %c0_111] : memref<128x32xf32, #tpu.memory_space<vmem>>, vector<128x32xf32>
    %cst_112 = arith.constant dense<0.000000e+00> : vector<8x32xf32>
    %244 = tpu.matmul %242, %243, %cst_112 {dimension_numbers = #tpu.dot_dimension_numbers<[1], [0], [0], [1], [0, 0, 1, 1], [], []>} : vector<8x128xf32>, vector<128x32xf32>, vector<8x32xf32> -> vector<8x32xf32>
    %c0_113 = arith.constant 0 : index
    %c0_114 = arith.constant 0 : index
    %245 = vector.load %arg16[%c0_113, %c0_114] : memref<1x32xf32, #tpu.memory_space<vmem>>, vector<1x32xf32>
    %246 = vector.broadcast %245 : vector<1x32xf32> to vector<8x32xf32>
    %247 = arith.addf %244, %246 : vector<8x32xf32>
    %248 = arith.addf %198, %247 : vector<8x32xf32>
    %c0_115 = arith.constant 0 : index
    %c0_116 = arith.constant 0 : index
    %249 = vector.load %arg17[%c0_115, %c0_116] : memref<1x32xf32, #tpu.memory_space<vmem>>, vector<1x32xf32>
    %c0_117 = arith.constant 0 : index
    %c0_118 = arith.constant 0 : index
    %250 = vector.load %arg18[%c0_117, %c0_118] : memref<1x32xf32, #tpu.memory_space<vmem>>, vector<1x32xf32>
    %cst_119 = arith.constant dense<0.000000e+00> : vector<8xf32>
    %251 = vector.multi_reduction <add>, %248, %cst_119 [1] : vector<8x32xf32> to vector<8xf32>
    %252 = vector.shape_cast %251 : vector<8xf32> to vector<8x1xf32>
    %cst_120 = arith.constant 3.200000e+01 : f32
    %253 = vector.broadcast %cst_120 : f32 to vector<8x1xf32>
    %254 = arith.divf %252, %253 : vector<8x1xf32>
    %255 = vector.broadcast %254 : vector<8x1xf32> to vector<8x32xf32>
    %256 = arith.subf %248, %255 : vector<8x32xf32>
    %257 = vector.broadcast %254 : vector<8x1xf32> to vector<8x32xf32>
    %258 = arith.subf %248, %257 : vector<8x32xf32>
    %259 = arith.mulf %256, %258 : vector<8x32xf32>
    %cst_121 = arith.constant dense<0.000000e+00> : vector<8xf32>
    %260 = vector.multi_reduction <add>, %259, %cst_121 [1] : vector<8x32xf32> to vector<8xf32>
    %261 = vector.shape_cast %260 : vector<8xf32> to vector<8x1xf32>
    %cst_122 = arith.constant 3.200000e+01 : f32
    %262 = vector.broadcast %cst_122 : f32 to vector<8x1xf32>
    %263 = arith.divf %261, %262 : vector<8x1xf32>
    %264 = vector.broadcast %254 : vector<8x1xf32> to vector<8x32xf32>
    %265 = arith.subf %248, %264 : vector<8x32xf32>
    %cst_123 = arith.constant 9.99999997E-7 : f32
    %266 = vector.broadcast %cst_123 : f32 to vector<8x1xf32>
    %267 = arith.addf %263, %266 : vector<8x1xf32>
    %268 = math.rsqrt %267 : vector<8x1xf32>
    %269 = vector.broadcast %268 : vector<8x1xf32> to vector<8x32xf32>
    %270 = arith.mulf %265, %269 : vector<8x32xf32>
    %271 = vector.broadcast %249 : vector<1x32xf32> to vector<8x32xf32>
    %272 = arith.mulf %270, %271 : vector<8x32xf32>
    %273 = vector.broadcast %250 : vector<1x32xf32> to vector<8x32xf32>
    %274 = arith.addf %272, %273 : vector<8x32xf32>
    %c0_124 = arith.constant 0 : index
    %c0_125 = arith.constant 0 : index
    %275 = vector.load %arg19[%c0_124, %c0_125] : memref<32x96xf32, #tpu.memory_space<vmem>>, vector<32x96xf32>
    %cst_126 = arith.constant dense<0.000000e+00> : vector<8x96xf32>
    %276 = tpu.matmul %274, %275, %cst_126 {dimension_numbers = #tpu.dot_dimension_numbers<[1], [0], [0], [1], [0, 0, 1, 1], [], []>} : vector<8x32xf32>, vector<32x96xf32>, vector<8x96xf32> -> vector<8x96xf32>
    %c0_127 = arith.constant 0 : index
    %c0_128 = arith.constant 0 : index
    %277 = vector.load %arg20[%c0_127, %c0_128] : memref<1x96xf32, #tpu.memory_space<vmem>>, vector<1x96xf32>
    %278 = vector.broadcast %277 : vector<1x96xf32> to vector<8x96xf32>
    %279 = arith.addf %276, %278 : vector<8x96xf32>
    %280 = vector.extract_strided_slice %279 {offsets = [0, 0], sizes = [8, 32], strides = [1, 1]} : vector<8x96xf32> to vector<8x32xf32>
    %281 = vector.extract_strided_slice %279 {offsets = [0, 32], sizes = [8, 32], strides = [1, 1]} : vector<8x96xf32> to vector<8x32xf32>
    %282 = vector.extract_strided_slice %279 {offsets = [0, 64], sizes = [8, 32], strides = [1, 1]} : vector<8x96xf32> to vector<8x32xf32>
    %283 = vector.extract_strided_slice %280 {offsets = [0, 0], sizes = [4, 8], strides = [1, 1]} : vector<8x32xf32> to vector<4x8xf32>
    %284 = vector.extract_strided_slice %281 {offsets = [0, 0], sizes = [4, 8], strides = [1, 1]} : vector<8x32xf32> to vector<4x8xf32>
    %285 = vector.extract_strided_slice %282 {offsets = [0, 0], sizes = [4, 8], strides = [1, 1]} : vector<8x32xf32> to vector<4x8xf32>
    %286 = tpu.transpose %284, [1, 0] : vector<4x8xf32> -> vector<8x4xf32>
    %cst_129 = arith.constant dense<0.000000e+00> : vector<4x4xf32>
    %287 = tpu.matmul %283, %286, %cst_129 {dimension_numbers = #tpu.dot_dimension_numbers<[1], [0], [0], [1], [0, 0, 1, 1], [], []>} : vector<4x8xf32>, vector<8x4xf32>, vector<4x4xf32> -> vector<4x4xf32>
    %cst_130 = arith.constant 0.353553385 : f32
    %288 = vector.broadcast %cst_130 : f32 to vector<4x4xf32>
    %289 = arith.mulf %287, %288 : vector<4x4xf32>
    %cst_131 = arith.constant dense<0xFF800000> : vector<4xf32>
    %290 = vector.multi_reduction <maximumf>, %289, %cst_131 [1] : vector<4x4xf32> to vector<4xf32>
    %291 = vector.shape_cast %290 : vector<4xf32> to vector<4x1xf32>
    %292 = vector.broadcast %291 : vector<4x1xf32> to vector<4x4xf32>
    %293 = arith.subf %289, %292 : vector<4x4xf32>
    %294 = math.exp %293 : vector<4x4xf32>
    %cst_132 = arith.constant dense<0.000000e+00> : vector<4xf32>
    %295 = vector.multi_reduction <add>, %294, %cst_132 [1] : vector<4x4xf32> to vector<4xf32>
    %296 = vector.shape_cast %295 : vector<4xf32> to vector<4x1xf32>
    %297 = vector.broadcast %296 : vector<4x1xf32> to vector<4x4xf32>
    %298 = arith.divf %294, %297 : vector<4x4xf32>
    %cst_133 = arith.constant dense<0.000000e+00> : vector<4x8xf32>
    %299 = tpu.matmul %298, %285, %cst_133 {dimension_numbers = #tpu.dot_dimension_numbers<[1], [0], [0], [1], [0, 0, 1, 1], [], []>} : vector<4x4xf32>, vector<4x8xf32>, vector<4x8xf32> -> vector<4x8xf32>
    %c0_134 = arith.constant 0 : index
    %c0_135 = arith.constant 0 : index
    %300 = vector.load %arg36[%c0_134, %c0_135] : memref<8x32xf32, #tpu.memory_space<vmem>>, vector<4x8xf32>
    tpu.vector_store %arg36[%c0_134, %c0_135], %299 {strides = array<i32>} : memref<8x32xf32, #tpu.memory_space<vmem>>, vector<4x8xf32>,
    %301 = vector.extract_strided_slice %280 {offsets = [0, 8], sizes = [4, 8], strides = [1, 1]} : vector<8x32xf32> to vector<4x8xf32>
    %302 = vector.extract_strided_slice %281 {offsets = [0, 8], sizes = [4, 8], strides = [1, 1]} : vector<8x32xf32> to vector<4x8xf32>
    %303 = vector.extract_strided_slice %282 {offsets = [0, 8], sizes = [4, 8], strides = [1, 1]} : vector<8x32xf32> to vector<4x8xf32>
    %304 = tpu.transpose %302, [1, 0] : vector<4x8xf32> -> vector<8x4xf32>
    %cst_136 = arith.constant dense<0.000000e+00> : vector<4x4xf32>
    %305 = tpu.matmul %301, %304, %cst_136 {dimension_numbers = #tpu.dot_dimension_numbers<[1], [0], [0], [1], [0, 0, 1, 1], [], []>} : vector<4x8xf32>, vector<8x4xf32>, vector<4x4xf32> -> vector<4x4xf32>
    %cst_137 = arith.constant 0.353553385 : f32
    %306 = vector.broadcast %cst_137 : f32 to vector<4x4xf32>
    %307 = arith.mulf %305, %306 : vector<4x4xf32>
    %cst_138 = arith.constant dense<0xFF800000> : vector<4xf32>
    %308 = vector.multi_reduction <maximumf>, %307, %cst_138 [1] : vector<4x4xf32> to vector<4xf32>
    %309 = vector.shape_cast %308 : vector<4xf32> to vector<4x1xf32>
    %310 = vector.broadcast %309 : vector<4x1xf32> to vector<4x4xf32>
    %311 = arith.subf %307, %310 : vector<4x4xf32>
    %312 = math.exp %311 : vector<4x4xf32>
    %cst_139 = arith.constant dense<0.000000e+00> : vector<4xf32>
    %313 = vector.multi_reduction <add>, %312, %cst_139 [1] : vector<4x4xf32> to vector<4xf32>
    %314 = vector.shape_cast %313 : vector<4xf32> to vector<4x1xf32>
    %315 = vector.broadcast %314 : vector<4x1xf32> to vector<4x4xf32>
    %316 = arith.divf %312, %315 : vector<4x4xf32>
    %cst_140 = arith.constant dense<0.000000e+00> : vector<4x8xf32>
    %317 = tpu.matmul %316, %303, %cst_140 {dimension_numbers = #tpu.dot_dimension_numbers<[1], [0], [0], [1], [0, 0, 1, 1], [], []>} : vector<4x4xf32>, vector<4x8xf32>, vector<4x8xf32> -> vector<4x8xf32>
    %c0_141 = arith.constant 0 : index
    %c8_142 = arith.constant 8 : index
    %318 = vector.load %arg36[%c0_141, %c8_142] : memref<8x32xf32, #tpu.memory_space<vmem>>, vector<4x8xf32>
    tpu.vector_store %arg36[%c0_141, %c8_142], %317 {strides = array<i32>} : memref<8x32xf32, #tpu.memory_space<vmem>>, vector<4x8xf32>,
    %319 = vector.extract_strided_slice %280 {offsets = [0, 16], sizes = [4, 8], strides = [1, 1]} : vector<8x32xf32> to vector<4x8xf32>
    %320 = vector.extract_strided_slice %281 {offsets = [0, 16], sizes = [4, 8], strides = [1, 1]} : vector<8x32xf32> to vector<4x8xf32>
    %321 = vector.extract_strided_slice %282 {offsets = [0, 16], sizes = [4, 8], strides = [1, 1]} : vector<8x32xf32> to vector<4x8xf32>
    %322 = tpu.transpose %320, [1, 0] : vector<4x8xf32> -> vector<8x4xf32>
    %cst_143 = arith.constant dense<0.000000e+00> : vector<4x4xf32>
    %323 = tpu.matmul %319, %322, %cst_143 {dimension_numbers = #tpu.dot_dimension_numbers<[1], [0], [0], [1], [0, 0, 1, 1], [], []>} : vector<4x8xf32>, vector<8x4xf32>, vector<4x4xf32> -> vector<4x4xf32>
    %cst_144 = arith.constant 0.353553385 : f32
    %324 = vector.broadcast %cst_144 : f32 to vector<4x4xf32>
    %325 = arith.mulf %323, %324 : vector<4x4xf32>
    %cst_145 = arith.constant dense<0xFF800000> : vector<4xf32>
    %326 = vector.multi_reduction <maximumf>, %325, %cst_145 [1] : vector<4x4xf32> to vector<4xf32>
    %327 = vector.shape_cast %326 : vector<4xf32> to vector<4x1xf32>
    %328 = vector.broadcast %327 : vector<4x1xf32> to vector<4x4xf32>
    %329 = arith.subf %325, %328 : vector<4x4xf32>
    %330 = math.exp %329 : vector<4x4xf32>
    %cst_146 = arith.constant dense<0.000000e+00> : vector<4xf32>
    %331 = vector.multi_reduction <add>, %330, %cst_146 [1] : vector<4x4xf32> to vector<4xf32>
    %332 = vector.shape_cast %331 : vector<4xf32> to vector<4x1xf32>
    %333 = vector.broadcast %332 : vector<4x1xf32> to vector<4x4xf32>
    %334 = arith.divf %330, %333 : vector<4x4xf32>
    %cst_147 = arith.constant dense<0.000000e+00> : vector<4x8xf32>
    %335 = tpu.matmul %334, %321, %cst_147 {dimension_numbers = #tpu.dot_dimension_numbers<[1], [0], [0], [1], [0, 0, 1, 1], [], []>} : vector<4x4xf32>, vector<4x8xf32>, vector<4x8xf32> -> vector<4x8xf32>
    %c0_148 = arith.constant 0 : index
    %c16_149 = arith.constant 16 : index
    %336 = vector.load %arg36[%c0_148, %c16_149] : memref<8x32xf32, #tpu.memory_space<vmem>>, vector<4x8xf32>
    tpu.vector_store %arg36[%c0_148, %c16_149], %335 {strides = array<i32>} : memref<8x32xf32, #tpu.memory_space<vmem>>, vector<4x8xf32>,
    %337 = vector.extract_strided_slice %280 {offsets = [0, 24], sizes = [4, 8], strides = [1, 1]} : vector<8x32xf32> to vector<4x8xf32>
    %338 = vector.extract_strided_slice %281 {offsets = [0, 24], sizes = [4, 8], strides = [1, 1]} : vector<8x32xf32> to vector<4x8xf32>
    %339 = vector.extract_strided_slice %282 {offsets = [0, 24], sizes = [4, 8], strides = [1, 1]} : vector<8x32xf32> to vector<4x8xf32>
    %340 = tpu.transpose %338, [1, 0] : vector<4x8xf32> -> vector<8x4xf32>
    %cst_150 = arith.constant dense<0.000000e+00> : vector<4x4xf32>
    %341 = tpu.matmul %337, %340, %cst_150 {dimension_numbers = #tpu.dot_dimension_numbers<[1], [0], [0], [1], [0, 0, 1, 1], [], []>} : vector<4x8xf32>, vector<8x4xf32>, vector<4x4xf32> -> vector<4x4xf32>
    %cst_151 = arith.constant 0.353553385 : f32
    %342 = vector.broadcast %cst_151 : f32 to vector<4x4xf32>
    %343 = arith.mulf %341, %342 : vector<4x4xf32>
    %cst_152 = arith.constant dense<0xFF800000> : vector<4xf32>
    %344 = vector.multi_reduction <maximumf>, %343, %cst_152 [1] : vector<4x4xf32> to vector<4xf32>
    %345 = vector.shape_cast %344 : vector<4xf32> to vector<4x1xf32>
    %346 = vector.broadcast %345 : vector<4x1xf32> to vector<4x4xf32>
    %347 = arith.subf %343, %346 : vector<4x4xf32>
    %348 = math.exp %347 : vector<4x4xf32>
    %cst_153 = arith.constant dense<0.000000e+00> : vector<4xf32>
    %349 = vector.multi_reduction <add>, %348, %cst_153 [1] : vector<4x4xf32> to vector<4xf32>
    %350 = vector.shape_cast %349 : vector<4xf32> to vector<4x1xf32>
    %351 = vector.broadcast %350 : vector<4x1xf32> to vector<4x4xf32>
    %352 = arith.divf %348, %351 : vector<4x4xf32>
    %cst_154 = arith.constant dense<0.000000e+00> : vector<4x8xf32>
    %353 = tpu.matmul %352, %339, %cst_154 {dimension_numbers = #tpu.dot_dimension_numbers<[1], [0], [0], [1], [0, 0, 1, 1], [], []>} : vector<4x4xf32>, vector<4x8xf32>, vector<4x8xf32> -> vector<4x8xf32>
    %c0_155 = arith.constant 0 : index
    %c24_156 = arith.constant 24 : index
    %354 = vector.load %arg36[%c0_155, %c24_156] : memref<8x32xf32, #tpu.memory_space<vmem>>, vector<4x8xf32>
    tpu.vector_store %arg36[%c0_155, %c24_156], %353 {strides = array<i32>} : memref<8x32xf32, #tpu.memory_space<vmem>>, vector<4x8xf32>,
    %355 = vector.extract_strided_slice %280 {offsets = [4, 0], sizes = [4, 8], strides = [1, 1]} : vector<8x32xf32> to vector<4x8xf32>
    %356 = vector.extract_strided_slice %281 {offsets = [4, 0], sizes = [4, 8], strides = [1, 1]} : vector<8x32xf32> to vector<4x8xf32>
    %357 = vector.extract_strided_slice %282 {offsets = [4, 0], sizes = [4, 8], strides = [1, 1]} : vector<8x32xf32> to vector<4x8xf32>
    %358 = tpu.transpose %356, [1, 0] : vector<4x8xf32> -> vector<8x4xf32>
    %cst_157 = arith.constant dense<0.000000e+00> : vector<4x4xf32>
    %359 = tpu.matmul %355, %358, %cst_157 {dimension_numbers = #tpu.dot_dimension_numbers<[1], [0], [0], [1], [0, 0, 1, 1], [], []>} : vector<4x8xf32>, vector<8x4xf32>, vector<4x4xf32> -> vector<4x4xf32>
    %cst_158 = arith.constant 0.353553385 : f32
    %360 = vector.broadcast %cst_158 : f32 to vector<4x4xf32>
    %361 = arith.mulf %359, %360 : vector<4x4xf32>
    %cst_159 = arith.constant dense<0xFF800000> : vector<4xf32>
    %362 = vector.multi_reduction <maximumf>, %361, %cst_159 [1] : vector<4x4xf32> to vector<4xf32>
    %363 = vector.shape_cast %362 : vector<4xf32> to vector<4x1xf32>
    %364 = vector.broadcast %363 : vector<4x1xf32> to vector<4x4xf32>
    %365 = arith.subf %361, %364 : vector<4x4xf32>
    %366 = math.exp %365 : vector<4x4xf32>
    %cst_160 = arith.constant dense<0.000000e+00> : vector<4xf32>
    %367 = vector.multi_reduction <add>, %366, %cst_160 [1] : vector<4x4xf32> to vector<4xf32>
    %368 = vector.shape_cast %367 : vector<4xf32> to vector<4x1xf32>
    %369 = vector.broadcast %368 : vector<4x1xf32> to vector<4x4xf32>
    %370 = arith.divf %366, %369 : vector<4x4xf32>
    %cst_161 = arith.constant dense<0.000000e+00> : vector<4x8xf32>
    %371 = tpu.matmul %370, %357, %cst_161 {dimension_numbers = #tpu.dot_dimension_numbers<[1], [0], [0], [1], [0, 0, 1, 1], [], []>} : vector<4x4xf32>, vector<4x8xf32>, vector<4x8xf32> -> vector<4x8xf32>
    %c4_162 = arith.constant 4 : index
    %c0_163 = arith.constant 0 : index
    %372 = vector.load %arg36[%c4_162, %c0_163] : memref<8x32xf32, #tpu.memory_space<vmem>>, vector<4x8xf32>
    tpu.vector_store %arg36[%c4_162, %c0_163], %371 {strides = array<i32>} : memref<8x32xf32, #tpu.memory_space<vmem>>, vector<4x8xf32>,
    %373 = vector.extract_strided_slice %280 {offsets = [4, 8], sizes = [4, 8], strides = [1, 1]} : vector<8x32xf32> to vector<4x8xf32>
    %374 = vector.extract_strided_slice %281 {offsets = [4, 8], sizes = [4, 8], strides = [1, 1]} : vector<8x32xf32> to vector<4x8xf32>
    %375 = vector.extract_strided_slice %282 {offsets = [4, 8], sizes = [4, 8], strides = [1, 1]} : vector<8x32xf32> to vector<4x8xf32>
    %376 = tpu.transpose %374, [1, 0] : vector<4x8xf32> -> vector<8x4xf32>
    %cst_164 = arith.constant dense<0.000000e+00> : vector<4x4xf32>
    %377 = tpu.matmul %373, %376, %cst_164 {dimension_numbers = #tpu.dot_dimension_numbers<[1], [0], [0], [1], [0, 0, 1, 1], [], []>} : vector<4x8xf32>, vector<8x4xf32>, vector<4x4xf32> -> vector<4x4xf32>
    %cst_165 = arith.constant 0.353553385 : f32
    %378 = vector.broadcast %cst_165 : f32 to vector<4x4xf32>
    %379 = arith.mulf %377, %378 : vector<4x4xf32>
    %cst_166 = arith.constant dense<0xFF800000> : vector<4xf32>
    %380 = vector.multi_reduction <maximumf>, %379, %cst_166 [1] : vector<4x4xf32> to vector<4xf32>
    %381 = vector.shape_cast %380 : vector<4xf32> to vector<4x1xf32>
    %382 = vector.broadcast %381 : vector<4x1xf32> to vector<4x4xf32>
    %383 = arith.subf %379, %382 : vector<4x4xf32>
    %384 = math.exp %383 : vector<4x4xf32>
    %cst_167 = arith.constant dense<0.000000e+00> : vector<4xf32>
    %385 = vector.multi_reduction <add>, %384, %cst_167 [1] : vector<4x4xf32> to vector<4xf32>
    %386 = vector.shape_cast %385 : vector<4xf32> to vector<4x1xf32>
    %387 = vector.broadcast %386 : vector<4x1xf32> to vector<4x4xf32>
    %388 = arith.divf %384, %387 : vector<4x4xf32>
    %cst_168 = arith.constant dense<0.000000e+00> : vector<4x8xf32>
    %389 = tpu.matmul %388, %375, %cst_168 {dimension_numbers = #tpu.dot_dimension_numbers<[1], [0], [0], [1], [0, 0, 1, 1], [], []>} : vector<4x4xf32>, vector<4x8xf32>, vector<4x8xf32> -> vector<4x8xf32>
    %c4_169 = arith.constant 4 : index
    %c8_170 = arith.constant 8 : index
    %390 = vector.load %arg36[%c4_169, %c8_170] : memref<8x32xf32, #tpu.memory_space<vmem>>, vector<4x8xf32>
    tpu.vector_store %arg36[%c4_169, %c8_170], %389 {strides = array<i32>} : memref<8x32xf32, #tpu.memory_space<vmem>>, vector<4x8xf32>,
    %391 = vector.extract_strided_slice %280 {offsets = [4, 16], sizes = [4, 8], strides = [1, 1]} : vector<8x32xf32> to vector<4x8xf32>
    %392 = vector.extract_strided_slice %281 {offsets = [4, 16], sizes = [4, 8], strides = [1, 1]} : vector<8x32xf32> to vector<4x8xf32>
    %393 = vector.extract_strided_slice %282 {offsets = [4, 16], sizes = [4, 8], strides = [1, 1]} : vector<8x32xf32> to vector<4x8xf32>
    %394 = tpu.transpose %392, [1, 0] : vector<4x8xf32> -> vector<8x4xf32>
    %cst_171 = arith.constant dense<0.000000e+00> : vector<4x4xf32>
    %395 = tpu.matmul %391, %394, %cst_171 {dimension_numbers = #tpu.dot_dimension_numbers<[1], [0], [0], [1], [0, 0, 1, 1], [], []>} : vector<4x8xf32>, vector<8x4xf32>, vector<4x4xf32> -> vector<4x4xf32>
    %cst_172 = arith.constant 0.353553385 : f32
    %396 = vector.broadcast %cst_172 : f32 to vector<4x4xf32>
    %397 = arith.mulf %395, %396 : vector<4x4xf32>
    %cst_173 = arith.constant dense<0xFF800000> : vector<4xf32>
    %398 = vector.multi_reduction <maximumf>, %397, %cst_173 [1] : vector<4x4xf32> to vector<4xf32>
    %399 = vector.shape_cast %398 : vector<4xf32> to vector<4x1xf32>
    %400 = vector.broadcast %399 : vector<4x1xf32> to vector<4x4xf32>
    %401 = arith.subf %397, %400 : vector<4x4xf32>
    %402 = math.exp %401 : vector<4x4xf32>
    %cst_174 = arith.constant dense<0.000000e+00> : vector<4xf32>
    %403 = vector.multi_reduction <add>, %402, %cst_174 [1] : vector<4x4xf32> to vector<4xf32>
    %404 = vector.shape_cast %403 : vector<4xf32> to vector<4x1xf32>
    %405 = vector.broadcast %404 : vector<4x1xf32> to vector<4x4xf32>
    %406 = arith.divf %402, %405 : vector<4x4xf32>
    %cst_175 = arith.constant dense<0.000000e+00> : vector<4x8xf32>
    %407 = tpu.matmul %406, %393, %cst_175 {dimension_numbers = #tpu.dot_dimension_numbers<[1], [0], [0], [1], [0, 0, 1, 1], [], []>} : vector<4x4xf32>, vector<4x8xf32>, vector<4x8xf32> -> vector<4x8xf32>
    %c4_176 = arith.constant 4 : index
    %c16_177 = arith.constant 16 : index
    %408 = vector.load %arg36[%c4_176, %c16_177] : memref<8x32xf32, #tpu.memory_space<vmem>>, vector<4x8xf32>
    tpu.vector_store %arg36[%c4_176, %c16_177], %407 {strides = array<i32>} : memref<8x32xf32, #tpu.memory_space<vmem>>, vector<4x8xf32>,
    %409 = vector.extract_strided_slice %280 {offsets = [4, 24], sizes = [4, 8], strides = [1, 1]} : vector<8x32xf32> to vector<4x8xf32>
    %410 = vector.extract_strided_slice %281 {offsets = [4, 24], sizes = [4, 8], strides = [1, 1]} : vector<8x32xf32> to vector<4x8xf32>
    %411 = vector.extract_strided_slice %282 {offsets = [4, 24], sizes = [4, 8], strides = [1, 1]} : vector<8x32xf32> to vector<4x8xf32>
    %412 = tpu.transpose %410, [1, 0] : vector<4x8xf32> -> vector<8x4xf32>
    %cst_178 = arith.constant dense<0.000000e+00> : vector<4x4xf32>
    %413 = tpu.matmul %409, %412, %cst_178 {dimension_numbers = #tpu.dot_dimension_numbers<[1], [0], [0], [1], [0, 0, 1, 1], [], []>} : vector<4x8xf32>, vector<8x4xf32>, vector<4x4xf32> -> vector<4x4xf32>
    %cst_179 = arith.constant 0.353553385 : f32
    %414 = vector.broadcast %cst_179 : f32 to vector<4x4xf32>
    %415 = arith.mulf %413, %414 : vector<4x4xf32>
    %cst_180 = arith.constant dense<0xFF800000> : vector<4xf32>
    %416 = vector.multi_reduction <maximumf>, %415, %cst_180 [1] : vector<4x4xf32> to vector<4xf32>
    %417 = vector.shape_cast %416 : vector<4xf32> to vector<4x1xf32>
    %418 = vector.broadcast %417 : vector<4x1xf32> to vector<4x4xf32>
    %419 = arith.subf %415, %418 : vector<4x4xf32>
    %420 = math.exp %419 : vector<4x4xf32>
    %cst_181 = arith.constant dense<0.000000e+00> : vector<4xf32>
    %421 = vector.multi_reduction <add>, %420, %cst_181 [1] : vector<4x4xf32> to vector<4xf32>
    %422 = vector.shape_cast %421 : vector<4xf32> to vector<4x1xf32>
    %423 = vector.broadcast %422 : vector<4x1xf32> to vector<4x4xf32>
    %424 = arith.divf %420, %423 : vector<4x4xf32>
    %cst_182 = arith.constant dense<0.000000e+00> : vector<4x8xf32>
    %425 = tpu.matmul %424, %411, %cst_182 {dimension_numbers = #tpu.dot_dimension_numbers<[1], [0], [0], [1], [0, 0, 1, 1], [], []>} : vector<4x4xf32>, vector<4x8xf32>, vector<4x8xf32> -> vector<4x8xf32>
    %c4_183 = arith.constant 4 : index
    %c24_184 = arith.constant 24 : index
    %426 = vector.load %arg36[%c4_183, %c24_184] : memref<8x32xf32, #tpu.memory_space<vmem>>, vector<4x8xf32>
    tpu.vector_store %arg36[%c4_183, %c24_184], %425 {strides = array<i32>} : memref<8x32xf32, #tpu.memory_space<vmem>>, vector<4x8xf32>,
    %c0_185 = arith.constant 0 : index
    %c0_186 = arith.constant 0 : index
    %427 = vector.load %arg36[%c0_185, %c0_186] : memref<8x32xf32, #tpu.memory_space<vmem>>, vector<8x32xf32>
    %c0_187 = arith.constant 0 : index
    %c0_188 = arith.constant 0 : index
    %428 = vector.load %arg21[%c0_187, %c0_188] : memref<32x32xf32, #tpu.memory_space<vmem>>, vector<32x32xf32>
    %cst_189 = arith.constant dense<0.000000e+00> : vector<8x32xf32>
    %429 = tpu.matmul %427, %428, %cst_189 {dimension_numbers = #tpu.dot_dimension_numbers<[1], [0], [0], [1], [0, 0, 1, 1], [], []>} : vector<8x32xf32>, vector<32x32xf32>, vector<8x32xf32> -> vector<8x32xf32>
    %c0_190 = arith.constant 0 : index
    %c0_191 = arith.constant 0 : index
    %430 = vector.load %arg22[%c0_190, %c0_191] : memref<1x32xf32, #tpu.memory_space<vmem>>, vector<1x32xf32>
    %431 = vector.broadcast %430 : vector<1x32xf32> to vector<8x32xf32>
    %432 = arith.addf %429, %431 : vector<8x32xf32>
    %433 = arith.addf %248, %432 : vector<8x32xf32>
    %c0_192 = arith.constant 0 : index
    %c0_193 = arith.constant 0 : index
    %434 = vector.load %arg23[%c0_192, %c0_193] : memref<1x32xf32, #tpu.memory_space<vmem>>, vector<1x32xf32>
    %c0_194 = arith.constant 0 : index
    %c0_195 = arith.constant 0 : index
    %435 = vector.load %arg24[%c0_194, %c0_195] : memref<1x32xf32, #tpu.memory_space<vmem>>, vector<1x32xf32>
    %cst_196 = arith.constant dense<0.000000e+00> : vector<8xf32>
    %436 = vector.multi_reduction <add>, %433, %cst_196 [1] : vector<8x32xf32> to vector<8xf32>
    %437 = vector.shape_cast %436 : vector<8xf32> to vector<8x1xf32>
    %cst_197 = arith.constant 3.200000e+01 : f32
    %438 = vector.broadcast %cst_197 : f32 to vector<8x1xf32>
    %439 = arith.divf %437, %438 : vector<8x1xf32>
    %440 = vector.broadcast %439 : vector<8x1xf32> to vector<8x32xf32>
    %441 = arith.subf %433, %440 : vector<8x32xf32>
    %442 = vector.broadcast %439 : vector<8x1xf32> to vector<8x32xf32>
    %443 = arith.subf %433, %442 : vector<8x32xf32>
    %444 = arith.mulf %441, %443 : vector<8x32xf32>
    %cst_198 = arith.constant dense<0.000000e+00> : vector<8xf32>
    %445 = vector.multi_reduction <add>, %444, %cst_198 [1] : vector<8x32xf32> to vector<8xf32>
    %446 = vector.shape_cast %445 : vector<8xf32> to vector<8x1xf32>
    %cst_199 = arith.constant 3.200000e+01 : f32
    %447 = vector.broadcast %cst_199 : f32 to vector<8x1xf32>
    %448 = arith.divf %446, %447 : vector<8x1xf32>
    %449 = vector.broadcast %439 : vector<8x1xf32> to vector<8x32xf32>
    %450 = arith.subf %433, %449 : vector<8x32xf32>
    %cst_200 = arith.constant 9.99999997E-7 : f32
    %451 = vector.broadcast %cst_200 : f32 to vector<8x1xf32>
    %452 = arith.addf %448, %451 : vector<8x1xf32>
    %453 = math.rsqrt %452 : vector<8x1xf32>
    %454 = vector.broadcast %453 : vector<8x1xf32> to vector<8x32xf32>
    %455 = arith.mulf %450, %454 : vector<8x32xf32>
    %456 = vector.broadcast %434 : vector<1x32xf32> to vector<8x32xf32>
    %457 = arith.mulf %455, %456 : vector<8x32xf32>
    %458 = vector.broadcast %435 : vector<1x32xf32> to vector<8x32xf32>
    %459 = arith.addf %457, %458 : vector<8x32xf32>
    %c0_201 = arith.constant 0 : index
    %c0_202 = arith.constant 0 : index
    %460 = vector.load %arg25[%c0_201, %c0_202] : memref<32x128xf32, #tpu.memory_space<vmem>>, vector<32x128xf32>
    %cst_203 = arith.constant dense<0.000000e+00> : vector<8x128xf32>
    %461 = tpu.matmul %459, %460, %cst_203 {dimension_numbers = #tpu.dot_dimension_numbers<[1], [0], [0], [1], [0, 0, 1, 1], [], []>} : vector<8x32xf32>, vector<32x128xf32>, vector<8x128xf32> -> vector<8x128xf32>
    %c0_204 = arith.constant 0 : index
    %c0_205 = arith.constant 0 : index
    %462 = vector.load %arg26[%c0_204, %c0_205] : memref<1x128xf32, #tpu.memory_space<vmem>>, vector<1x128xf32>
    %463 = vector.broadcast %462 : vector<1x128xf32> to vector<8x128xf32>
    %464 = arith.addf %461, %463 : vector<8x128xf32>
    %cst_206 = arith.constant 5.000000e-01 : f32
    %465 = vector.broadcast %cst_206 : f32 to vector<8x128xf32>
    %466 = arith.mulf %465, %464 : vector<8x128xf32>
    %cst_207 = arith.constant 4.471500e-02 : f32
    %467 = vector.broadcast %cst_207 : f32 to vector<8x128xf32>
    %468 = arith.mulf %467, %464 : vector<8x128xf32>
    %469 = arith.mulf %468, %464 : vector<8x128xf32>
    %470 = arith.mulf %469, %464 : vector<8x128xf32>
    %471 = arith.addf %464, %470 : vector<8x128xf32>
    %cst_208 = arith.constant 0.797884583 : f32
    %472 = vector.broadcast %cst_208 : f32 to vector<8x128xf32>
    %473 = arith.mulf %472, %471 : vector<8x128xf32>
    %474 = math.tanh %473 : vector<8x128xf32>
    %cst_209 = arith.constant 1.000000e+00 : f32
    %475 = vector.broadcast %cst_209 : f32 to vector<8x128xf32>
    %476 = arith.addf %475, %474 : vector<8x128xf32>
    %477 = arith.mulf %466, %476 : vector<8x128xf32>
    %c0_210 = arith.constant 0 : index
    %c0_211 = arith.constant 0 : index
    %478 = vector.load %arg27[%c0_210, %c0_211] : memref<128x32xf32, #tpu.memory_space<vmem>>, vector<128x32xf32>
    %cst_212 = arith.constant dense<0.000000e+00> : vector<8x32xf32>
    %479 = tpu.matmul %477, %478, %cst_212 {dimension_numbers = #tpu.dot_dimension_numbers<[1], [0], [0], [1], [0, 0, 1, 1], [], []>} : vector<8x128xf32>, vector<128x32xf32>, vector<8x32xf32> -> vector<8x32xf32>
    %c0_213 = arith.constant 0 : index
    %c0_214 = arith.constant 0 : index
    %480 = vector.load %arg28[%c0_213, %c0_214] : memref<1x32xf32, #tpu.memory_space<vmem>>, vector<1x32xf32>
    %481 = vector.broadcast %480 : vector<1x32xf32> to vector<8x32xf32>
    %482 = arith.addf %479, %481 : vector<8x32xf32>
    %483 = arith.addf %433, %482 : vector<8x32xf32>
    %cst_215 = arith.constant dense<0.000000e+00> : vector<8xf32>
    %484 = vector.multi_reduction <add>, %483, %cst_215 [1] : vector<8x32xf32> to vector<8xf32>
    %485 = vector.shape_cast %484 : vector<8xf32> to vector<8x1xf32>
    %cst_216 = arith.constant 3.200000e+01 : f32
    %486 = vector.broadcast %cst_216 : f32 to vector<8x1xf32>
    %487 = arith.divf %485, %486 : vector<8x1xf32>
    %488 = vector.broadcast %487 : vector<8x1xf32> to vector<8x32xf32>
    %489 = arith.subf %483, %488 : vector<8x32xf32>
    %490 = vector.broadcast %487 : vector<8x1xf32> to vector<8x32xf32>
    %491 = arith.subf %483, %490 : vector<8x32xf32>
    %492 = arith.mulf %489, %491 : vector<8x32xf32>
    %cst_217 = arith.constant dense<0.000000e+00> : vector<8xf32>
    %493 = vector.multi_reduction <add>, %492, %cst_217 [1] : vector<8x32xf32> to vector<8xf32>
    %494 = vector.shape_cast %493 : vector<8xf32> to vector<8x1xf32>
    %cst_218 = arith.constant 3.200000e+01 : f32
    %495 = vector.broadcast %cst_218 : f32 to vector<8x1xf32>
    %496 = arith.divf %494, %495 : vector<8x1xf32>
    %497 = vector.broadcast %487 : vector<8x1xf32> to vector<8x32xf32>
    %498 = arith.subf %483, %497 : vector<8x32xf32>
    %cst_219 = arith.constant 9.99999997E-7 : f32
    %499 = vector.broadcast %cst_219 : f32 to vector<8x1xf32>
    %500 = arith.addf %496, %499 : vector<8x1xf32>
    %501 = math.rsqrt %500 : vector<8x1xf32>
    %502 = vector.broadcast %501 : vector<8x1xf32> to vector<8x32xf32>
    %503 = arith.mulf %498, %502 : vector<8x32xf32>
    %504 = vector.broadcast %4 : vector<1x32xf32> to vector<8x32xf32>
    %505 = arith.mulf %503, %504 : vector<8x32xf32>
    %506 = vector.broadcast %5 : vector<1x32xf32> to vector<8x32xf32>
    %507 = arith.addf %505, %506 : vector<8x32xf32>
    %cst_220 = arith.constant dense<0.000000e+00> : vector<8x32xf32>
    %508 = tpu.matmul %507, %6, %cst_220 {dimension_numbers = #tpu.dot_dimension_numbers<[1], [0], [0], [1], [0, 0, 1, 1], [], []>} : vector<8x32xf32>, vector<32x32xf32>, vector<8x32xf32> -> vector<8x32xf32>
    %509 = vector.broadcast %7 : vector<1x32xf32> to vector<8x32xf32>
    %510 = arith.addf %508, %509 : vector<8x32xf32>
    %cst_221 = arith.constant 5.000000e-01 : f32
    %511 = vector.broadcast %cst_221 : f32 to vector<8x32xf32>
    %512 = arith.mulf %511, %510 : vector<8x32xf32>
    %cst_222 = arith.constant 4.471500e-02 : f32
    %513 = vector.broadcast %cst_222 : f32 to vector<8x32xf32>
    %514 = arith.mulf %513, %510 : vector<8x32xf32>
    %515 = arith.mulf %514, %510 : vector<8x32xf32>
    %516 = arith.mulf %515, %510 : vector<8x32xf32>
    %517 = arith.addf %510, %516 : vector<8x32xf32>
    %cst_223 = arith.constant 0.797884583 : f32
    %518 = vector.broadcast %cst_223 : f32 to vector<8x32xf32>
    %519 = arith.mulf %518, %517 : vector<8x32xf32>
    %520 = math.tanh %519 : vector<8x32xf32>
    %cst_224 = arith.constant 1.000000e+00 : f32
    %521 = vector.broadcast %cst_224 : f32 to vector<8x32xf32>
    %522 = arith.addf %521, %520 : vector<8x32xf32>
    %523 = arith.mulf %512, %522 : vector<8x32xf32>
    %cst_225 = arith.constant dense<0.000000e+00> : vector<8x128xf32>
    %524 = tpu.matmul %523, %8, %cst_225 {dimension_numbers = #tpu.dot_dimension_numbers<[1], [0], [0], [1], [0, 0, 1, 1], [], []>} : vector<8x32xf32>, vector<32x128xf32>, vector<8x128xf32> -> vector<8x128xf32>
    %525 = vector.broadcast %9 : vector<1x128xf32> to vector<8x128xf32>
    %526 = arith.addf %524, %525 : vector<8x128xf32>
    %c0_226 = arith.constant 0 : index
    %c0_227 = arith.constant 0 : index
    %527 = vector.load %arg35[%c0_226, %c0_227] : memref<8x128xf32, #tpu.memory_space<vmem>>, vector<8x128xf32>
    tpu.vector_store %arg35[%c0_226, %c0_227], %526 {strides = array<i32>} : memref<8x128xf32, #tpu.memory_space<vmem>>, vector<8x128xf32>,
    return
  }
  func.func @transform_0(%arg0: i32) -> (i32, i32) {
    %c0_i32 = arith.constant 0 : i32
    %c0_i32_0 = arith.constant 0 : i32
    %c0_i32_1 = arith.constant 0 : i32
    return %c0_i32, %c0_i32_0 : i32, i32
  }
  func.func @transform_1(%arg0: i32) -> (i32, i32) {
    %c0_i32 = arith.constant 0 : i32
    %c0_i32_0 = arith.constant 0 : i32
    %c0_i32_1 = arith.constant 0 : i32
    return %c0_i32, %c0_i32_0 : i32, i32
  }
  func.func @transform_2(%arg0: i32) -> (i32, i32) {
    %c0_i32 = arith.constant 0 : i32
    %c0_i32_0 = arith.constant 0 : i32
    %c0_i32_1 = arith.constant 0 : i32
    return %c0_i32, %c0_i32_0 : i32, i32
  }
  func.func @transform_3(%arg0: i32) -> (i32, i32) {
    %c0_i32 = arith.constant 0 : i32
    %c0_i32_0 = arith.constant 0 : i32
    %c0_i32_1 = arith.constant 0 : i32
    return %c0_i32, %c0_i32_0 : i32, i32
  }
  func.func @transform_4(%arg0: i32) -> (i32, i32) {
    %c0_i32 = arith.constant 0 : i32
    %c0_i32_0 = arith.constant 0 : i32
    %c0_i32_1 = arith.constant 0 : i32
    return %c0_i32, %c0_i32_0 : i32, i32
  }
  func.func @transform_5(%arg0: i32) -> (i32, i32) {
    %c0_i32 = arith.constant 0 : i32
    %c0_i32_0 = arith.constant 0 : i32
    %c0_i32_1 = arith.constant 0 : i32
    return %c0_i32, %c0_i32_0 : i32, i32
  }
  func.func @transform_6(%arg0: i32) -> (i32, i32) {
    %c0_i32 = arith.constant 0 : i32
    %c0_i32_0 = arith.constant 0 : i32
    %c0_i32_1 = arith.constant 0 : i32
    return %c0_i32, %c0_i32_0 : i32, i32
  }
  func.func @transform_7(%arg0: i32) -> (i32, i32) {
    %c0_i32 = arith.constant 0 : i32
    %c0_i32_0 = arith.constant 0 : i32
    %c0_i32_1 = arith.constant 0 : i32
    return %c0_i32, %c0_i32_0 : i32, i32
  }
  func.func @transform_8(%arg0: i32) -> (i32, i32) {
    %c0_i32 = arith.constant 0 : i32
    %c0_i32_0 = arith.constant 0 : i32
    %c0_i32_1 = arith.constant 0 : i32
    return %c0_i32, %c0_i32_0 : i32, i32
  }
  func.func @transform_9(%arg0: i32) -> (i32, i32) {
    %c0_i32 = arith.constant 0 : i32
    %c0_i32_0 = arith.constant 0 : i32
    %c0_i32_1 = arith.constant 0 : i32
    return %c0_i32, %c0_i32_0 : i32, i32
  }
  func.func @transform_10(%arg0: i32) -> (i32, i32) {
    %c0_i32 = arith.constant 0 : i32
    %c0_i32_0 = arith.constant 0 : i32
    %c0_i32_1 = arith.constant 0 : i32
    return %c0_i32, %c0_i32_0 : i32, i32
  }
  func.func @transform_11(%arg0: i32) -> (i32, i32) {
    %c0_i32 = arith.constant 0 : i32
    %c0_i32_0 = arith.constant 0 : i32
    %c0_i32_1 = arith.constant 0 : i32
    return %c0_i32, %c0_i32_0 : i32, i32
  }
  func.func @transform_12(%arg0: i32) -> (i32, i32) {
    %c0_i32 = arith.constant 0 : i32
    %c0_i32_0 = arith.constant 0 : i32
    %c0_i32_1 = arith.constant 0 : i32
    return %c0_i32, %c0_i32_0 : i32, i32
  }
  func.func @transform_13(%arg0: i32) -> (i32, i32) {
    %c0_i32 = arith.constant 0 : i32
    %c0_i32_0 = arith.constant 0 : i32
    %c0_i32_1 = arith.constant 0 : i32
    return %c0_i32, %c0_i32_0 : i32, i32
  }
  func.func @transform_14(%arg0: i32) -> (i32, i32) {
    %c0_i32 = arith.constant 0 : i32
    %c0_i32_0 = arith.constant 0 : i32
    %c0_i32_1 = arith.constant 0 : i32
    return %c0_i32, %c0_i32_0 : i32, i32
  }
  func.func @transform_15(%arg0: i32) -> (i32, i32) {
    %c0_i32 = arith.constant 0 : i32
    %c0_i32_0 = arith.constant 0 : i32
    %c0_i32_1 = arith.constant 0 : i32
    return %c0_i32, %c0_i32_0 : i32, i32
  }
  func.func @transform_16(%arg0: i32) -> (i32, i32) {
    %c0_i32 = arith.constant 0 : i32
    %c0_i32_0 = arith.constant 0 : i32
    %c0_i32_1 = arith.constant 0 : i32
    return %c0_i32, %c0_i32_0 : i32, i32
  }
  func.func @transform_17(%arg0: i32) -> (i32, i32) {
    %c0_i32 = arith.constant 0 : i32
    %c0_i32_0 = arith.constant 0 : i32
    %c0_i32_1 = arith.constant 0 : i32
    return %c0_i32, %c0_i32_0 : i32, i32
  }
  func.func @transform_18(%arg0: i32) -> (i32, i32) {
    %c0_i32 = arith.constant 0 : i32
    %c0_i32_0 = arith.constant 0 : i32
    %c0_i32_1 = arith.constant 0 : i32
    return %c0_i32, %c0_i32_0 : i32, i32
  }
  func.func @transform_19(%arg0: i32) -> (i32, i32) {
    %c0_i32 = arith.constant 0 : i32
    %c0_i32_0 = arith.constant 0 : i32
    %c0_i32_1 = arith.constant 0 : i32
    return %c0_i32, %c0_i32_0 : i32, i32
  }
  func.func @transform_20(%arg0: i32) -> (i32, i32) {
    %c0_i32 = arith.constant 0 : i32
    %c0_i32_0 = arith.constant 0 : i32
    %c0_i32_1 = arith.constant 0 : i32
    return %c0_i32, %c0_i32_0 : i32, i32
  }
  func.func @transform_21(%arg0: i32) -> (i32, i32) {
    %c0_i32 = arith.constant 0 : i32
    %c0_i32_0 = arith.constant 0 : i32
    %c0_i32_1 = arith.constant 0 : i32
    return %c0_i32, %c0_i32_0 : i32, i32
  }
  func.func @transform_22(%arg0: i32) -> (i32, i32) {
    %c0_i32 = arith.constant 0 : i32
    %c0_i32_0 = arith.constant 0 : i32
    %c0_i32_1 = arith.constant 0 : i32
    return %c0_i32, %c0_i32_0 : i32, i32
  }
  func.func @transform_23(%arg0: i32) -> (i32, i32) {
    %c0_i32 = arith.constant 0 : i32
    %c0_i32_0 = arith.constant 0 : i32
    %c0_i32_1 = arith.constant 0 : i32
    return %c0_i32, %c0_i32_0 : i32, i32
  }
  func.func @transform_24(%arg0: i32) -> (i32, i32) {
    %c0_i32 = arith.constant 0 : i32
    %c0_i32_0 = arith.constant 0 : i32
    %c0_i32_1 = arith.constant 0 : i32
    return %c0_i32, %c0_i32_0 : i32, i32
  }
  func.func @transform_25(%arg0: i32) -> (i32, i32) {
    %c0_i32 = arith.constant 0 : i32
    %c0_i32_0 = arith.constant 0 : i32
    %c0_i32_1 = arith.constant 0 : i32
    return %c0_i32, %c0_i32_0 : i32, i32
  }
  func.func @transform_26(%arg0: i32) -> (i32, i32) {
    %c0_i32 = arith.constant 0 : i32
    %c0_i32_0 = arith.constant 0 : i32
    %c0_i32_1 = arith.constant 0 : i32
    return %c0_i32, %c0_i32_0 : i32, i32
  }
  func.func @transform_27(%arg0: i32) -> (i32, i32) {
    %c0_i32 = arith.constant 0 : i32
    %c0_i32_0 = arith.constant 0 : i32
    %c0_i32_1 = arith.constant 0 : i32
    return %c0_i32, %c0_i32_0 : i32, i32
  }
  func.func @transform_28(%arg0: i32) -> (i32, i32) {
    %c0_i32 = arith.constant 0 : i32
    %c0_i32_0 = arith.constant 0 : i32
    %c0_i32_1 = arith.constant 0 : i32
    return %c0_i32, %c0_i32_0 : i32, i32
  }
  func.func @transform_29(%arg0: i32) -> (i32, i32) {
    %c0_i32 = arith.constant 0 : i32
    %c0_i32_0 = arith.constant 0 : i32
    %c0_i32_1 = arith.constant 0 : i32
    return %c0_i32, %c0_i32_0 : i32, i32
  }
  func.func @transform_30(%arg0: i32) -> (i32, i32) {
    %c0_i32 = arith.constant 0 : i32
    %c0_i32_0 = arith.constant 0 : i32
    %c0_i32_1 = arith.constant 0 : i32
    return %c0_i32, %c0_i32_0 : i32, i32
  }
  func.func @transform_31(%arg0: i32) -> (i32, i32) {
    %c0_i32 = arith.constant 0 : i32
    %c0_i32_0 = arith.constant 0 : i32
    %c0_i32_1 = arith.constant 0 : i32
    return %c0_i32, %c0_i32_0 : i32, i32
  }
  func.func @transform_32(%arg0: i32) -> (i32, i32) {
    %c0_i32 = arith.constant 0 : i32
    %c0_i32_0 = arith.constant 0 : i32
    %c0_i32_1 = arith.constant 0 : i32
    return %c0_i32, %c0_i32_0 : i32, i32
  }
  func.func @transform_33(%arg0: i32) -> (i32, i32) {
    %c0_i32 = arith.constant 0 : i32
    %c0_i32_0 = arith.constant 0 : i32
    %c0_i32_1 = arith.constant 0 : i32
    return %c0_i32, %c0_i32_0 : i32, i32
  }
  func.func @transform_34(%arg0: i32) -> (i32, i32) {
    %c0_i32 = arith.constant 0 : i32
    %c0_i32_0 = arith.constant 0 : i32
    %c0_i32_1 = arith.constant 0 : i32
    return %c0_i32, %c0_i32_0 : i32, i32
  }
}

</mosaic_0001>

<llo_original>
// kernel: baseline_forward.1
$region0: #{baseline_forward.1}
  #allocation0 [shape = 'u32[]', space=smem, size = 0x4, offset = 0x4, fixed_abs, tag = 'smem constant byte address 0x4 - core index']
  #allocation1 [shape = 'u32[72,128]{1,0:T(1,128)}', space=vmem, size = 0x9000, scoped, tag = 'internal scratch']
  #allocation2 [shape = 'f32[8,32]{1,0:T(8,128)}', space=vmem, size = 0x1000, scoped, tag = 'scratch operand']
  %s0 = inlined_call_operand.smem [shape: u32[35], index: -1, kind: input, shape index: {}]
  %s1 = sld [smem:[%s0]]
  %s2 = scalar_lea.smem %s0, 1
  %s3 = sld [smem:[%s2]]
  %s4 = scalar_lea.smem %s0, 2
  %s5 = sld [smem:[%s4]]
  %s6 = scalar_lea.smem %s0, 3
  %s7 = sld [smem:[%s6]]
  %s8 = scalar_lea.smem %s0, 4
  %s9 = sld [smem:[%s8]]
  %s10 = scalar_lea.smem %s0, 5
  %s11 = sld [smem:[%s10]]
  %s12 = scalar_lea.smem %s0, 6
  %s13 = sld [smem:[%s12]]
  %s14 = scalar_lea.smem %s0, 7
  %s15 = sld [smem:[%s14]]
  %s16 = scalar_lea.smem %s0, 8
  %s17 = sld [smem:[%s16]]
  %s18 = scalar_lea.smem %s0, 9
  %s19 = sld [smem:[%s18]]
  %s20 = scalar_lea.smem %s0, 10
  %s21 = sld [smem:[%s20]]
  %s22 = scalar_lea.smem %s0, 11
  %s23 = sld [smem:[%s22]]
  %s24 = scalar_lea.smem %s0, 12
  %s25 = sld [smem:[%s24]]
  %s26 = scalar_lea.smem %s0, 13
  %s27 = sld [smem:[%s26]]
  %s28 = scalar_lea.smem %s0, 14
  %s29 = sld [smem:[%s28]]
  %s30 = scalar_lea.smem %s0, 15
  %s31 = sld [smem:[%s30]]
  %s32 = scalar_lea.smem %s0, 16
  %s33 = sld [smem:[%s32]]
  %s34 = scalar_lea.smem %s0, 17
  %s35 = sld [smem:[%s34]]
  %s36 = scalar_lea.smem %s0, 18
  %s37 = sld [smem:[%s36]]
  %s38 = scalar_lea.smem %s0, 19
  %s39 = sld [smem:[%s38]]
  %s40 = scalar_lea.smem %s0, 20
  %s41 = sld [smem:[%s40]]
  %s42 = scalar_lea.smem %s0, 21
  %s43 = sld [smem:[%s42]]
  %s44 = scalar_lea.smem %s0, 22
  %s45 = sld [smem:[%s44]]
  %s46 = scalar_lea.smem %s0, 23
  %s47 = sld [smem:[%s46]]
  %s48 = scalar_lea.smem %s0, 24
  %s49 = sld [smem:[%s48]]
  %s50 = scalar_lea.smem %s0, 25
  %s51 = sld [smem:[%s50]]
  %s52 = scalar_lea.smem %s0, 26
  %s53 = sld [smem:[%s52]]
  %s54 = scalar_lea.smem %s0, 27
  %s55 = sld [smem:[%s54]]
  %s56 = scalar_lea.smem %s0, 28
  %s57 = sld [smem:[%s56]]
  %s58 = scalar_lea.smem %s0, 29
  %s59 = sld [smem:[%s58]]
  %s60 = scalar_lea.smem %s0, 30
  %s61 = sld [smem:[%s60]]
  %s62 = scalar_lea.smem %s0, 31
  %s63 = sld [smem:[%s62]]
  %s64 = scalar_lea.smem %s0, 32
  %s65 = sld [smem:[%s64]]
  %s66 = scalar_lea.smem %s0, 33
  %s67 = sld [smem:[%s66]]
  %s68 = scalar_lea.smem %s0, 34
  %s69 = sld [smem:[%s68]]
  %s70 = sld [smem:[#allocation0]]
  $region146: #{baseline_forward.1} parent=0
    _
  %s72 = ssub.s32 1, %s70
  %s73 = scalar_select 0, %s72, %s70
  // Predicated region
  $region2: #{baseline_forward.1} parent=0 // pred_check
    _
  $region3: #{baseline_forward.1} parent=0 // pred_check_branch
    %75 = sbr.rel (0) target = $region5
  $region4: #{baseline_forward.1} parent=0 // pred_region
    _
  $region5: #{baseline_forward.1} parent=0 // pred_fallthru
    _
  // Predicated region
  $region6: #{baseline_forward.1} parent=0 // pred_check
    _
  $region7: #{baseline_forward.1} parent=0 // pred_check_branch
    %77 = sbr.rel (0) target = $region9
  $region8: #{baseline_forward.1} parent=0 // pred_region
    _
  $region9: #{baseline_forward.1} parent=0 // pred_fallthru
    _
  // Predicated region
  $region10: #{baseline_forward.1} parent=0 // pred_check
    _
  $region11: #{baseline_forward.1} parent=0 // pred_check_branch
    %79 = sbr.rel (0) target = $region13
  $region12: #{baseline_forward.1} parent=0 // pred_region
    _
  $region13: #{baseline_forward.1} parent=0 // pred_fallthru
    _
  // Predicated region
  $region14: #{baseline_forward.1} parent=0 // pred_check
    _
  $region15: #{baseline_forward.1} parent=0 // pred_check_branch
    %81 = sbr.rel (0) target = $region17
  $region16: #{baseline_forward.1} parent=0 // pred_region
    _
  $region17: #{baseline_forward.1} parent=0 // pred_fallthru
    _
  // Predicated region
  $region18: #{baseline_forward.1} parent=0 // pred_check
    _
  $region19: #{baseline_forward.1} parent=0 // pred_check_branch
    %83 = sbr.rel (0) target = $region21
  $region20: #{baseline_forward.1} parent=0 // pred_region
    _
  $region21: #{baseline_forward.1} parent=0 // pred_fallthru
    _
  // Predicated region
  $region22: #{baseline_forward.1} parent=0 // pred_check
    _
  $region23: #{baseline_forward.1} parent=0 // pred_check_branch
    %85 = sbr.rel (0) target = $region25
  $region24: #{baseline_forward.1} parent=0 // pred_region
    _
  $region25: #{baseline_forward.1} parent=0 // pred_fallthru
    _
  // Predicated region
  $region26: #{baseline_forward.1} parent=0 // pred_check
    _
  $region27: #{baseline_forward.1} parent=0 // pred_check_branch
    %87 = sbr.rel (0) target = $region29
  $region28: #{baseline_forward.1} parent=0 // pred_region
    _
  $region29: #{baseline_forward.1} parent=0 // pred_fallthru
    _
  // Predicated region
  $region30: #{baseline_forward.1} parent=0 // pred_check
    _
  $region31: #{baseline_forward.1} parent=0 // pred_check_branch
    %89 = sbr.rel (0) target = $region33
  $region32: #{baseline_forward.1} parent=0 // pred_region
    _
  $region33: #{baseline_forward.1} parent=0 // pred_fallthru
    _
  // Predicated region
  $region34: #{baseline_forward.1} parent=0 // pred_check
    _
  $region35: #{baseline_forward.1} parent=0 // pred_check_branch
    %91 = sbr.rel (0) target = $region37
  $region36: #{baseline_forward.1} parent=0 // pred_region
    _
  $region37: #{baseline_forward.1} parent=0 // pred_fallthru
    _
  // Predicated region
  $region38: #{baseline_forward.1} parent=0 // pred_check
    _
  $region39: #{baseline_forward.1} parent=0 // pred_check_branch
    %93 = sbr.rel (0) target = $region41
  $region40: #{baseline_forward.1} parent=0 // pred_region
    _
  $region41: #{baseline_forward.1} parent=0 // pred_fallthru
    _
  // Predicated region
  $region42: #{baseline_forward.1} parent=0 // pred_check
    _
  $region43: #{baseline_forward.1} parent=0 // pred_check_branch
    %95 = sbr.rel (0) target = $region45
  $region44: #{baseline_forward.1} parent=0 // pred_region
    _
  $region45: #{baseline_forward.1} parent=0 // pred_fallthru
    _
  // Predicated region
  $region46: #{baseline_forward.1} parent=0 // pred_check
    _
  $region47: #{baseline_forward.1} parent=0 // pred_check_branch
    %97 = sbr.rel (0) target = $region49
  $region48: #{baseline_forward.1} parent=0 // pred_region
    _
  $region49: #{baseline_forward.1} parent=0 // pred_fallthru
    _
  // Predicated region
  $region50: #{baseline_forward.1} parent=0 // pred_check
    _
  $region51: #{baseline_forward.1} parent=0 // pred_check_branch
    %99 = sbr.rel (0) target = $region53
  $region52: #{baseline_forward.1} parent=0 // pred_region
    _
  $region53: #{baseline_forward.1} parent=0 // pred_fallthru
    _
  // Predicated region
  $region54: #{baseline_forward.1} parent=0 // pred_check
    _
  $region55: #{baseline_forward.1} parent=0 // pred_check_branch
    %101 = sbr.rel (0) target = $region57
  $region56: #{baseline_forward.1} parent=0 // pred_region
    _
  $region57: #{baseline_forward.1} parent=0 // pred_fallthru
    _
  // Predicated region
  $region58: #{baseline_forward.1} parent=0 // pred_check
    _
  $region59: #{baseline_forward.1} parent=0 // pred_check_branch
    %103 = sbr.rel (0) target = $region61
  $region60: #{baseline_forward.1} parent=0 // pred_region
    _
  $region61: #{baseline_forward.1} parent=0 // pred_fallthru
    _
  // Predicated region
  $region62: #{baseline_forward.1} parent=0 // pred_check
    _
  $region63: #{baseline_forward.1} parent=0 // pred_check_branch
    %105 = sbr.rel (0) target = $region65
  $region64: #{baseline_forward.1} parent=0 // pred_region
    _
  $region65: #{baseline_forward.1} parent=0 // pred_fallthru
    _
  // Predicated region
  $region66: #{baseline_forward.1} parent=0 // pred_check
    _
  $region67: #{baseline_forward.1} parent=0 // pred_check_branch
    %107 = sbr.rel (0) target = $region69
  $region68: #{baseline_forward.1} parent=0 // pred_region
    _
  $region69: #{baseline_forward.1} parent=0 // pred_fallthru
    _
  // Predicated region
  $region70: #{baseline_forward.1} parent=0 // pred_check
    _
  $region71: #{baseline_forward.1} parent=0 // pred_check_branch
    %109 = sbr.rel (0) target = $region73
  $region72: #{baseline_forward.1} parent=0 // pred_region
    _
  $region73: #{baseline_forward.1} parent=0 // pred_fallthru
    _
  // Predicated region
  $region74: #{baseline_forward.1} parent=0 // pred_check
    _
  $region75: #{baseline_forward.1} parent=0 // pred_check_branch
    %111 = sbr.rel (0) target = $region77
  $region76: #{baseline_forward.1} parent=0 // pred_region
    _
  $region77: #{baseline_forward.1} parent=0 // pred_fallthru
    _
  // Predicated region
  $region78: #{baseline_forward.1} parent=0 // pred_check
    _
  $region79: #{baseline_forward.1} parent=0 // pred_check_branch
    %113 = sbr.rel (0) target = $region81
  $region80: #{baseline_forward.1} parent=0 // pred_region
    _
  $region81: #{baseline_forward.1} parent=0 // pred_fallthru
    _
  // Predicated region
  $region82: #{baseline_forward.1} parent=0 // pred_check
    _
  $region83: #{baseline_forward.1} parent=0 // pred_check_branch
    %115 = sbr.rel (0) target = $region85
  $region84: #{baseline_forward.1} parent=0 // pred_region
    _
  $region85: #{baseline_forward.1} parent=0 // pred_fallthru
    _
  // Predicated region
  $region86: #{baseline_forward.1} parent=0 // pred_check
    _
  $region87: #{baseline_forward.1} parent=0 // pred_check_branch
    %117 = sbr.rel (0) target = $region89
  $region88: #{baseline_forward.1} parent=0 // pred_region
    _
  $region89: #{baseline_forward.1} parent=0 // pred_fallthru
    _
  // Predicated region
  $region90: #{baseline_forward.1} parent=0 // pred_check
    _
  $region91: #{baseline_forward.1} parent=0 // pred_check_branch
    %119 = sbr.rel (0) target = $region93
  $region92: #{baseline_forward.1} parent=0 // pred_region
    _
  $region93: #{baseline_forward.1} parent=0 // pred_fallthru
    _
  // Predicated region
  $region94: #{baseline_forward.1} parent=0 // pred_check
    _
  $region95: #{baseline_forward.1} parent=0 // pred_check_branch
    %121 = sbr.rel (0) target = $region97
  $region96: #{baseline_forward.1} parent=0 // pred_region
    _
  $region97: #{baseline_forward.1} parent=0 // pred_fallthru
    _
  // Predicated region
  $region98: #{baseline_forward.1} parent=0 // pred_check
    _
  $region99: #{baseline_forward.1} parent=0 // pred_check_branch
    %123 = sbr.rel (0) target = $region101
  $region100: #{baseline_forward.1} parent=0 // pred_region
    _
  $region101: #{baseline_forward.1} parent=0 // pred_fallthru
    _
  // Predicated region
  $region102: #{baseline_forward.1} parent=0 // pred_check
    _
  $region103: #{baseline_forward.1} parent=0 // pred_check_branch
    %125 = sbr.rel (0) target = $region105
  $region104: #{baseline_forward.1} parent=0 // pred_region
    _
  $region105: #{baseline_forward.1} parent=0 // pred_fallthru
    _
  // Predicated region
  $region106: #{baseline_forward.1} parent=0 // pred_check
    _
  $region107: #{baseline_forward.1} parent=0 // pred_check_branch
    %127 = sbr.rel (0) target = $region109
  $region108: #{baseline_forward.1} parent=0 // pred_region
    _
  $region109: #{baseline_forward.1} parent=0 // pred_fallthru
    _
  // Predicated region
  $region110: #{baseline_forward.1} parent=0 // pred_check
    _
  $region111: #{baseline_forward.1} parent=0 // pred_check_branch
    %129 = sbr.rel (0) target = $region113
  $region112: #{baseline_forward.1} parent=0 // pred_region
    _
  $region113: #{baseline_forward.1} parent=0 // pred_fallthru
    _
  // Predicated region
  $region114: #{baseline_forward.1} parent=0 // pred_check
    _
  $region115: #{baseline_forward.1} parent=0 // pred_check_branch
    %131 = sbr.rel (0) target = $region117
  $region116: #{baseline_forward.1} parent=0 // pred_region
    _
  $region117: #{baseline_forward.1} parent=0 // pred_fallthru
    _
  // Predicated region
  $region118: #{baseline_forward.1} parent=0 // pred_check
    _
  $region119: #{baseline_forward.1} parent=0 // pred_check_branch
    %133 = sbr.rel (0) target = $region121
  $region120: #{baseline_forward.1} parent=0 // pred_region
    _
  $region121: #{baseline_forward.1} parent=0 // pred_fallthru
    _
  // Predicated region
  $region122: #{baseline_forward.1} parent=0 // pred_check
    _
  $region123: #{baseline_forward.1} parent=0 // pred_check_branch
    %135 = sbr.rel (0) target = $region125
  $region124: #{baseline_forward.1} parent=0 // pred_region
    _
  $region125: #{baseline_forward.1} parent=0 // pred_fallthru
    _
  // Predicated region
  $region126: #{baseline_forward.1} parent=0 // pred_check
    _
  $region127: #{baseline_forward.1} parent=0 // pred_check_branch
    %137 = sbr.rel (0) target = $region129
  $region128: #{baseline_forward.1} parent=0 // pred_region
    _
  $region129: #{baseline_forward.1} parent=0 // pred_fallthru
    _
  // Predicated region
  $region130: #{baseline_forward.1} parent=0 // pred_check
    _
  $region131: #{baseline_forward.1} parent=0 // pred_check_branch
    %139 = sbr.rel (0) target = $region133
  $region132: #{baseline_forward.1} parent=0 // pred_region
    _
  $region133: #{baseline_forward.1} parent=0 // pred_fallthru
    _
  // Predicated region
  $region134: #{baseline_forward.1} parent=0 // pred_check
    _
  $region135: #{baseline_forward.1} parent=0 // pred_check_branch
    %141 = sbr.rel (0) target = $region137
  $region136: #{baseline_forward.1} parent=0 // pred_region
    _
  $region137: #{baseline_forward.1} parent=0 // pred_fallthru
    _
  %v142 = vld [vmem:[%s1] sm:$0xff]
  %v143 = vld [vmem:[%s3] sm:$0xff]
  %v144 = vld [vmem:[%s5] sm:$0xff]
  %v145 = vld [vmem:[%s5 + $0x8] sm:$0xff]
  %v146 = vld [vmem:[%s5 + $0x10] sm:$0xff]
  %v147 = vld [vmem:[%s5 + $0x18] sm:$0xff]
  %v148 = vld [vmem:[%s5 + $0x20] sm:$0xff]
  %v149 = vld [vmem:[%s5 + $0x28] sm:$0xff]
  %v150 = vld [vmem:[%s5 + $0x30] sm:$0xff]
  %v151 = vld [vmem:[%s5 + $0x38] sm:$0xff]
  %v152 = vld [vmem:[%s7] sm:$0x1]
  %v153 = vld [vmem:[%s57] sm:$0x1]
  %v154 = vld [vmem:[%s59] sm:$0x1]
  %v155 = vld [vmem:[%s61] sm:$0xff]
  %v156 = vld [vmem:[%s61 + $0x8] sm:$0xff]
  %v157 = vld [vmem:[%s61 + $0x10] sm:$0xff]
  %v158 = vld [vmem:[%s61 + $0x18] sm:$0xff]
  %v159 = vld [vmem:[%s63] sm:$0x1]
  %v160 = vld [vmem:[%s65] sm:$0xff]
  %v161 = vld [vmem:[%s65 + $0x8] sm:$0xff]
  %v162 = vld [vmem:[%s65 + $0x10] sm:$0xff]
  %v163 = vld [vmem:[%s65 + $0x18] sm:$0xff]
  %v164 = vld [vmem:[%s67] sm:$0x1]
  %v166 = vperm.slane %v152, 0
  %vm168 = vcmask 523264
  %v170 = vsel %vm168, %v142, 0
  %172 = vmatpush.msra.mxu0 0.0
  %173 = vmatpush.msra.mxu0 0.0
  %174 = vmatpush.msra.mxu0 0.0
  %175 = vmatpush.msra.mxu0 0.0
  %176 = vmatpush.msra.mxu0 0.0
  %177 = vmatpush.msra.mxu0 0.0
  %178 = vmatpush.msra.mxu0 0.0
  %179 = vmatpush.msra.mxu0 0.0
  %180 = vmatpush.msra.mxu0 %v151
  %181 = vmatpush.msra.mxu0 %v150
  %182 = vmatpush.msra.mxu0 %v149
  %183 = vmatpush.msra.mxu0 %v148
  %184 = vmatpush.msra.mxu0 %v147
  %185 = vmatpush.msra.mxu0 %v146
  %186 = vmatpush.msra.mxu0 %v145
  %187 = vmatpush.msra.mxu0 %v144
  %188 = vmatmul.f32.gmra.mxu0 %v170
  %v189 = vpop.f32.mrf.mxu0
  %v190 = vadd.f32 %v166, %v189
  %191 = vdwg.mxu0
  %v192 = vadd.f32 %v190, %v143
  %v193 = vld [vmem:[%s9] sm:$0x1]
  %v194 = vld [vmem:[%s11] sm:$0x1]
  %vm195 = vcmask 261120
  %v196 = vsel %vm195, %v192, 0.0
  %197 = vadd.xlane.f32.xlu0 %v196
  %v198 = vpop.xlane.xlu0 %197
  %v199 = vrcp.pop 32.0
  %v200 = vmul.f32 32.0, %v199
  %v201 = vsub.f32 1.0, %v200
  %v202 = vmul.f32 %v199, %v201
  %v203 = vadd.f32 %v199, %v202
  %vm204 = vweird.f32 %v199
  %v205 = vsel %vm204, %v199, %v203
  %v206 = vmul.f32 %v198, %v205
  %v207 = vsub.f32 %v192, %v206
  %v208 = vmul.f32 %v207, %v207
  %v209 = vsel %vm195, %v208, 0.0
  %210 = vadd.xlane.f32.xlu0 %v209
  %v211 = vpop.xlane.xlu0 %210
  %v212 = vmul.f32 %v211, %v205
  %v213 = vadd.f32 %v212, 1e-06
  %v214 = vrsqrt.pop %v213
  %v215 = vmul.f32 %v214, %v213
  %v216 = vmul.f32 %v215, %v214
  %v217 = vmul.f32 0.5, %v216
  %v218 = vsub.f32 1.5, %v217
  %v219 = vmul.f32 %v214, %v218
  %vm220 = vweird.f32 %v213
  %vm221 = vweird.f32 %v214
  %vm222 = vmor %vm220, %vm221
  %v223 = vsel %vm222, %v214, %v219
  %v224 = vmul.f32 %v207, %v223
  %v226 = vperm.slane %v193, 0
  %v228 = vmul.f32 %v224, %v226
  %v230 = vperm.slane %v194, 0
  %v232 = vadd.f32 %v228, %v230
  %v233 = vld [vmem:[%s13] sm:$0xff]
  %v234 = vld [vmem:[%s13 + $0x8] sm:$0xff]
  %v235 = vld [vmem:[%s13 + $0x10] sm:$0xff]
  %v236 = vld [vmem:[%s13 + $0x18] sm:$0xff]
  %v237 = vld [vmem:[%s15] sm:$0x1]
  %v239 = vperm.slane %v237, 0
  %v242 = vsel %vm195, %v232, 0
  %244 = vmatpush.msra.mxu0 0.0
  %245 = vmatpush.msra.mxu0 0.0
  %246 = vmatpush.msra.mxu0 0.0
  %247 = vmatpush.msra.mxu0 0.0
  %248 = vmatpush.msra.mxu0 0.0
  %249 = vmatpush.msra.mxu0 0.0
  %250 = vmatpush.msra.mxu0 0.0
  %251 = vmatpush.msra.mxu0 0.0
  %252 = vmatpush.msra.mxu0 0.0
  %253 = vmatpush.msra.mxu0 0.0
  %254 = vmatpush.msra.mxu0 0.0
  %255 = vmatpush.msra.mxu0 0.0
  %256 = vmatpush.msra.mxu0 %v236
  %257 = vmatpush.msra.mxu0 %v235
  %258 = vmatpush.msra.mxu0 %v234
  %259 = vmatpush.msra.mxu0 %v233
  %260 = vmatmul.f32.gmra.mxu0 %v242
  %v261 = vpop.f32.mrf.mxu0
  %v262 = vadd.f32 %v239, %v261
  %263 = vdwg.mxu0
  %265 = vrot.lane.b32.xlu0 %v262, 96
  %v266 = vpop.permute.xlu0 %265
  %vm267 = vcmask 64512
  %v268 = vsel %vm267, %v262, 0
  %v270 = vsel %vm267, %v266, 0
  %272 = vmatpush.xpose.msra.mxu0 0.0
  %273 = vmatpush.xpose.msra.mxu0 0.0
  %274 = vmatpush.xpose.msra.mxu0 0.0
  %275 = vmatpush.xpose.msra.mxu0 0.0
  %276 = vmatpush.xpose.msra.mxu0 0.0
  %277 = vmatpush.xpose.msra.mxu0 0.0
  %278 = vmatpush.xpose.msra.mxu0 0.0
  %279 = vmatpush.xpose.msra.mxu0 0.0
  %280 = vmatpush.xpose.msra.mxu0 0.0
  %281 = vmatpush.xpose.msra.mxu0 0.0
  %282 = vmatpush.xpose.msra.mxu0 0.0
  %283 = vmatpush.xpose.msra.mxu0 0.0
  %284 = vmatpush.xpose.msra.mxu0 0.0
  %285 = vmatpush.xpose.msra.mxu0 0.0
  %286 = vmatpush.xpose.msra.mxu0 0.0
  %287 = vmatpush.xpose.msra.mxu0 %v270
  %288 = vmatmul.f32.gmra.mxu0 %v268
  %v289 = vpop.f32.mrf.mxu0
  %v290 = vadd.f32 0.0, %v289
  %291 = vdwg.mxu0
  %v292 = vmul.f32 %v290, 0.35355338
  %vm293 = vcmask 27648
  %v294 = vsel %vm293, %v292, -inf
  %295 = vmax.xlane.f32.xlu0 %v294
  %v296 = vpop.xlane.xlu0 %295
  %v297 = vsub.f32 %v292, %v296
  %v298 = vmul.f32 %v297, 1.442695
  %v299 = vpow.pop %v298
  %v300 = vsel %vm293, %v299, 0.0
  %301 = vadd.xlane.f32.xlu0 %v300
  %v302 = vpop.xlane.xlu0 %301
  %v303 = vrcp.pop %v302
  %v304 = vmul.f32 %v302, %v303
  %v305 = vsub.f32 1.0, %v304
  %v306 = vmul.f32 %v303, %v305
  %v307 = vadd.f32 %v303, %v306
  %vm308 = vweird.f32 %v302
  %vm309 = vweird.f32 %v303
  %vm310 = vmor %vm308, %vm309
  %v311 = vsel %vm310, %v303, %v307
  %v312 = vand.u32 2147483647, %v302
  %vm313 = vcmp.eq.f32.partialorder %v312, 8.507059e+37
  %v314 = vand.u32 %v302, 2147483648
  %v315 = vor.u32 1.1754944e-38, %v314
  %v316 = vsel %vm313, %v315, %v311
  %v317 = vmul.f32 %v299, %v316
  %318 = vrot.lane.b32.xlu0 %v262, 64
  %v319 = vpop.permute.xlu0 %318
  %vm320 = vcmask 31744
  %v322 = vsel %vm320, %v317, 0
  %vm324 = vcmask 1043456
  %v325 = vsel %vm324, %v319, 0
  %327 = vmatpush.msra.mxu0 0.0
  %328 = vmatpush.msra.mxu0 0.0
  %329 = vmatpush.msra.mxu0 0.0
  %330 = vmatpush.msra.mxu0 0.0
  %331 = vmatpush.msra.mxu0 0.0
  %332 = vmatpush.msra.mxu0 0.0
  %333 = vmatpush.msra.mxu0 0.0
  %334 = vmatpush.msra.mxu0 0.0
  %335 = vmatpush.msra.mxu0 0.0
  %336 = vmatpush.msra.mxu0 0.0
  %337 = vmatpush.msra.mxu0 0.0
  %338 = vmatpush.msra.mxu0 0.0
  %339 = vmatpush.msra.mxu0 0.0
  %340 = vmatpush.msra.mxu0 0.0
  %341 = vmatpush.msra.mxu0 0.0
  %342 = vmatpush.msra.mxu0 %v325
  %343 = vmatmul.f32.gmra.mxu0 %v322
  %v344 = vpop.f32.mrf.mxu0
  %v345 = vadd.f32 0.0, %v344
  %346 = vdwg.mxu0
  %vm347 = vcmask 60416
  %348 = vst.msk [vmem:[#allocation2] sm:$0xf] %vm347, %v345
  %349 = vrot.lane.b32.xlu0 %v262, 120
  %v350 = vpop.permute.xlu0 %349
  %351 = vrot.lane.b32.xlu0 %v262, 88
  %v352 = vpop.permute.xlu0 %351
  %v353 = vsel %vm267, %v350, 0
  %v355 = vsel %vm267, %v352, 0
  %357 = vmatpush.xpose.msra.mxu0 0.0
  %358 = vmatpush.xpose.msra.mxu0 0.0
  %359 = vmatpush.xpose.msra.mxu0 0.0
  %360 = vmatpush.xpose.msra.mxu0 0.0
  %361 = vmatpush.xpose.msra.mxu0 0.0
  %362 = vmatpush.xpose.msra.mxu0 0.0
  %363 = vmatpush.xpose.msra.mxu0 0.0
  %364 = vmatpush.xpose.msra.mxu0 0.0
  %365 = vmatpush.xpose.msra.mxu0 0.0
  %366 = vmatpush.xpose.msra.mxu0 0.0
  %367 = vmatpush.xpose.msra.mxu0 0.0
  %368 = vmatpush.xpose.msra.mxu0 0.0
  %369 = vmatpush.xpose.msra.mxu0 0.0
  %370 = vmatpush.xpose.msra.mxu0 0.0
  %371 = vmatpush.xpose.msra.mxu0 0.0
  %372 = vmatpush.xpose.msra.mxu0 %v355
  %373 = vmatmul.f32.gmra.mxu0 %v353
  %v374 = vpop.f32.mrf.mxu0
  %v375 = vadd.f32 0.0, %v374
  %376 = vdwg.mxu0
  %v377 = vmul.f32 %v375, 0.35355338
  %v378 = vsel %vm293, %v377, -inf
  %379 = vmax.xlane.f32.xlu0 %v378
  %v380 = vpop.xlane.xlu0 %379
  %v381 = vsub.f32 %v377, %v380
  %v382 = vmul.f32 %v381, 1.442695
  %v383 = vpow.pop %v382
  %v384 = vsel %vm293, %v383, 0.0
  %385 = vadd.xlane.f32.xlu0 %v384
  %v386 = vpop.xlane.xlu0 %385
  %v387 = vrcp.pop %v386
  %v388 = vmul.f32 %v386, %v387
  %v389 = vsub.f32 1.0, %v388
  %v390 = vmul.f32 %v387, %v389
  %v391 = vadd.f32 %v387, %v390
  %vm392 = vweird.f32 %v386
  %vm393 = vweird.f32 %v387
  %vm394 = vmor %vm392, %vm393
  %v395 = vsel %vm394, %v387, %v391
  %v396 = vand.u32 2147483647, %v386
  %vm397 = vcmp.eq.f32.partialorder %v396, 8.507059e+37
  %v398 = vand.u32 %v386, 2147483648
  %v399 = vor.u32 1.1754944e-38, %v398
  %v400 = vsel %vm397, %v399, %v395
  %v401 = vmul.f32 %v383, %v400
  %402 = vrot.lane.b32.xlu0 %v262, 56
  %v403 = vpop.permute.xlu0 %402
  %v405 = vsel %vm320, %v401, 0
  %v407 = vsel %vm324, %v403, 0
  %409 = vmatpush.msra.mxu0 0.0
  %410 = vmatpush.msra.mxu0 0.0
  %411 = vmatpush.msra.mxu0 0.0
  %412 = vmatpush.msra.mxu0 0.0
  %413 = vmatpush.msra.mxu0 0.0
  %414 = vmatpush.msra.mxu0 0.0
  %415 = vmatpush.msra.mxu0 0.0
  %416 = vmatpush.msra.mxu0 0.0
  %417 = vmatpush.msra.mxu0 0.0
  %418 = vmatpush.msra.mxu0 0.0
  %419 = vmatpush.msra.mxu0 0.0
  %420 = vmatpush.msra.mxu0 0.0
  %421 = vmatpush.msra.mxu0 0.0
  %422 = vmatpush.msra.mxu0 0.0
  %423 = vmatpush.msra.mxu0 0.0
  %424 = vmatpush.msra.mxu0 %v407
  %425 = vmatmul.f32.gmra.mxu0 %v405
  %v426 = vpop.f32.mrf.mxu0
  %v427 = vadd.f32 0.0, %v426
  %428 = vdwg.mxu0
  %430 = vrot.lane.b32.xlu0 %v427, 8
  %v431 = vpop.permute.xlu0 %430
  %vm433 = vcmask 126016
  %434 = vst.msk [vmem:[#allocation2] sm:$0xf] %vm433, %v431
  %435 = vrot.lane.b32.xlu0 %v262, 112
  %v436 = vpop.permute.xlu0 %435
  %437 = vrot.lane.b32.xlu0 %v262, 80
  %v438 = vpop.permute.xlu0 %437
  %v439 = vsel %vm267, %v436, 0
  %v441 = vsel %vm267, %v438, 0
  %443 = vmatpush.xpose.msra.mxu0 0.0
  %444 = vmatpush.xpose.msra.mxu0 0.0
  %445 = vmatpush.xpose.msra.mxu0 0.0
  %446 = vmatpush.xpose.msra.mxu0 0.0
  %447 = vmatpush.xpose.msra.mxu0 0.0
  %448 = vmatpush.xpose.msra.mxu0 0.0
  %449 = vmatpush.xpose.msra.mxu0 0.0
  %450 = vmatpush.xpose.msra.mxu0 0.0
  %451 = vmatpush.xpose.msra.mxu0 0.0
  %452 = vmatpush.xpose.msra.mxu0 0.0
  %453 = vmatpush.xpose.msra.mxu0 0.0
  %454 = vmatpush.xpose.msra.mxu0 0.0
  %455 = vmatpush.xpose.msra.mxu0 0.0
  %456 = vmatpush.xpose.msra.mxu0 0.0
  %457 = vmatpush.xpose.msra.mxu0 0.0
  %458 = vmatpush.xpose.msra.mxu0 %v441
  %459 = vmatmul.f32.gmra.mxu0 %v439
  %v460 = vpop.f32.mrf.mxu0
  %v461 = vadd.f32 0.0, %v460
  %462 = vdwg.mxu0
  %v463 = vmul.f32 %v461, 0.35355338
  %v464 = vsel %vm293, %v463, -inf
  %465 = vmax.xlane.f32.xlu0 %v464
  %v466 = vpop.xlane.xlu0 %465
  %v467 = vsub.f32 %v463, %v466
  %v468 = vmul.f32 %v467, 1.442695
  %v469 = vpow.pop %v468
  %v470 = vsel %vm293, %v469, 0.0
  %471 = vadd.xlane.f32.xlu0 %v470
  %v472 = vpop.xlane.xlu0 %471
  %v473 = vrcp.pop %v472
  %v474 = vmul.f32 %v472, %v473
  %v475 = vsub.f32 1.0, %v474
  %v476 = vmul.f32 %v473, %v475
  %v477 = vadd.f32 %v473, %v476
  %vm478 = vweird.f32 %v472
  %vm479 = vweird.f32 %v473
  %vm480 = vmor %vm478, %vm479
  %v481 = vsel %vm480, %v473, %v477
  %v482 = vand.u32 2147483647, %v472
  %vm483 = vcmp.eq.f32.partialorder %v482, 8.507059e+37
  %v484 = vand.u32 %v472, 2147483648
  %v485 = vor.u32 1.1754944e-38, %v484
  %v486 = vsel %vm483, %v485, %v481
  %v487 = vmul.f32 %v469, %v486
  %488 = vrot.lane.b32.xlu0 %v262, 48
  %v489 = vpop.permute.xlu0 %488
  %v491 = vsel %vm320, %v487, 0
  %v493 = vsel %vm324, %v489, 0
  %495 = vmatpush.msra.mxu0 0.0
  %496 = vmatpush.msra.mxu0 0.0
  %497 = vmatpush.msra.mxu0 0.0
  %498 = vmatpush.msra.mxu0 0.0
  %499 = vmatpush.msra.mxu0 0.0
  %500 = vmatpush.msra.mxu0 0.0
  %501 = vmatpush.msra.mxu0 0.0
  %502 = vmatpush.msra.mxu0 0.0
  %503 = vmatpush.msra.mxu0 0.0
  %504 = vmatpush.msra.mxu0 0.0
  %505 = vmatpush.msra.mxu0 0.0
  %506 = vmatpush.msra.mxu0 0.0
  %507 = vmatpush.msra.mxu0 0.0
  %508 = vmatpush.msra.mxu0 0.0
  %509 = vmatpush.msra.mxu0 0.0
  %510 = vmatpush.msra.mxu0 %v493
  %511 = vmatmul.f32.gmra.mxu0 %v491
  %v512 = vpop.f32.mrf.mxu0
  %v513 = vadd.f32 0.0, %v512
  %514 = vdwg.mxu0
  %516 = vrot.lane.b32.xlu0 %v513, 16
  %v517 = vpop.permute.xlu0 %516
  %vm519 = vcmask 191616
  %520 = vst.msk [vmem:[#allocation2] sm:$0xf] %vm519, %v517
  %521 = vrot.lane.b32.xlu0 %v262, 104
  %v522 = vpop.permute.xlu0 %521
  %523 = vrot.lane.b32.xlu0 %v262, 72
  %v524 = vpop.permute.xlu0 %523
  %v525 = vsel %vm267, %v522, 0
  %v527 = vsel %vm267, %v524, 0
  %529 = vmatpush.xpose.msra.mxu0 0.0
  %530 = vmatpush.xpose.msra.mxu0 0.0
  %531 = vmatpush.xpose.msra.mxu0 0.0
  %532 = vmatpush.xpose.msra.mxu0 0.0
  %533 = vmatpush.xpose.msra.mxu0 0.0
  %534 = vmatpush.xpose.msra.mxu0 0.0
  %535 = vmatpush.xpose.msra.mxu0 0.0
  %536 = vmatpush.xpose.msra.mxu0 0.0
  %537 = vmatpush.xpose.msra.mxu0 0.0
  %538 = vmatpush.xpose.msra.mxu0 0.0
  %539 = vmatpush.xpose.msra.mxu0 0.0
  %540 = vmatpush.xpose.msra.mxu0 0.0
  %541 = vmatpush.xpose.msra.mxu0 0.0
  %542 = vmatpush.xpose.msra.mxu0 0.0
  %543 = vmatpush.xpose.msra.mxu0 0.0
  %544 = vmatpush.xpose.msra.mxu0 %v527
  %545 = vmatmul.f32.gmra.mxu0 %v525
  %v546 = vpop.f32.mrf.mxu0
  %v547 = vadd.f32 0.0, %v546
  %548 = vdwg.mxu0
  %v549 = vmul.f32 %v547, 0.35355338
  %v550 = vsel %vm293, %v549, -inf
  %551 = vmax.xlane.f32.xlu0 %v550
  %v552 = vpop.xlane.xlu0 %551
  %v553 = vsub.f32 %v549, %v552
  %v554 = vmul.f32 %v553, 1.442695
  %v555 = vpow.pop %v554
  %v556 = vsel %vm293, %v555, 0.0
  %557 = vadd.xlane.f32.xlu0 %v556
  %v558 = vpop.xlane.xlu0 %557
  %v559 = vrcp.pop %v558
  %v560 = vmul.f32 %v558, %v559
  %v561 = vsub.f32 1.0, %v560
  %v562 = vmul.f32 %v559, %v561
  %v563 = vadd.f32 %v559, %v562
  %vm564 = vweird.f32 %v558
  %vm565 = vweird.f32 %v559
  %vm566 = vmor %vm564, %vm565
  %v567 = vsel %vm566, %v559, %v563
  %v568 = vand.u32 2147483647, %v558
  %vm569 = vcmp.eq.f32.partialorder %v568, 8.507059e+37
  %v570 = vand.u32 %v558, 2147483648
  %v571 = vor.u32 1.1754944e-38, %v570
  %v572 = vsel %vm569, %v571, %v567
  %v573 = vmul.f32 %v555, %v572
  %574 = vrot.lane.b32.xlu0 %v262, 40
  %v575 = vpop.permute.xlu0 %574
  %v577 = vsel %vm320, %v573, 0
  %v579 = vsel %vm324, %v575, 0
  %581 = vmatpush.msra.mxu0 0.0
  %582 = vmatpush.msra.mxu0 0.0
  %583 = vmatpush.msra.mxu0 0.0
  %584 = vmatpush.msra.mxu0 0.0
  %585 = vmatpush.msra.mxu0 0.0
  %586 = vmatpush.msra.mxu0 0.0
  %587 = vmatpush.msra.mxu0 0.0
  %588 = vmatpush.msra.mxu0 0.0
  %589 = vmatpush.msra.mxu0 0.0
  %590 = vmatpush.msra.mxu0 0.0
  %591 = vmatpush.msra.mxu0 0.0
  %592 = vmatpush.msra.mxu0 0.0
  %593 = vmatpush.msra.mxu0 0.0
  %594 = vmatpush.msra.mxu0 0.0
  %595 = vmatpush.msra.mxu0 0.0
  %596 = vmatpush.msra.mxu0 %v579
  %597 = vmatmul.f32.gmra.mxu0 %v577
  %v598 = vpop.f32.mrf.mxu0
  %v599 = vadd.f32 0.0, %v598
  %600 = vdwg.mxu0
  %602 = vrot.lane.b32.xlu0 %v599, 24
  %v603 = vpop.permute.xlu0 %602
  %vm605 = vcmask 257216
  %606 = vst.msk [vmem:[#allocation2] sm:$0xf] %vm605, %v603
  %v607 = vrot.slane %v262, 4
  %608 = vrot.lane.b32.xlu0 %v607, 96
  %v609 = vpop.permute.xlu0 %608
  %v610 = vsel %vm267, %v607, 0
  %v612 = vsel %vm267, %v609, 0
  %614 = vmatpush.xpose.msra.mxu0 0.0
  %615 = vmatpush.xpose.msra.mxu0 0.0
  %616 = vmatpush.xpose.msra.mxu0 0.0
  %617 = vmatpush.xpose.msra.mxu0 0.0
  %618 = vmatpush.xpose.msra.mxu0 0.0
  %619 = vmatpush.xpose.msra.mxu0 0.0
  %620 = vmatpush.xpose.msra.mxu0 0.0
  %621 = vmatpush.xpose.msra.mxu0 0.0
  %622 = vmatpush.xpose.msra.mxu0 0.0
  %623 = vmatpush.xpose.msra.mxu0 0.0
  %624 = vmatpush.xpose.msra.mxu0 0.0
  %625 = vmatpush.xpose.msra.mxu0 0.0
  %626 = vmatpush.xpose.msra.mxu0 0.0
  %627 = vmatpush.xpose.msra.mxu0 0.0
  %628 = vmatpush.xpose.msra.mxu0 0.0
  %629 = vmatpush.xpose.msra.mxu0 %v612
  %630 = vmatmul.f32.gmra.mxu0 %v610
  %v631 = vpop.f32.mrf.mxu0
  %v632 = vadd.f32 0.0, %v631
  %633 = vdwg.mxu0
  %v634 = vmul.f32 %v632, 0.35355338
  %v635 = vsel %vm293, %v634, -inf
  %636 = vmax.xlane.f32.xlu0 %v635
  %v637 = vpop.xlane.xlu0 %636
  %v638 = vsub.f32 %v634, %v637
  %v639 = vmul.f32 %v638, 1.442695
  %v640 = vpow.pop %v639
  %v641 = vsel %vm293, %v640, 0.0
  %642 = vadd.xlane.f32.xlu0 %v641
  %v643 = vpop.xlane.xlu0 %642
  %v644 = vrcp.pop %v643
  %v645 = vmul.f32 %v643, %v644
  %v646 = vsub.f32 1.0, %v645
  %v647 = vmul.f32 %v644, %v646
  %v648 = vadd.f32 %v644, %v647
  %vm649 = vweird.f32 %v643
  %vm650 = vweird.f32 %v644
  %vm651 = vmor %vm649, %vm650
  %v652 = vsel %vm651, %v644, %v648
  %v653 = vand.u32 2147483647, %v643
  %vm654 = vcmp.eq.f32.partialorder %v653, 8.507059e+37
  %v655 = vand.u32 %v643, 2147483648
  %v656 = vor.u32 1.1754944e-38, %v655
  %v657 = vsel %vm654, %v656, %v652
  %v658 = vmul.f32 %v640, %v657
  %659 = vrot.lane.b32.xlu0 %v607, 64
  %v660 = vpop.permute.xlu0 %659
  %v662 = vsel %vm320, %v658, 0
  %v664 = vsel %vm324, %v660, 0
  %666 = vmatpush.msra.mxu0 0.0
  %667 = vmatpush.msra.mxu0 0.0
  %668 = vmatpush.msra.mxu0 0.0
  %669 = vmatpush.msra.mxu0 0.0
  %670 = vmatpush.msra.mxu0 0.0
  %671 = vmatpush.msra.mxu0 0.0
  %672 = vmatpush.msra.mxu0 0.0
  %673 = vmatpush.msra.mxu0 0.0
  %674 = vmatpush.msra.mxu0 0.0
  %675 = vmatpush.msra.mxu0 0.0
  %676 = vmatpush.msra.mxu0 0.0
  %677 = vmatpush.msra.mxu0 0.0
  %678 = vmatpush.msra.mxu0 0.0
  %679 = vmatpush.msra.mxu0 0.0
  %680 = vmatpush.msra.mxu0 0.0
  %681 = vmatpush.msra.mxu0 %v664
  %682 = vmatmul.f32.gmra.mxu0 %v662
  %v683 = vpop.f32.mrf.mxu0
  %v684 = vadd.f32 0.0, %v683
  %685 = vdwg.mxu0
  %686 = vst.msk [vmem:[#allocation2 + $0x4] sm:$0xf] %vm347, %v684
  %687 = vrot.lane.b32.xlu0 %v607, 120
  %v688 = vpop.permute.xlu0 %687
  %689 = vrot.lane.b32.xlu0 %v607, 88
  %v690 = vpop.permute.xlu0 %689
  %v691 = vsel %vm267, %v688, 0
  %v693 = vsel %vm267, %v690, 0
  %695 = vmatpush.xpose.msra.mxu0 0.0
  %696 = vmatpush.xpose.msra.mxu0 0.0
  %697 = vmatpush.xpose.msra.mxu0 0.0
  %698 = vmatpush.xpose.msra.mxu0 0.0
  %699 = vmatpush.xpose.msra.mxu0 0.0
  %700 = vmatpush.xpose.msra.mxu0 0.0
  %701 = vmatpush.xpose.msra.mxu0 0.0
  %702 = vmatpush.xpose.msra.mxu0 0.0
  %703 = vmatpush.xpose.msra.mxu0 0.0
  %704 = vmatpush.xpose.msra.mxu0 0.0
  %705 = vmatpush.xpose.msra.mxu0 0.0
  %706 = vmatpush.xpose.msra.mxu0 0.0
  %707 = vmatpush.xpose.msra.mxu0 0.0
  %708 = vmatpush.xpose.msra.mxu0 0.0
  %709 = vmatpush.xpose.msra.mxu0 0.0
  %710 = vmatpush.xpose.msra.mxu0 %v693
  %711 = vmatmul.f32.gmra.mxu0 %v691
  %v712 = vpop.f32.mrf.mxu0
  %v713 = vadd.f32 0.0, %v712
  %714 = vdwg.mxu0
  %v715 = vmul.f32 %v713, 0.35355338
  %v716 = vsel %vm293, %v715, -inf
  %717 = vmax.xlane.f32.xlu0 %v716
  %v718 = vpop.xlane.xlu0 %717
  %v719 = vsub.f32 %v715, %v718
  %v720 = vmul.f32 %v719, 1.442695
  %v721 = vpow.pop %v720
  %v722 = vsel %vm293, %v721, 0.0
  %723 = vadd.xlane.f32.xlu0 %v722
  %v724 = vpop.xlane.xlu0 %723
  %v725 = vrcp.pop %v724
  %v726 = vmul.f32 %v724, %v725
  %v727 = vsub.f32 1.0, %v726
  %v728 = vmul.f32 %v725, %v727
  %v729 = vadd.f32 %v725, %v728
  %vm730 = vweird.f32 %v724
  %vm731 = vweird.f32 %v725
  %vm732 = vmor %vm730, %vm731
  %v733 = vsel %vm732, %v725, %v729
  %v734 = vand.u32 2147483647, %v724
  %vm735 = vcmp.eq.f32.partialorder %v734, 8.507059e+37
  %v736 = vand.u32 %v724, 2147483648
  %v737 = vor.u32 1.1754944e-38, %v736
  %v738 = vsel %vm735, %v737, %v733
  %v739 = vmul.f32 %v721, %v738
  %740 = vrot.lane.b32.xlu0 %v607, 56
  %v741 = vpop.permute.xlu0 %740
  %v743 = vsel %vm320, %v739, 0
  %v745 = vsel %vm324, %v741, 0
  %747 = vmatpush.msra.mxu0 0.0
  %748 = vmatpush.msra.mxu0 0.0
  %749 = vmatpush.msra.mxu0 0.0
  %750 = vmatpush.msra.mxu0 0.0
  %751 = vmatpush.msra.mxu0 0.0
  %752 = vmatpush.msra.mxu0 0.0
  %753 = vmatpush.msra.mxu0 0.0
  %754 = vmatpush.msra.mxu0 0.0
  %755 = vmatpush.msra.mxu0 0.0
  %756 = vmatpush.msra.mxu0 0.0
  %757 = vmatpush.msra.mxu0 0.0
  %758 = vmatpush.msra.mxu0 0.0
  %759 = vmatpush.msra.mxu0 0.0
  %760 = vmatpush.msra.mxu0 0.0
  %761 = vmatpush.msra.mxu0 0.0
  %762 = vmatpush.msra.mxu0 %v745
  %763 = vmatmul.f32.gmra.mxu0 %v743
  %v764 = vpop.f32.mrf.mxu0
  %v765 = vadd.f32 0.0, %v764
  %766 = vdwg.mxu0
  %768 = vrot.lane.b32.xlu0 %v765, 8
  %v769 = vpop.permute.xlu0 %768
  %771 = vst.msk [vmem:[#allocation2 + $0x4] sm:$0xf] %vm433, %v769
  %772 = vrot.lane.b32.xlu0 %v607, 112
  %v773 = vpop.permute.xlu0 %772
  %774 = vrot.lane.b32.xlu0 %v607, 80
  %v775 = vpop.permute.xlu0 %774
  %v776 = vsel %vm267, %v773, 0
  %v778 = vsel %vm267, %v775, 0
  %780 = vmatpush.xpose.msra.mxu0 0.0
  %781 = vmatpush.xpose.msra.mxu0 0.0
  %782 = vmatpush.xpose.msra.mxu0 0.0
  %783 = vmatpush.xpose.msra.mxu0 0.0
  %784 = vmatpush.xpose.msra.mxu0 0.0
  %785 = vmatpush.xpose.msra.mxu0 0.0
  %786 = vmatpush.xpose.msra.mxu0 0.0
  %787 = vmatpush.xpose.msra.mxu0 0.0
  %788 = vmatpush.xpose.msra.mxu0 0.0
  %789 = vmatpush.xpose.msra.mxu0 0.0
  %790 = vmatpush.xpose.msra.mxu0 0.0
  %791 = vmatpush.xpose.msra.mxu0 0.0
  %792 = vmatpush.xpose.msra.mxu0 0.0
  %793 = vmatpush.xpose.msra.mxu0 0.0
  %794 = vmatpush.xpose.msra.mxu0 0.0
  %795 = vmatpush.xpose.msra.mxu0 %v778
  %796 = vmatmul.f32.gmra.mxu0 %v776
  %v797 = vpop.f32.mrf.mxu0
  %v798 = vadd.f32 0.0, %v797
  %799 = vdwg.mxu0
  %v800 = vmul.f32 %v798, 0.35355338
  %v801 = vsel %vm293, %v800, -inf
  %802 = vmax.xlane.f32.xlu0 %v801
  %v803 = vpop.xlane.xlu0 %802
  %v804 = vsub.f32 %v800, %v803
  %v805 = vmul.f32 %v804, 1.442695
  %v806 = vpow.pop %v805
  %v807 = vsel %vm293, %v806, 0.0
  %808 = vadd.xlane.f32.xlu0 %v807
  %v809 = vpop.xlane.xlu0 %808
  %v810 = vrcp.pop %v809
  %v811 = vmul.f32 %v809, %v810
  %v812 = vsub.f32 1.0, %v811
  %v813 = vmul.f32 %v810, %v812
  %v814 = vadd.f32 %v810, %v813
  %vm815 = vweird.f32 %v809
  %vm816 = vweird.f32 %v810
  %vm817 = vmor %vm815, %vm816
  %v818 = vsel %vm817, %v810, %v814
  %v819 = vand.u32 2147483647, %v809
  %vm820 = vcmp.eq.f32.partialorder %v819, 8.507059e+37
  %v821 = vand.u32 %v809, 2147483648
  %v822 = vor.u32 1.1754944e-38, %v821
  %v823 = vsel %vm820, %v822, %v818
  %v824 = vmul.f32 %v806, %v823
  %825 = vrot.lane.b32.xlu0 %v607, 48
  %v826 = vpop.permute.xlu0 %825
  %v828 = vsel %vm320, %v824, 0
  %v830 = vsel %vm324, %v826, 0
  %832 = vmatpush.msra.mxu0 0.0
  %833 = vmatpush.msra.mxu0 0.0
  %834 = vmatpush.msra.mxu0 0.0
  %835 = vmatpush.msra.mxu0 0.0
  %836 = vmatpush.msra.mxu0 0.0
  %837 = vmatpush.msra.mxu0 0.0
  %838 = vmatpush.msra.mxu0 0.0
  %839 = vmatpush.msra.mxu0 0.0
  %840 = vmatpush.msra.mxu0 0.0
  %841 = vmatpush.msra.mxu0 0.0
  %842 = vmatpush.msra.mxu0 0.0
  %843 = vmatpush.msra.mxu0 0.0
  %844 = vmatpush.msra.mxu0 0.0
  %845 = vmatpush.msra.mxu0 0.0
  %846 = vmatpush.msra.mxu0 0.0
  %847 = vmatpush.msra.mxu0 %v830
  %848 = vmatmul.f32.gmra.mxu0 %v828
  %v849 = vpop.f32.mrf.mxu0
  %v850 = vadd.f32 0.0, %v849
  %851 = vdwg.mxu0
  %853 = vrot.lane.b32.xlu0 %v850, 16
  %v854 = vpop.permute.xlu0 %853
  %856 = vst.msk [vmem:[#allocation2 + $0x4] sm:$0xf] %vm519, %v854
  %857 = vrot.lane.b32.xlu0 %v607, 104
  %v858 = vpop.permute.xlu0 %857
  %859 = vrot.lane.b32.xlu0 %v607, 72
  %v860 = vpop.permute.xlu0 %859
  %v861 = vsel %vm267, %v858, 0
  %v863 = vsel %vm267, %v860, 0
  %865 = vmatpush.xpose.msra.mxu0 0.0
  %866 = vmatpush.xpose.msra.mxu0 0.0
  %867 = vmatpush.xpose.msra.mxu0 0.0
  %868 = vmatpush.xpose.msra.mxu0 0.0
  %869 = vmatpush.xpose.msra.mxu0 0.0
  %870 = vmatpush.xpose.msra.mxu0 0.0
  %871 = vmatpush.xpose.msra.mxu0 0.0
  %872 = vmatpush.xpose.msra.mxu0 0.0
  %873 = vmatpush.xpose.msra.mxu0 0.0
  %874 = vmatpush.xpose.msra.mxu0 0.0
  %875 = vmatpush.xpose.msra.mxu0 0.0
  %876 = vmatpush.xpose.msra.mxu0 0.0
  %877 = vmatpush.xpose.msra.mxu0 0.0
  %878 = vmatpush.xpose.msra.mxu0 0.0
  %879 = vmatpush.xpose.msra.mxu0 0.0
  %880 = vmatpush.xpose.msra.mxu0 %v863
  %881 = vmatmul.f32.gmra.mxu0 %v861
  %v882 = vpop.f32.mrf.mxu0
  %v883 = vadd.f32 0.0, %v882
  %884 = vdwg.mxu0
  %v885 = vmul.f32 %v883, 0.35355338
  %v886 = vsel %vm293, %v885, -inf
  %887 = vmax.xlane.f32.xlu0 %v886
  %v888 = vpop.xlane.xlu0 %887
  %v889 = vsub.f32 %v885, %v888
  %v890 = vmul.f32 %v889, 1.442695
  %v891 = vpow.pop %v890
  %v892 = vsel %vm293, %v891, 0.0
  %893 = vadd.xlane.f32.xlu0 %v892
  %v894 = vpop.xlane.xlu0 %893
  %v895 = vrcp.pop %v894
  %v896 = vmul.f32 %v894, %v895
  %v897 = vsub.f32 1.0, %v896
  %v898 = vmul.f32 %v895, %v897
  %v899 = vadd.f32 %v895, %v898
  %vm900 = vweird.f32 %v894
  %vm901 = vweird.f32 %v895
  %vm902 = vmor %vm900, %vm901
  %v903 = vsel %vm902, %v895, %v899
  %v904 = vand.u32 2147483647, %v894
  %vm905 = vcmp.eq.f32.partialorder %v904, 8.507059e+37
  %v906 = vand.u32 %v894, 2147483648
  %v907 = vor.u32 1.1754944e-38, %v906
  %v908 = vsel %vm905, %v907, %v903
  %v909 = vmul.f32 %v891, %v908
  %910 = vrot.lane.b32.xlu0 %v607, 40
  %v911 = vpop.permute.xlu0 %910
  %v913 = vsel %vm320, %v909, 0
  %v915 = vsel %vm324, %v911, 0
  %917 = vmatpush.msra.mxu0 0.0
  %918 = vmatpush.msra.mxu0 0.0
  %919 = vmatpush.msra.mxu0 0.0
  %920 = vmatpush.msra.mxu0 0.0
  %921 = vmatpush.msra.mxu0 0.0
  %922 = vmatpush.msra.mxu0 0.0
  %923 = vmatpush.msra.mxu0 0.0
  %924 = vmatpush.msra.mxu0 0.0
  %925 = vmatpush.msra.mxu0 0.0
  %926 = vmatpush.msra.mxu0 0.0
  %927 = vmatpush.msra.mxu0 0.0
  %928 = vmatpush.msra.mxu0 0.0
  %929 = vmatpush.msra.mxu0 0.0
  %930 = vmatpush.msra.mxu0 0.0
  %931 = vmatpush.msra.mxu0 0.0
  %932 = vmatpush.msra.mxu0 %v915
  %933 = vmatmul.f32.gmra.mxu0 %v913
  %v934 = vpop.f32.mrf.mxu0
  %v935 = vadd.f32 0.0, %v934
  %936 = vdwg.mxu0
  %938 = vrot.lane.b32.xlu0 %v935, 24
  %v939 = vpop.permute.xlu0 %938
  %941 = vst.msk [vmem:[#allocation2 + $0x4] sm:$0xf] %vm605, %v939
  %v942 = vld [vmem:[#allocation2] sm:$0xff]
  %v943 = vld [vmem:[%s17] sm:$0xff]
  %v944 = vld [vmem:[%s17 + $0x8] sm:$0xff]
  %v945 = vld [vmem:[%s17 + $0x10] sm:$0xff]
  %v946 = vld [vmem:[%s17 + $0x18] sm:$0xff]
  %v947 = vld [vmem:[%s19] sm:$0x1]
  %v949 = vperm.slane %v947, 0
  %v952 = vsel %vm195, %v942, 0
  %954 = vmatpush.msra.mxu0 0.0
  %955 = vmatpush.msra.mxu0 0.0
  %956 = vmatpush.msra.mxu0 0.0
  %957 = vmatpush.msra.mxu0 0.0
  %958 = vmatpush.msra.mxu0 0.0
  %959 = vmatpush.msra.mxu0 0.0
  %960 = vmatpush.msra.mxu0 0.0
  %961 = vmatpush.msra.mxu0 0.0
  %962 = vmatpush.msra.mxu0 0.0
  %963 = vmatpush.msra.mxu0 0.0
  %964 = vmatpush.msra.mxu0 0.0
  %965 = vmatpush.msra.mxu0 0.0
  %966 = vmatpush.msra.mxu0 %v946
  %967 = vmatpush.msra.mxu0 %v945
  %968 = vmatpush.msra.mxu0 %v944
  %969 = vmatpush.msra.mxu0 %v943
  %970 = vmatmul.f32.gmra.mxu0 %v952
  %v971 = vpop.f32.mrf.mxu0
  %v972 = vadd.f32 %v949, %v971
  %973 = vdwg.mxu0
  %v974 = vadd.f32 %v192, %v972
  %v975 = vld [vmem:[%s21] sm:$0x1]
  %v976 = vld [vmem:[%s23] sm:$0x1]
  %v977 = vsel %vm195, %v974, 0.0
  %978 = vadd.xlane.f32.xlu0 %v977
  %v979 = vpop.xlane.xlu0 %978
  %v980 = vmul.f32 %v979, %v205
  %v981 = vsub.f32 %v974, %v980
  %v982 = vmul.f32 %v981, %v981
  %v983 = vsel %vm195, %v982, 0.0
  %984 = vadd.xlane.f32.xlu0 %v983
  %v985 = vpop.xlane.xlu0 %984
  %v986 = vmul.f32 %v985, %v205
  %v987 = vadd.f32 %v986, 1e-06
  %v988 = vrsqrt.pop %v987
  %v989 = vmul.f32 %v988, %v987
  %v990 = vmul.f32 %v989, %v988
  %v991 = vmul.f32 0.5, %v990
  %v992 = vsub.f32 1.5, %v991
  %v993 = vmul.f32 %v988, %v992
  %vm994 = vweird.f32 %v987
  %vm995 = vweird.f32 %v988
  %vm996 = vmor %vm994, %vm995
  %v997 = vsel %vm996, %v988, %v993
  %v998 = vmul.f32 %v981, %v997
  %v1000 = vperm.slane %v975, 0
  %v1002 = vmul.f32 %v998, %v1000
  %v1004 = vperm.slane %v976, 0
  %v1006 = vadd.f32 %v1002, %v1004
  %v1007 = vld [vmem:[%s25] sm:$0xff]
  %v1008 = vld [vmem:[%s25 + $0x8] sm:$0xff]
  %v1009 = vld [vmem:[%s25 + $0x10] sm:$0xff]
  %v1010 = vld [vmem:[%s25 + $0x18] sm:$0xff]
  %v1011 = vld [vmem:[%s27] sm:$0x1]
  %v1013 = vperm.slane %v1011, 0
  %v1016 = vsel %vm195, %v1006, 0
  %1018 = vmatpush.msra.mxu0 0.0
  %1019 = vmatpush.msra.mxu0 0.0
  %1020 = vmatpush.msra.mxu0 0.0
  %1021 = vmatpush.msra.mxu0 0.0
  %1022 = vmatpush.msra.mxu0 0.0
  %1023 = vmatpush.msra.mxu0 0.0
  %1024 = vmatpush.msra.mxu0 0.0
  %1025 = vmatpush.msra.mxu0 0.0
  %1026 = vmatpush.msra.mxu0 0.0
  %1027 = vmatpush.msra.mxu0 0.0
  %1028 = vmatpush.msra.mxu0 0.0
  %1029 = vmatpush.msra.mxu0 0.0
  %1030 = vmatpush.msra.mxu0 %v1010
  %1031 = vmatpush.msra.mxu0 %v1009
  %1032 = vmatpush.msra.mxu0 %v1008
  %1033 = vmatpush.msra.mxu0 %v1007
  %1034 = vmatmul.f32.gmra.mxu0 %v1016
  %v1035 = vpop.f32.mrf.mxu0
  %v1036 = vadd.f32 %v1013, %v1035
  %1037 = vdwg.mxu0
  %v1038 = vmul.f32 %v1036, 0.5
  %v1039 = vmul.f32 %v1036, 0.044715
  %v1040 = vmul.f32 %v1039, %v1036
  %v1041 = vmul.f32 %v1040, %v1036
  %v1042 = vadd.f32 %v1036, %v1041
  %v1043 = vmul.f32 %v1042, 0.7978846
  %v1044 = vtanh.pop %v1043
  %v1045 = vadd.f32 %v1044, 1.0
  %v1046 = vmul.f32 %v1038, %v1045
  %v1047 = vld [vmem:[%s29] sm:$0xff]
  %v1048 = vld [vmem:[%s29 + $0x8] sm:$0xff]
  %v1049 = vld [vmem:[%s29 + $0x10] sm:$0xff]
  %v1050 = vld [vmem:[%s29 + $0x18] sm:$0xff]
  %v1051 = vld [vmem:[%s29 + $0x20] sm:$0xff]
  %v1052 = vld [vmem:[%s29 + $0x28] sm:$0xff]
  %v1053 = vld [vmem:[%s29 + $0x30] sm:$0xff]
  %v1054 = vld [vmem:[%s29 + $0x38] sm:$0xff]
  %v1055 = vld [vmem:[%s29 + $0x40] sm:$0xff]
  %v1056 = vld [vmem:[%s29 + $0x48] sm:$0xff]
  %v1057 = vld [vmem:[%s29 + $0x50] sm:$0xff]
  %v1058 = vld [vmem:[%s29 + $0x58] sm:$0xff]
  %v1059 = vld [vmem:[%s29 + $0x60] sm:$0xff]
  %v1060 = vld [vmem:[%s29 + $0x68] sm:$0xff]
  %v1061 = vld [vmem:[%s29 + $0x70] sm:$0xff]
  %v1062 = vld [vmem:[%s29 + $0x78] sm:$0xff]
  %v1063 = vld [vmem:[%s31] sm:$0x1]
  %v1065 = vperm.slane %v1063, 0
  %1067 = vmatpush.msra.mxu0 %v1062
  %1068 = vmatpush.msra.mxu0 %v1061
  %1069 = vmatpush.msra.mxu0 %v1060
  %1070 = vmatpush.msra.mxu0 %v1059
  %1071 = vmatpush.msra.mxu0 %v1058
  %1072 = vmatpush.msra.mxu0 %v1057
  %1073 = vmatpush.msra.mxu0 %v1056
  %1074 = vmatpush.msra.mxu0 %v1055
  %1075 = vmatpush.msra.mxu0 %v1054
  %1076 = vmatpush.msra.mxu0 %v1053
  %1077 = vmatpush.msra.mxu0 %v1052
  %1078 = vmatpush.msra.mxu0 %v1051
  %1079 = vmatpush.msra.mxu0 %v1050
  %1080 = vmatpush.msra.mxu0 %v1049
  %1081 = vmatpush.msra.mxu0 %v1048
  %1082 = vmatpush.msra.mxu0 %v1047
  %1083 = vmatmul.f32.gmra.mxu0 %v1046
  %v1084 = vpop.f32.mrf.mxu0
  %v1085 = vadd.f32 %v1065, %v1084
  %1086 = vdwg.mxu0
  %v1087 = vadd.f32 %v974, %v1085
  %v1088 = vld [vmem:[%s33] sm:$0x1]
  %v1089 = vld [vmem:[%s35] sm:$0x1]
  %v1090 = vsel %vm195, %v1087, 0.0
  %1091 = vadd.xlane.f32.xlu0 %v1090
  %v1092 = vpop.xlane.xlu0 %1091
  %v1093 = vmul.f32 %v1092, %v205
  %v1094 = vsub.f32 %v1087, %v1093
  %v1095 = vmul.f32 %v1094, %v1094
  %v1096 = vsel %vm195, %v1095, 0.0
  %1097 = vadd.xlane.f32.xlu0 %v1096
  %v1098 = vpop.xlane.xlu0 %1097
  %v1099 = vmul.f32 %v1098, %v205
  %v1100 = vadd.f32 %v1099, 1e-06
  %v1101 = vrsqrt.pop %v1100
  %v1102 = vmul.f32 %v1101, %v1100
  %v1103 = vmul.f32 %v1102, %v1101
  %v1104 = vmul.f32 0.5, %v1103
  %v1105 = vsub.f32 1.5, %v1104
  %v1106 = vmul.f32 %v1101, %v1105
  %vm1107 = vweird.f32 %v1100
  %vm1108 = vweird.f32 %v1101
  %vm1109 = vmor %vm1107, %vm1108
  %v1110 = vsel %vm1109, %v1101, %v1106
  %v1111 = vmul.f32 %v1094, %v1110
  %v1113 = vperm.slane %v1088, 0
  %v1115 = vmul.f32 %v1111, %v1113
  %v1117 = vperm.slane %v1089, 0
  %v1119 = vadd.f32 %v1115, %v1117
  %v1120 = vld [vmem:[%s37] sm:$0xff]
  %v1121 = vld [vmem:[%s37 + $0x8] sm:$0xff]
  %v1122 = vld [vmem:[%s37 + $0x10] sm:$0xff]
  %v1123 = vld [vmem:[%s37 + $0x18] sm:$0xff]
  %v1124 = vld [vmem:[%s39] sm:$0x1]
  %v1126 = vperm.slane %v1124, 0
  %v1129 = vsel %vm195, %v1119, 0
  %1131 = vmatpush.msra.mxu0 0.0
  %1132 = vmatpush.msra.mxu0 0.0
  %1133 = vmatpush.msra.mxu0 0.0
  %1134 = vmatpush.msra.mxu0 0.0
  %1135 = vmatpush.msra.mxu0 0.0
  %1136 = vmatpush.msra.mxu0 0.0
  %1137 = vmatpush.msra.mxu0 0.0
  %1138 = vmatpush.msra.mxu0 0.0
  %1139 = vmatpush.msra.mxu0 0.0
  %1140 = vmatpush.msra.mxu0 0.0
  %1141 = vmatpush.msra.mxu0 0.0
  %1142 = vmatpush.msra.mxu0 0.0
  %1143 = vmatpush.msra.mxu0 %v1123
  %1144 = vmatpush.msra.mxu0 %v1122
  %1145 = vmatpush.msra.mxu0 %v1121
  %1146 = vmatpush.msra.mxu0 %v1120
  %1147 = vmatmul.f32.gmra.mxu0 %v1129
  %v1148 = vpop.f32.mrf.mxu0
  %v1149 = vadd.f32 %v1126, %v1148
  %1150 = vdwg.mxu0
  %1152 = vrot.lane.b32.xlu0 %v1149, 96
  %v1153 = vpop.permute.xlu0 %1152
  %v1154 = vsel %vm267, %v1149, 0
  %v1156 = vsel %vm267, %v1153, 0
  %1158 = vmatpush.xpose.msra.mxu0 0.0
  %1159 = vmatpush.xpose.msra.mxu0 0.0
  %1160 = vmatpush.xpose.msra.mxu0 0.0
  %1161 = vmatpush.xpose.msra.mxu0 0.0
  %1162 = vmatpush.xpose.msra.mxu0 0.0
  %1163 = vmatpush.xpose.msra.mxu0 0.0
  %1164 = vmatpush.xpose.msra.mxu0 0.0
  %1165 = vmatpush.xpose.msra.mxu0 0.0
  %1166 = vmatpush.xpose.msra.mxu0 0.0
  %1167 = vmatpush.xpose.msra.mxu0 0.0
  %1168 = vmatpush.xpose.msra.mxu0 0.0
  %1169 = vmatpush.xpose.msra.mxu0 0.0
  %1170 = vmatpush.xpose.msra.mxu0 0.0
  %1171 = vmatpush.xpose.msra.mxu0 0.0
  %1172 = vmatpush.xpose.msra.mxu0 0.0
  %1173 = vmatpush.xpose.msra.mxu0 %v1156
  %1174 = vmatmul.f32.gmra.mxu0 %v1154
  %v1175 = vpop.f32.mrf.mxu0
  %v1176 = vadd.f32 0.0, %v1175
  %1177 = vdwg.mxu0
  %v1178 = vmul.f32 %v1176, 0.35355338
  %v1179 = vsel %vm293, %v1178, -inf
  %1180 = vmax.xlane.f32.xlu0 %v1179
  %v1181 = vpop.xlane.xlu0 %1180
  %v1182 = vsub.f32 %v1178, %v1181
  %v1183 = vmul.f32 %v1182, 1.442695
  %v1184 = vpow.pop %v1183
  %v1185 = vsel %vm293, %v1184, 0.0
  %1186 = vadd.xlane.f32.xlu0 %v1185
  %v1187 = vpop.xlane.xlu0 %1186
  %v1188 = vrcp.pop %v1187
  %v1189 = vmul.f32 %v1187, %v1188
  %v1190 = vsub.f32 1.0, %v1189
  %v1191 = vmul.f32 %v1188, %v1190
  %v1192 = vadd.f32 %v1188, %v1191
  %vm1193 = vweird.f32 %v1187
  %vm1194 = vweird.f32 %v1188
  %vm1195 = vmor %vm1193, %vm1194
  %v1196 = vsel %vm1195, %v1188, %v1192
  %v1197 = vand.u32 2147483647, %v1187
  %vm1198 = vcmp.eq.f32.partialorder %v1197, 8.507059e+37
  %v1199 = vand.u32 %v1187, 2147483648
  %v1200 = vor.u32 1.1754944e-38, %v1199
  %v1201 = vsel %vm1198, %v1200, %v1196
  %v1202 = vmul.f32 %v1184, %v1201
  %1203 = vrot.lane.b32.xlu0 %v1149, 64
  %v1204 = vpop.permute.xlu0 %1203
  %v1206 = vsel %vm320, %v1202, 0
  %v1208 = vsel %vm324, %v1204, 0
  %1210 = vmatpush.msra.mxu0 0.0
  %1211 = vmatpush.msra.mxu0 0.0
  %1212 = vmatpush.msra.mxu0 0.0
  %1213 = vmatpush.msra.mxu0 0.0
  %1214 = vmatpush.msra.mxu0 0.0
  %1215 = vmatpush.msra.mxu0 0.0
  %1216 = vmatpush.msra.mxu0 0.0
  %1217 = vmatpush.msra.mxu0 0.0
  %1218 = vmatpush.msra.mxu0 0.0
  %1219 = vmatpush.msra.mxu0 0.0
  %1220 = vmatpush.msra.mxu0 0.0
  %1221 = vmatpush.msra.mxu0 0.0
  %1222 = vmatpush.msra.mxu0 0.0
  %1223 = vmatpush.msra.mxu0 0.0
  %1224 = vmatpush.msra.mxu0 0.0
  %1225 = vmatpush.msra.mxu0 %v1208
  %1226 = vmatmul.f32.gmra.mxu0 %v1206
  %v1227 = vpop.f32.mrf.mxu0
  %v1228 = vadd.f32 0.0, %v1227
  %1229 = vdwg.mxu0
  %1230 = vst.msk [vmem:[#allocation2] sm:$0xf] %vm347, %v1228
  %1231 = vrot.lane.b32.xlu0 %v1149, 120
  %v1232 = vpop.permute.xlu0 %1231
  %1233 = vrot.lane.b32.xlu0 %v1149, 88
  %v1234 = vpop.permute.xlu0 %1233
  %v1235 = vsel %vm267, %v1232, 0
  %v1237 = vsel %vm267, %v1234, 0
  %1239 = vmatpush.xpose.msra.mxu0 0.0
  %1240 = vmatpush.xpose.msra.mxu0 0.0
  %1241 = vmatpush.xpose.msra.mxu0 0.0
  %1242 = vmatpush.xpose.msra.mxu0 0.0
  %1243 = vmatpush.xpose.msra.mxu0 0.0
  %1244 = vmatpush.xpose.msra.mxu0 0.0
  %1245 = vmatpush.xpose.msra.mxu0 0.0
  %1246 = vmatpush.xpose.msra.mxu0 0.0
  %1247 = vmatpush.xpose.msra.mxu0 0.0
  %1248 = vmatpush.xpose.msra.mxu0 0.0
  %1249 = vmatpush.xpose.msra.mxu0 0.0
  %1250 = vmatpush.xpose.msra.mxu0 0.0
  %1251 = vmatpush.xpose.msra.mxu0 0.0
  %1252 = vmatpush.xpose.msra.mxu0 0.0
  %1253 = vmatpush.xpose.msra.mxu0 0.0
  %1254 = vmatpush.xpose.msra.mxu0 %v1237
  %1255 = vmatmul.f32.gmra.mxu0 %v1235
  %v1256 = vpop.f32.mrf.mxu0
  %v1257 = vadd.f32 0.0, %v1256
  %1258 = vdwg.mxu0
  %v1259 = vmul.f32 %v1257, 0.35355338
  %v1260 = vsel %vm293, %v1259, -inf
  %1261 = vmax.xlane.f32.xlu0 %v1260
  %v1262 = vpop.xlane.xlu0 %1261
  %v1263 = vsub.f32 %v1259, %v1262
  %v1264 = vmul.f32 %v1263, 1.442695
  %v1265 = vpow.pop %v1264
  %v1266 = vsel %vm293, %v1265, 0.0
  %1267 = vadd.xlane.f32.xlu0 %v1266
  %v1268 = vpop.xlane.xlu0 %1267
  %v1269 = vrcp.pop %v1268
  %v1270 = vmul.f32 %v1268, %v1269
  %v1271 = vsub.f32 1.0, %v1270
  %v1272 = vmul.f32 %v1269, %v1271
  %v1273 = vadd.f32 %v1269, %v1272
  %vm1274 = vweird.f32 %v1268
  %vm1275 = vweird.f32 %v1269
  %vm1276 = vmor %vm1274, %vm1275
  %v1277 = vsel %vm1276, %v1269, %v1273
  %v1278 = vand.u32 2147483647, %v1268
  %vm1279 = vcmp.eq.f32.partialorder %v1278, 8.507059e+37
  %v1280 = vand.u32 %v1268, 2147483648
  %v1281 = vor.u32 1.1754944e-38, %v1280
  %v1282 = vsel %vm1279, %v1281, %v1277
  %v1283 = vmul.f32 %v1265, %v1282
  %1284 = vrot.lane.b32.xlu0 %v1149, 56
  %v1285 = vpop.permute.xlu0 %1284
  %v1287 = vsel %vm320, %v1283, 0
  %v1289 = vsel %vm324, %v1285, 0
  %1291 = vmatpush.msra.mxu0 0.0
  %1292 = vmatpush.msra.mxu0 0.0
  %1293 = vmatpush.msra.mxu0 0.0
  %1294 = vmatpush.msra.mxu0 0.0
  %1295 = vmatpush.msra.mxu0 0.0
  %1296 = vmatpush.msra.mxu0 0.0
  %1297 = vmatpush.msra.mxu0 0.0
  %1298 = vmatpush.msra.mxu0 0.0
  %1299 = vmatpush.msra.mxu0 0.0
  %1300 = vmatpush.msra.mxu0 0.0
  %1301 = vmatpush.msra.mxu0 0.0
  %1302 = vmatpush.msra.mxu0 0.0
  %1303 = vmatpush.msra.mxu0 0.0
  %1304 = vmatpush.msra.mxu0 0.0
  %1305 = vmatpush.msra.mxu0 0.0
  %1306 = vmatpush.msra.mxu0 %v1289
  %1307 = vmatmul.f32.gmra.mxu0 %v1287
  %v1308 = vpop.f32.mrf.mxu0
  %v1309 = vadd.f32 0.0, %v1308
  %1310 = vdwg.mxu0
  %1312 = vrot.lane.b32.xlu0 %v1309, 8
  %v1313 = vpop.permute.xlu0 %1312
  %1315 = vst.msk [vmem:[#allocation2] sm:$0xf] %vm433, %v1313
  %1316 = vrot.lane.b32.xlu0 %v1149, 112
  %v1317 = vpop.permute.xlu0 %1316
  %1318 = vrot.lane.b32.xlu0 %v1149, 80
  %v1319 = vpop.permute.xlu0 %1318
  %v1320 = vsel %vm267, %v1317, 0
  %v1322 = vsel %vm267, %v1319, 0
  %1324 = vmatpush.xpose.msra.mxu0 0.0
  %1325 = vmatpush.xpose.msra.mxu0 0.0
  %1326 = vmatpush.xpose.msra.mxu0 0.0
  %1327 = vmatpush.xpose.msra.mxu0 0.0
  %1328 = vmatpush.xpose.msra.mxu0 0.0
  %1329 = vmatpush.xpose.msra.mxu0 0.0
  %1330 = vmatpush.xpose.msra.mxu0 0.0
  %1331 = vmatpush.xpose.msra.mxu0 0.0
  %1332 = vmatpush.xpose.msra.mxu0 0.0
  %1333 = vmatpush.xpose.msra.mxu0 0.0
  %1334 = vmatpush.xpose.msra.mxu0 0.0
  %1335 = vmatpush.xpose.msra.mxu0 0.0
  %1336 = vmatpush.xpose.msra.mxu0 0.0
  %1337 = vmatpush.xpose.msra.mxu0 0.0
  %1338 = vmatpush.xpose.msra.mxu0 0.0
  %1339 = vmatpush.xpose.msra.mxu0 %v1322
  %1340 = vmatmul.f32.gmra.mxu0 %v1320
  %v1341 = vpop.f32.mrf.mxu0
  %v1342 = vadd.f32 0.0, %v1341
  %1343 = vdwg.mxu0
  %v1344 = vmul.f32 %v1342, 0.35355338
  %v1345 = vsel %vm293, %v1344, -inf
  %1346 = vmax.xlane.f32.xlu0 %v1345
  %v1347 = vpop.xlane.xlu0 %1346
  %v1348 = vsub.f32 %v1344, %v1347
  %v1349 = vmul.f32 %v1348, 1.442695
  %v1350 = vpow.pop %v1349
  %v1351 = vsel %vm293, %v1350, 0.0
  %1352 = vadd.xlane.f32.xlu0 %v1351
  %v1353 = vpop.xlane.xlu0 %1352
  %v1354 = vrcp.pop %v1353
  %v1355 = vmul.f32 %v1353, %v1354
  %v1356 = vsub.f32 1.0, %v1355
  %v1357 = vmul.f32 %v1354, %v1356
  %v1358 = vadd.f32 %v1354, %v1357
  %vm1359 = vweird.f32 %v1353
  %vm1360 = vweird.f32 %v1354
  %vm1361 = vmor %vm1359, %vm1360
  %v1362 = vsel %vm1361, %v1354, %v1358
  %v1363 = vand.u32 2147483647, %v1353
  %vm1364 = vcmp.eq.f32.partialorder %v1363, 8.507059e+37
  %v1365 = vand.u32 %v1353, 2147483648
  %v1366 = vor.u32 1.1754944e-38, %v1365
  %v1367 = vsel %vm1364, %v1366, %v1362
  %v1368 = vmul.f32 %v1350, %v1367
  %1369 = vrot.lane.b32.xlu0 %v1149, 48
  %v1370 = vpop.permute.xlu0 %1369
  %v1372 = vsel %vm320, %v1368, 0
  %v1374 = vsel %vm324, %v1370, 0
  %1376 = vmatpush.msra.mxu0 0.0
  %1377 = vmatpush.msra.mxu0 0.0
  %1378 = vmatpush.msra.mxu0 0.0
  %1379 = vmatpush.msra.mxu0 0.0
  %1380 = vmatpush.msra.mxu0 0.0
  %1381 = vmatpush.msra.mxu0 0.0
  %1382 = vmatpush.msra.mxu0 0.0
  %1383 = vmatpush.msra.mxu0 0.0
  %1384 = vmatpush.msra.mxu0 0.0
  %1385 = vmatpush.msra.mxu0 0.0
  %1386 = vmatpush.msra.mxu0 0.0
  %1387 = vmatpush.msra.mxu0 0.0
  %1388 = vmatpush.msra.mxu0 0.0
  %1389 = vmatpush.msra.mxu0 0.0
  %1390 = vmatpush.msra.mxu0 0.0
  %1391 = vmatpush.msra.mxu0 %v1374
  %1392 = vmatmul.f32.gmra.mxu0 %v1372
  %v1393 = vpop.f32.mrf.mxu0
  %v1394 = vadd.f32 0.0, %v1393
  %1395 = vdwg.mxu0
  %1397 = vrot.lane.b32.xlu0 %v1394, 16
  %v1398 = vpop.permute.xlu0 %1397
  %1400 = vst.msk [vmem:[#allocation2] sm:$0xf] %vm519, %v1398
  %1401 = vrot.lane.b32.xlu0 %v1149, 104
  %v1402 = vpop.permute.xlu0 %1401
  %1403 = vrot.lane.b32.xlu0 %v1149, 72
  %v1404 = vpop.permute.xlu0 %1403
  %v1405 = vsel %vm267, %v1402, 0
  %v1407 = vsel %vm267, %v1404, 0
  %1409 = vmatpush.xpose.msra.mxu0 0.0
  %1410 = vmatpush.xpose.msra.mxu0 0.0
  %1411 = vmatpush.xpose.msra.mxu0 0.0
  %1412 = vmatpush.xpose.msra.mxu0 0.0
  %1413 = vmatpush.xpose.msra.mxu0 0.0
  %1414 = vmatpush.xpose.msra.mxu0 0.0
  %1415 = vmatpush.xpose.msra.mxu0 0.0
  %1416 = vmatpush.xpose.msra.mxu0 0.0
  %1417 = vmatpush.xpose.msra.mxu0 0.0
  %1418 = vmatpush.xpose.msra.mxu0 0.0
  %1419 = vmatpush.xpose.msra.mxu0 0.0
  %1420 = vmatpush.xpose.msra.mxu0 0.0
  %1421 = vmatpush.xpose.msra.mxu0 0.0
  %1422 = vmatpush.xpose.msra.mxu0 0.0
  %1423 = vmatpush.xpose.msra.mxu0 0.0
  %1424 = vmatpush.xpose.msra.mxu0 %v1407
  %1425 = vmatmul.f32.gmra.mxu0 %v1405
  %v1426 = vpop.f32.mrf.mxu0
  %v1427 = vadd.f32 0.0, %v1426
  %1428 = vdwg.mxu0
  %v1429 = vmul.f32 %v1427, 0.35355338
  %v1430 = vsel %vm293, %v1429, -inf
  %1431 = vmax.xlane.f32.xlu0 %v1430
  %v1432 = vpop.xlane.xlu0 %1431
  %v1433 = vsub.f32 %v1429, %v1432
  %v1434 = vmul.f32 %v1433, 1.442695
  %v1435 = vpow.pop %v1434
  %v1436 = vsel %vm293, %v1435, 0.0
  %1437 = vadd.xlane.f32.xlu0 %v1436
  %v1438 = vpop.xlane.xlu0 %1437
  %v1439 = vrcp.pop %v1438
  %v1440 = vmul.f32 %v1438, %v1439
  %v1441 = vsub.f32 1.0, %v1440
  %v1442 = vmul.f32 %v1439, %v1441
  %v1443 = vadd.f32 %v1439, %v1442
  %vm1444 = vweird.f32 %v1438
  %vm1445 = vweird.f32 %v1439
  %vm1446 = vmor %vm1444, %vm1445
  %v1447 = vsel %vm1446, %v1439, %v1443
  %v1448 = vand.u32 2147483647, %v1438
  %vm1449 = vcmp.eq.f32.partialorder %v1448, 8.507059e+37
  %v1450 = vand.u32 %v1438, 2147483648
  %v1451 = vor.u32 1.1754944e-38, %v1450
  %v1452 = vsel %vm1449, %v1451, %v1447
  %v1453 = vmul.f32 %v1435, %v1452
  %1454 = vrot.lane.b32.xlu0 %v1149, 40
  %v1455 = vpop.permute.xlu0 %1454
  %v1457 = vsel %vm320, %v1453, 0
  %v1459 = vsel %vm324, %v1455, 0
  %1461 = vmatpush.msra.mxu0 0.0
  %1462 = vmatpush.msra.mxu0 0.0
  %1463 = vmatpush.msra.mxu0 0.0
  %1464 = vmatpush.msra.mxu0 0.0
  %1465 = vmatpush.msra.mxu0 0.0
  %1466 = vmatpush.msra.mxu0 0.0
  %1467 = vmatpush.msra.mxu0 0.0
  %1468 = vmatpush.msra.mxu0 0.0
  %1469 = vmatpush.msra.mxu0 0.0
  %1470 = vmatpush.msra.mxu0 0.0
  %1471 = vmatpush.msra.mxu0 0.0
  %1472 = vmatpush.msra.mxu0 0.0
  %1473 = vmatpush.msra.mxu0 0.0
  %1474 = vmatpush.msra.mxu0 0.0
  %1475 = vmatpush.msra.mxu0 0.0
  %1476 = vmatpush.msra.mxu0 %v1459
  %1477 = vmatmul.f32.gmra.mxu0 %v1457
  %v1478 = vpop.f32.mrf.mxu0
  %v1479 = vadd.f32 0.0, %v1478
  %1480 = vdwg.mxu0
  %1482 = vrot.lane.b32.xlu0 %v1479, 24
  %v1483 = vpop.permute.xlu0 %1482
  %1485 = vst.msk [vmem:[#allocation2] sm:$0xf] %vm605, %v1483
  %v1486 = vrot.slane %v1149, 4
  %1487 = vrot.lane.b32.xlu0 %v1486, 96
  %v1488 = vpop.permute.xlu0 %1487
  %v1489 = vsel %vm267, %v1486, 0
  %v1491 = vsel %vm267, %v1488, 0
  %1493 = vmatpush.xpose.msra.mxu0 0.0
  %1494 = vmatpush.xpose.msra.mxu0 0.0
  %1495 = vmatpush.xpose.msra.mxu0 0.0
  %1496 = vmatpush.xpose.msra.mxu0 0.0
  %1497 = vmatpush.xpose.msra.mxu0 0.0
  %1498 = vmatpush.xpose.msra.mxu0 0.0
  %1499 = vmatpush.xpose.msra.mxu0 0.0
  %1500 = vmatpush.xpose.msra.mxu0 0.0
  %1501 = vmatpush.xpose.msra.mxu0 0.0
  %1502 = vmatpush.xpose.msra.mxu0 0.0
  %1503 = vmatpush.xpose.msra.mxu0 0.0
  %1504 = vmatpush.xpose.msra.mxu0 0.0
  %1505 = vmatpush.xpose.msra.mxu0 0.0
  %1506 = vmatpush.xpose.msra.mxu0 0.0
  %1507 = vmatpush.xpose.msra.mxu0 0.0
  %1508 = vmatpush.xpose.msra.mxu0 %v1491
  %1509 = vmatmul.f32.gmra.mxu0 %v1489
  %v1510 = vpop.f32.mrf.mxu0
  %v1511 = vadd.f32 0.0, %v1510
  %1512 = vdwg.mxu0
  %v1513 = vmul.f32 %v1511, 0.35355338
  %v1514 = vsel %vm293, %v1513, -inf
  %1515 = vmax.xlane.f32.xlu0 %v1514
  %v1516 = vpop.xlane.xlu0 %1515
  %v1517 = vsub.f32 %v1513, %v1516
  %v1518 = vmul.f32 %v1517, 1.442695
  %v1519 = vpow.pop %v1518
  %v1520 = vsel %vm293, %v1519, 0.0
  %1521 = vadd.xlane.f32.xlu0 %v1520
  %v1522 = vpop.xlane.xlu0 %1521
  %v1523 = vrcp.pop %v1522
  %v1524 = vmul.f32 %v1522, %v1523
  %v1525 = vsub.f32 1.0, %v1524
  %v1526 = vmul.f32 %v1523, %v1525
  %v1527 = vadd.f32 %v1523, %v1526
  %vm1528 = vweird.f32 %v1522
  %vm1529 = vweird.f32 %v1523
  %vm1530 = vmor %vm1528, %vm1529
  %v1531 = vsel %vm1530, %v1523, %v1527
  %v1532 = vand.u32 2147483647, %v1522
  %vm1533 = vcmp.eq.f32.partialorder %v1532, 8.507059e+37
  %v1534 = vand.u32 %v1522, 2147483648
  %v1535 = vor.u32 1.1754944e-38, %v1534
  %v1536 = vsel %vm1533, %v1535, %v1531
  %v1537 = vmul.f32 %v1519, %v1536
  %1538 = vrot.lane.b32.xlu0 %v1486, 64
  %v1539 = vpop.permute.xlu0 %1538
  %v1541 = vsel %vm320, %v1537, 0
  %v1543 = vsel %vm324, %v1539, 0
  %1545 = vmatpush.msra.mxu0 0.0
  %1546 = vmatpush.msra.mxu0 0.0
  %1547 = vmatpush.msra.mxu0 0.0
  %1548 = vmatpush.msra.mxu0 0.0
  %1549 = vmatpush.msra.mxu0 0.0
  %1550 = vmatpush.msra.mxu0 0.0
  %1551 = vmatpush.msra.mxu0 0.0
  %1552 = vmatpush.msra.mxu0 0.0
  %1553 = vmatpush.msra.mxu0 0.0
  %1554 = vmatpush.msra.mxu0 0.0
  %1555 = vmatpush.msra.mxu0 0.0
  %1556 = vmatpush.msra.mxu0 0.0
  %1557 = vmatpush.msra.mxu0 0.0
  %1558 = vmatpush.msra.mxu0 0.0
  %1559 = vmatpush.msra.mxu0 0.0
  %1560 = vmatpush.msra.mxu0 %v1543
  %1561 = vmatmul.f32.gmra.mxu0 %v1541
  %v1562 = vpop.f32.mrf.mxu0
  %v1563 = vadd.f32 0.0, %v1562
  %1564 = vdwg.mxu0
  %1565 = vst.msk [vmem:[#allocation2 + $0x4] sm:$0xf] %vm347, %v1563
  %1566 = vrot.lane.b32.xlu0 %v1486, 120
  %v1567 = vpop.permute.xlu0 %1566
  %1568 = vrot.lane.b32.xlu0 %v1486, 88
  %v1569 = vpop.permute.xlu0 %1568
  %v1570 = vsel %vm267, %v1567, 0
  %v1572 = vsel %vm267, %v1569, 0
  %1574 = vmatpush.xpose.msra.mxu0 0.0
  %1575 = vmatpush.xpose.msra.mxu0 0.0
  %1576 = vmatpush.xpose.msra.mxu0 0.0
  %1577 = vmatpush.xpose.msra.mxu0 0.0
  %1578 = vmatpush.xpose.msra.mxu0 0.0
  %1579 = vmatpush.xpose.msra.mxu0 0.0
  %1580 = vmatpush.xpose.msra.mxu0 0.0
  %1581 = vmatpush.xpose.msra.mxu0 0.0
  %1582 = vmatpush.xpose.msra.mxu0 0.0
  %1583 = vmatpush.xpose.msra.mxu0 0.0
  %1584 = vmatpush.xpose.msra.mxu0 0.0
  %1585 = vmatpush.xpose.msra.mxu0 0.0
  %1586 = vmatpush.xpose.msra.mxu0 0.0
  %1587 = vmatpush.xpose.msra.mxu0 0.0
  %1588 = vmatpush.xpose.msra.mxu0 0.0
  %1589 = vmatpush.xpose.msra.mxu0 %v1572
  %1590 = vmatmul.f32.gmra.mxu0 %v1570
  %v1591 = vpop.f32.mrf.mxu0
  %v1592 = vadd.f32 0.0, %v1591
  %1593 = vdwg.mxu0
  %v1594 = vmul.f32 %v1592, 0.35355338
  %v1595 = vsel %vm293, %v1594, -inf
  %1596 = vmax.xlane.f32.xlu0 %v1595
  %v1597 = vpop.xlane.xlu0 %1596
  %v1598 = vsub.f32 %v1594, %v1597
  %v1599 = vmul.f32 %v1598, 1.442695
  %v1600 = vpow.pop %v1599
  %v1601 = vsel %vm293, %v1600, 0.0
  %1602 = vadd.xlane.f32.xlu0 %v1601
  %v1603 = vpop.xlane.xlu0 %1602
  %v1604 = vrcp.pop %v1603
  %v1605 = vmul.f32 %v1603, %v1604
  %v1606 = vsub.f32 1.0, %v1605
  %v1607 = vmul.f32 %v1604, %v1606
  %v1608 = vadd.f32 %v1604, %v1607
  %vm1609 = vweird.f32 %v1603
  %vm1610 = vweird.f32 %v1604
  %vm1611 = vmor %vm1609, %vm1610
  %v1612 = vsel %vm1611, %v1604, %v1608
  %v1613 = vand.u32 2147483647, %v1603
  %vm1614 = vcmp.eq.f32.partialorder %v1613, 8.507059e+37
  %v1615 = vand.u32 %v1603, 2147483648
  %v1616 = vor.u32 1.1754944e-38, %v1615
  %v1617 = vsel %vm1614, %v1616, %v1612
  %v1618 = vmul.f32 %v1600, %v1617
  %1619 = vrot.lane.b32.xlu0 %v1486, 56
  %v1620 = vpop.permute.xlu0 %1619
  %v1622 = vsel %vm320, %v1618, 0
  %v1624 = vsel %vm324, %v1620, 0
  %1626 = vmatpush.msra.mxu0 0.0
  %1627 = vmatpush.msra.mxu0 0.0
  %1628 = vmatpush.msra.mxu0 0.0
  %1629 = vmatpush.msra.mxu0 0.0
  %1630 = vmatpush.msra.mxu0 0.0
  %1631 = vmatpush.msra.mxu0 0.0
  %1632 = vmatpush.msra.mxu0 0.0
  %1633 = vmatpush.msra.mxu0 0.0
  %1634 = vmatpush.msra.mxu0 0.0
  %1635 = vmatpush.msra.mxu0 0.0
  %1636 = vmatpush.msra.mxu0 0.0
  %1637 = vmatpush.msra.mxu0 0.0
  %1638 = vmatpush.msra.mxu0 0.0
  %1639 = vmatpush.msra.mxu0 0.0
  %1640 = vmatpush.msra.mxu0 0.0
  %1641 = vmatpush.msra.mxu0 %v1624
  %1642 = vmatmul.f32.gmra.mxu0 %v1622
  %v1643 = vpop.f32.mrf.mxu0
  %v1644 = vadd.f32 0.0, %v1643
  %1645 = vdwg.mxu0
  %1647 = vrot.lane.b32.xlu0 %v1644, 8
  %v1648 = vpop.permute.xlu0 %1647
  %1650 = vst.msk [vmem:[#allocation2 + $0x4] sm:$0xf] %vm433, %v1648
  %1651 = vrot.lane.b32.xlu0 %v1486, 112
  %v1652 = vpop.permute.xlu0 %1651
  %1653 = vrot.lane.b32.xlu0 %v1486, 80
  %v1654 = vpop.permute.xlu0 %1653
  %v1655 = vsel %vm267, %v1652, 0
  %v1657 = vsel %vm267, %v1654, 0
  %1659 = vmatpush.xpose.msra.mxu0 0.0
  %1660 = vmatpush.xpose.msra.mxu0 0.0
  %1661 = vmatpush.xpose.msra.mxu0 0.0
  %1662 = vmatpush.xpose.msra.mxu0 0.0
  %1663 = vmatpush.xpose.msra.mxu0 0.0
  %1664 = vmatpush.xpose.msra.mxu0 0.0
  %1665 = vmatpush.xpose.msra.mxu0 0.0
  %1666 = vmatpush.xpose.msra.mxu0 0.0
  %1667 = vmatpush.xpose.msra.mxu0 0.0
  %1668 = vmatpush.xpose.msra.mxu0 0.0
  %1669 = vmatpush.xpose.msra.mxu0 0.0
  %1670 = vmatpush.xpose.msra.mxu0 0.0
  %1671 = vmatpush.xpose.msra.mxu0 0.0
  %1672 = vmatpush.xpose.msra.mxu0 0.0
  %1673 = vmatpush.xpose.msra.mxu0 0.0
  %1674 = vmatpush.xpose.msra.mxu0 %v1657
  %1675 = vmatmul.f32.gmra.mxu0 %v1655
  %v1676 = vpop.f32.mrf.mxu0
  %v1677 = vadd.f32 0.0, %v1676
  %1678 = vdwg.mxu0
  %v1679 = vmul.f32 %v1677, 0.35355338
  %v1680 = vsel %vm293, %v1679, -inf
  %1681 = vmax.xlane.f32.xlu0 %v1680
  %v1682 = vpop.xlane.xlu0 %1681
  %v1683 = vsub.f32 %v1679, %v1682
  %v1684 = vmul.f32 %v1683, 1.442695
  %v1685 = vpow.pop %v1684
  %v1686 = vsel %vm293, %v1685, 0.0
  %1687 = vadd.xlane.f32.xlu0 %v1686
  %v1688 = vpop.xlane.xlu0 %1687
  %v1689 = vrcp.pop %v1688
  %v1690 = vmul.f32 %v1688, %v1689
  %v1691 = vsub.f32 1.0, %v1690
  %v1692 = vmul.f32 %v1689, %v1691
  %v1693 = vadd.f32 %v1689, %v1692
  %vm1694 = vweird.f32 %v1688
  %vm1695 = vweird.f32 %v1689
  %vm1696 = vmor %vm1694, %vm1695
  %v1697 = vsel %vm1696, %v1689, %v1693
  %v1698 = vand.u32 2147483647, %v1688
  %vm1699 = vcmp.eq.f32.partialorder %v1698, 8.507059e+37
  %v1700 = vand.u32 %v1688, 2147483648
  %v1701 = vor.u32 1.1754944e-38, %v1700
  %v1702 = vsel %vm1699, %v1701, %v1697
  %v1703 = vmul.f32 %v1685, %v1702
  %1704 = vrot.lane.b32.xlu0 %v1486, 48
  %v1705 = vpop.permute.xlu0 %1704
  %v1707 = vsel %vm320, %v1703, 0
  %v1709 = vsel %vm324, %v1705, 0
  %1711 = vmatpush.msra.mxu0 0.0
  %1712 = vmatpush.msra.mxu0 0.0
  %1713 = vmatpush.msra.mxu0 0.0
  %1714 = vmatpush.msra.mxu0 0.0
  %1715 = vmatpush.msra.mxu0 0.0
  %1716 = vmatpush.msra.mxu0 0.0
  %1717 = vmatpush.msra.mxu0 0.0
  %1718 = vmatpush.msra.mxu0 0.0
  %1719 = vmatpush.msra.mxu0 0.0
  %1720 = vmatpush.msra.mxu0 0.0
  %1721 = vmatpush.msra.mxu0 0.0
  %1722 = vmatpush.msra.mxu0 0.0
  %1723 = vmatpush.msra.mxu0 0.0
  %1724 = vmatpush.msra.mxu0 0.0
  %1725 = vmatpush.msra.mxu0 0.0
  %1726 = vmatpush.msra.mxu0 %v1709
  %1727 = vmatmul.f32.gmra.mxu0 %v1707
  %v1728 = vpop.f32.mrf.mxu0
  %v1729 = vadd.f32 0.0, %v1728
  %1730 = vdwg.mxu0
  %1732 = vrot.lane.b32.xlu0 %v1729, 16
  %v1733 = vpop.permute.xlu0 %1732
  %1735 = vst.msk [vmem:[#allocation2 + $0x4] sm:$0xf] %vm519, %v1733
  %1736 = vrot.lane.b32.xlu0 %v1486, 104
  %v1737 = vpop.permute.xlu0 %1736
  %1738 = vrot.lane.b32.xlu0 %v1486, 72
  %v1739 = vpop.permute.xlu0 %1738
  %v1740 = vsel %vm267, %v1737, 0
  %v1742 = vsel %vm267, %v1739, 0
  %1744 = vmatpush.xpose.msra.mxu0 0.0
  %1745 = vmatpush.xpose.msra.mxu0 0.0
  %1746 = vmatpush.xpose.msra.mxu0 0.0
  %1747 = vmatpush.xpose.msra.mxu0 0.0
  %1748 = vmatpush.xpose.msra.mxu0 0.0
  %1749 = vmatpush.xpose.msra.mxu0 0.0
  %1750 = vmatpush.xpose.msra.mxu0 0.0
  %1751 = vmatpush.xpose.msra.mxu0 0.0
  %1752 = vmatpush.xpose.msra.mxu0 0.0
  %1753 = vmatpush.xpose.msra.mxu0 0.0
  %1754 = vmatpush.xpose.msra.mxu0 0.0
  %1755 = vmatpush.xpose.msra.mxu0 0.0
  %1756 = vmatpush.xpose.msra.mxu0 0.0
  %1757 = vmatpush.xpose.msra.mxu0 0.0
  %1758 = vmatpush.xpose.msra.mxu0 0.0
  %1759 = vmatpush.xpose.msra.mxu0 %v1742
  %1760 = vmatmul.f32.gmra.mxu0 %v1740
  %v1761 = vpop.f32.mrf.mxu0
  %v1762 = vadd.f32 0.0, %v1761
  %1763 = vdwg.mxu0
  %v1764 = vmul.f32 %v1762, 0.35355338
  %v1765 = vsel %vm293, %v1764, -inf
  %1766 = vmax.xlane.f32.xlu0 %v1765
  %v1767 = vpop.xlane.xlu0 %1766
  %v1768 = vsub.f32 %v1764, %v1767
  %v1769 = vmul.f32 %v1768, 1.442695
  %v1770 = vpow.pop %v1769
  %v1771 = vsel %vm293, %v1770, 0.0
  %1772 = vadd.xlane.f32.xlu0 %v1771
  %v1773 = vpop.xlane.xlu0 %1772
  %v1774 = vrcp.pop %v1773
  %v1775 = vmul.f32 %v1773, %v1774
  %v1776 = vsub.f32 1.0, %v1775
  %v1777 = vmul.f32 %v1774, %v1776
  %v1778 = vadd.f32 %v1774, %v1777
  %vm1779 = vweird.f32 %v1773
  %vm1780 = vweird.f32 %v1774
  %vm1781 = vmor %vm1779, %vm1780
  %v1782 = vsel %vm1781, %v1774, %v1778
  %v1783 = vand.u32 2147483647, %v1773
  %vm1784 = vcmp.eq.f32.partialorder %v1783, 8.507059e+37
  %v1785 = vand.u32 %v1773, 2147483648
  %v1786 = vor.u32 1.1754944e-38, %v1785
  %v1787 = vsel %vm1784, %v1786, %v1782
  %v1788 = vmul.f32 %v1770, %v1787
  %1789 = vrot.lane.b32.xlu0 %v1486, 40
  %v1790 = vpop.permute.xlu0 %1789
  %v1792 = vsel %vm320, %v1788, 0
  %v1794 = vsel %vm324, %v1790, 0
  %1796 = vmatpush.msra.mxu0 0.0
  %1797 = vmatpush.msra.mxu0 0.0
  %1798 = vmatpush.msra.mxu0 0.0
  %1799 = vmatpush.msra.mxu0 0.0
  %1800 = vmatpush.msra.mxu0 0.0
  %1801 = vmatpush.msra.mxu0 0.0
  %1802 = vmatpush.msra.mxu0 0.0
  %1803 = vmatpush.msra.mxu0 0.0
  %1804 = vmatpush.msra.mxu0 0.0
  %1805 = vmatpush.msra.mxu0 0.0
  %1806 = vmatpush.msra.mxu0 0.0
  %1807 = vmatpush.msra.mxu0 0.0
  %1808 = vmatpush.msra.mxu0 0.0
  %1809 = vmatpush.msra.mxu0 0.0
  %1810 = vmatpush.msra.mxu0 0.0
  %1811 = vmatpush.msra.mxu0 %v1794
  %1812 = vmatmul.f32.gmra.mxu0 %v1792
  %v1813 = vpop.f32.mrf.mxu0
  %v1814 = vadd.f32 0.0, %v1813
  %1815 = vdwg.mxu0
  %1817 = vrot.lane.b32.xlu0 %v1814, 24
  %v1818 = vpop.permute.xlu0 %1817
  %1820 = vst.msk [vmem:[#allocation2 + $0x4] sm:$0xf] %vm605, %v1818
  %v1821 = vld [vmem:[#allocation2] sm:$0xff]
  %v1822 = vld [vmem:[%s41] sm:$0xff]
  %v1823 = vld [vmem:[%s41 + $0x8] sm:$0xff]
  %v1824 = vld [vmem:[%s41 + $0x10] sm:$0xff]
  %v1825 = vld [vmem:[%s41 + $0x18] sm:$0xff]
  %v1826 = vld [vmem:[%s43] sm:$0x1]
  %v1828 = vperm.slane %v1826, 0
  %v1831 = vsel %vm195, %v1821, 0
  %1833 = vmatpush.msra.mxu0 0.0
  %1834 = vmatpush.msra.mxu0 0.0
  %1835 = vmatpush.msra.mxu0 0.0
  %1836 = vmatpush.msra.mxu0 0.0
  %1837 = vmatpush.msra.mxu0 0.0
  %1838 = vmatpush.msra.mxu0 0.0
  %1839 = vmatpush.msra.mxu0 0.0
  %1840 = vmatpush.msra.mxu0 0.0
  %1841 = vmatpush.msra.mxu0 0.0
  %1842 = vmatpush.msra.mxu0 0.0
  %1843 = vmatpush.msra.mxu0 0.0
  %1844 = vmatpush.msra.mxu0 0.0
  %1845 = vmatpush.msra.mxu0 %v1825
  %1846 = vmatpush.msra.mxu0 %v1824
  %1847 = vmatpush.msra.mxu0 %v1823
  %1848 = vmatpush.msra.mxu0 %v1822
  %1849 = vmatmul.f32.gmra.mxu0 %v1831
  %v1850 = vpop.f32.mrf.mxu0
  %v1851 = vadd.f32 %v1828, %v1850
  %1852 = vdwg.mxu0
  %v1853 = vadd.f32 %v1087, %v1851
  %v1854 = vld [vmem:[%s45] sm:$0x1]
  %v1855 = vld [vmem:[%s47] sm:$0x1]
  %v1856 = vsel %vm195, %v1853, 0.0
  %1857 = vadd.xlane.f32.xlu0 %v1856
  %v1858 = vpop.xlane.xlu0 %1857
  %v1859 = vmul.f32 %v1858, %v205
  %v1860 = vsub.f32 %v1853, %v1859
  %v1861 = vmul.f32 %v1860, %v1860
  %v1862 = vsel %vm195, %v1861, 0.0
  %1863 = vadd.xlane.f32.xlu0 %v1862
  %v1864 = vpop.xlane.xlu0 %1863
  %v1865 = vmul.f32 %v1864, %v205
  %v1866 = vadd.f32 %v1865, 1e-06
  %v1867 = vrsqrt.pop %v1866
  %v1868 = vmul.f32 %v1867, %v1866
  %v1869 = vmul.f32 %v1868, %v1867
  %v1870 = vmul.f32 0.5, %v1869
  %v1871 = vsub.f32 1.5, %v1870
  %v1872 = vmul.f32 %v1867, %v1871
  %vm1873 = vweird.f32 %v1866
  %vm1874 = vweird.f32 %v1867
  %vm1875 = vmor %vm1873, %vm1874
  %v1876 = vsel %vm1875, %v1867, %v1872
  %v1877 = vmul.f32 %v1860, %v1876
  %v1879 = vperm.slane %v1854, 0
  %v1881 = vmul.f32 %v1877, %v1879
  %v1883 = vperm.slane %v1855, 0
  %v1885 = vadd.f32 %v1881, %v1883
  %v1886 = vld [vmem:[%s49] sm:$0xff]
  %v1887 = vld [vmem:[%s49 + $0x8] sm:$0xff]
  %v1888 = vld [vmem:[%s49 + $0x10] sm:$0xff]
  %v1889 = vld [vmem:[%s49 + $0x18] sm:$0xff]
  %v1890 = vld [vmem:[%s51] sm:$0x1]
  %v1892 = vperm.slane %v1890, 0
  %v1895 = vsel %vm195, %v1885, 0
  %1897 = vmatpush.msra.mxu0 0.0
  %1898 = vmatpush.msra.mxu0 0.0
  %1899 = vmatpush.msra.mxu0 0.0
  %1900 = vmatpush.msra.mxu0 0.0
  %1901 = vmatpush.msra.mxu0 0.0
  %1902 = vmatpush.msra.mxu0 0.0
  %1903 = vmatpush.msra.mxu0 0.0
  %1904 = vmatpush.msra.mxu0 0.0
  %1905 = vmatpush.msra.mxu0 0.0
  %1906 = vmatpush.msra.mxu0 0.0
  %1907 = vmatpush.msra.mxu0 0.0
  %1908 = vmatpush.msra.mxu0 0.0
  %1909 = vmatpush.msra.mxu0 %v1889
  %1910 = vmatpush.msra.mxu0 %v1888
  %1911 = vmatpush.msra.mxu0 %v1887
  %1912 = vmatpush.msra.mxu0 %v1886
  %1913 = vmatmul.f32.gmra.mxu0 %v1895
  %v1914 = vpop.f32.mrf.mxu0
  %v1915 = vadd.f32 %v1892, %v1914
  %1916 = vdwg.mxu0
  %v1917 = vmul.f32 %v1915, 0.5
  %v1918 = vmul.f32 %v1915, 0.044715
  %v1919 = vmul.f32 %v1918, %v1915
  %v1920 = vmul.f32 %v1919, %v1915
  %v1921 = vadd.f32 %v1915, %v1920
  %v1922 = vmul.f32 %v1921, 0.7978846
  %v1923 = vtanh.pop %v1922
  %v1924 = vadd.f32 %v1923, 1.0
  %v1925 = vmul.f32 %v1917, %v1924
  %v1926 = vld [vmem:[%s53] sm:$0xff]
  %v1927 = vld [vmem:[%s53 + $0x8] sm:$0xff]
  %v1928 = vld [vmem:[%s53 + $0x10] sm:$0xff]
  %v1929 = vld [vmem:[%s53 + $0x18] sm:$0xff]
  %v1930 = vld [vmem:[%s53 + $0x20] sm:$0xff]
  %v1931 = vld [vmem:[%s53 + $0x28] sm:$0xff]
  %v1932 = vld [vmem:[%s53 + $0x30] sm:$0xff]
  %v1933 = vld [vmem:[%s53 + $0x38] sm:$0xff]
  %v1934 = vld [vmem:[%s53 + $0x40] sm:$0xff]
  %v1935 = vld [vmem:[%s53 + $0x48] sm:$0xff]
  %v1936 = vld [vmem:[%s53 + $0x50] sm:$0xff]
  %v1937 = vld [vmem:[%s53 + $0x58] sm:$0xff]
  %v1938 = vld [vmem:[%s53 + $0x60] sm:$0xff]
  %v1939 = vld [vmem:[%s53 + $0x68] sm:$0xff]
  %v1940 = vld [vmem:[%s53 + $0x70] sm:$0xff]
  %v1941 = vld [vmem:[%s53 + $0x78] sm:$0xff]
  %v1942 = vld [vmem:[%s55] sm:$0x1]
  %v1944 = vperm.slane %v1942, 0
  %1946 = vmatpush.msra.mxu0 %v1941
  %1947 = vmatpush.msra.mxu0 %v1940
  %1948 = vmatpush.msra.mxu0 %v1939
  %1949 = vmatpush.msra.mxu0 %v1938
  %1950 = vmatpush.msra.mxu0 %v1937
  %1951 = vmatpush.msra.mxu0 %v1936
  %1952 = vmatpush.msra.mxu0 %v1935
  %1953 = vmatpush.msra.mxu0 %v1934
  %1954 = vmatpush.msra.mxu0 %v1933
  %1955 = vmatpush.msra.mxu0 %v1932
  %1956 = vmatpush.msra.mxu0 %v1931
  %1957 = vmatpush.msra.mxu0 %v1930
  %1958 = vmatpush.msra.mxu0 %v1929
  %1959 = vmatpush.msra.mxu0 %v1928
  %1960 = vmatpush.msra.mxu0 %v1927
  %1961 = vmatpush.msra.mxu0 %v1926
  %1962 = vmatmul.f32.gmra.mxu0 %v1925
  %v1963 = vpop.f32.mrf.mxu0
  %v1964 = vadd.f32 %v1944, %v1963
  %1965 = vdwg.mxu0
  %v1966 = vadd.f32 %v1853, %v1964
  %v1967 = vsel %vm195, %v1966, 0.0
  %1968 = vadd.xlane.f32.xlu0 %v1967
  %v1969 = vpop.xlane.xlu0 %1968
  %v1970 = vmul.f32 %v1969, %v205
  %v1971 = vsub.f32 %v1966, %v1970
  %v1972 = vmul.f32 %v1971, %v1971
  %v1973 = vsel %vm195, %v1972, 0.0
  %1974 = vadd.xlane.f32.xlu0 %v1973
  %v1975 = vpop.xlane.xlu0 %1974
  %v1976 = vmul.f32 %v1975, %v205
  %v1977 = vadd.f32 %v1976, 1e-06
  %v1978 = vrsqrt.pop %v1977
  %v1979 = vmul.f32 %v1978, %v1977
  %v1980 = vmul.f32 %v1979, %v1978
  %v1981 = vmul.f32 0.5, %v1980
  %v1982 = vsub.f32 1.5, %v1981
  %v1983 = vmul.f32 %v1978, %v1982
  %vm1984 = vweird.f32 %v1977
  %vm1985 = vweird.f32 %v1978
  %vm1986 = vmor %vm1984, %vm1985
  %v1987 = vsel %vm1986, %v1978, %v1983
  %v1988 = vmul.f32 %v1971, %v1987
  %v1990 = vperm.slane %v153, 0
  %v1992 = vmul.f32 %v1988, %v1990
  %v1994 = vperm.slane %v154, 0
  %v1996 = vadd.f32 %v1992, %v1994
  %v1998 = vperm.slane %v159, 0
  %v2001 = vsel %vm195, %v1996, 0
  %2003 = vmatpush.msra.mxu0 0.0
  %2004 = vmatpush.msra.mxu0 0.0
  %2005 = vmatpush.msra.mxu0 0.0
  %2006 = vmatpush.msra.mxu0 0.0
  %2007 = vmatpush.msra.mxu0 0.0
  %2008 = vmatpush.msra.mxu0 0.0
  %2009 = vmatpush.msra.mxu0 0.0
  %2010 = vmatpush.msra.mxu0 0.0
  %2011 = vmatpush.msra.mxu0 0.0
  %2012 = vmatpush.msra.mxu0 0.0
  %2013 = vmatpush.msra.mxu0 0.0
  %2014 = vmatpush.msra.mxu0 0.0
  %2015 = vmatpush.msra.mxu0 %v158
  %2016 = vmatpush.msra.mxu0 %v157
  %2017 = vmatpush.msra.mxu0 %v156
  %2018 = vmatpush.msra.mxu0 %v155
  %2019 = vmatmul.f32.gmra.mxu0 %v2001
  %v2020 = vpop.f32.mrf.mxu0
  %v2021 = vadd.f32 %v1998, %v2020
  %2022 = vdwg.mxu0
  %v2023 = vmul.f32 %v2021, 0.5
  %v2024 = vmul.f32 %v2021, 0.044715
  %v2025 = vmul.f32 %v2024, %v2021
  %v2026 = vmul.f32 %v2025, %v2021
  %v2027 = vadd.f32 %v2021, %v2026
  %v2028 = vmul.f32 %v2027, 0.7978846
  %v2029 = vtanh.pop %v2028
  %v2030 = vadd.f32 %v2029, 1.0
  %v2031 = vmul.f32 %v2023, %v2030
  %v2033 = vperm.slane %v164, 0
  %v2036 = vsel %vm195, %v2031, 0
  %2038 = vmatpush.msra.mxu0 0.0
  %2039 = vmatpush.msra.mxu0 0.0
  %2040 = vmatpush.msra.mxu0 0.0
  %2041 = vmatpush.msra.mxu0 0.0
  %2042 = vmatpush.msra.mxu0 0.0
  %2043 = vmatpush.msra.mxu0 0.0
  %2044 = vmatpush.msra.mxu0 0.0
  %2045 = vmatpush.msra.mxu0 0.0
  %2046 = vmatpush.msra.mxu0 0.0
  %2047 = vmatpush.msra.mxu0 0.0
  %2048 = vmatpush.msra.mxu0 0.0
  %2049 = vmatpush.msra.mxu0 0.0
  %2050 = vmatpush.msra.mxu0 %v163
  %2051 = vmatpush.msra.mxu0 %v162
  %2052 = vmatpush.msra.mxu0 %v161
  %2053 = vmatpush.msra.mxu0 %v160
  %2054 = vmatmul.f32.gmra.mxu0 %v2036
  %v2055 = vpop.f32.mrf.mxu0
  %v2056 = vadd.f32 %v2033, %v2055
  %2057 = vdwg.mxu0
  %2058 = vst [vmem:[%s69] sm:$0xff] %v2056
  // Predicated region
  $region138: #{baseline_forward.1} parent=0 // pred_check
    _
  $region139: #{baseline_forward.1} parent=0 // pred_check_branch
    %2060 = sbr.rel (0) target = $region141
  $region140: #{baseline_forward.1} parent=0 // pred_region
    _
  $region141: #{baseline_forward.1} parent=0 // pred_fallthru
    _
  // Predicated region
  $region142: #{baseline_forward.1} parent=0 // pred_check
    _
  $region143: #{baseline_forward.1} parent=0 // pred_check_branch
    %2062 = sbr.rel (0) target = $region145
  $region144: #{baseline_forward.1} parent=0 // pred_region
    _
  $region145: #{baseline_forward.1} parent=0 // pred_fallthru
    _

</llo_original>
